<compile_context>
chip_gen: v7x
topology: tpu7x:2x2x1
jax: 0.10.0
libtpu: 0.0.40
codegen_flags: <defaults>
</compile_context>

<pallas_src>
import functools

import jax
import jax.numpy as jnp
from jax import lax
from jax.experimental import pallas as pl
from jax.experimental.pallas import tpu as pltpu


# ----------------------------------------------------------------------------
# Kernel (one grid step == one batch element / sequence)
# ----------------------------------------------------------------------------
def decoder_layer_kernel(
    tgt_ref, mem_ref,
    sa_w_ref, sa_b_ref, sa_wo_ref, sa_bo_ref,
    ca_wq_ref, ca_bq_ref, ca_wkv_ref, ca_bkv_ref, ca_wo_ref, ca_bo_ref,
    g1_ref, b1_ref, g2_ref, b2_ref, g3_ref, b3_ref,
    w1_ref, fb1_ref, w2_ref, fb2_ref,
    out_ref,
    *, nhead,
):
    S, D = tgt_ref.shape
    dh = D // nhead

    def mm(x, w_ref, b_ref):
        # token-major: (N, Fin) @ (Fin, Fout) + (1, Fout); bf16 MXU, f32 acc.
        return (jnp.dot(x.astype(w_ref.dtype), w_ref[...],
                        preferred_element_type=jnp.float32) + b_ref[...])

    def mmT(w_ref, actT, b_ref):
        # feature-major: (Fout, Fin) @ (Fin, N) + (Fout, 1); bf16 MXU, f32 acc.
        return (jnp.dot(w_ref[...], actT.astype(w_ref.dtype),
                        preferred_element_type=jnp.float32) + b_ref[...])

    def layernorm(y, g_ref, b_ref):
        mu = jnp.mean(y, axis=-1, keepdims=True)
        var = jnp.mean((y - mu) ** 2, axis=-1, keepdims=True)
        return (y - mu) * lax.rsqrt(var + 1e-5) * g_ref[...] + b_ref[...]

    def attend(qT, kT, vT):
        # qT: (D, S), kT/vT: (D, n_kv) f32 feature-major (head-blocked rows).
        # Heads are split with lane-preserving reshapes; both matmuls are a
        # single batched (leading-batch, canonical) MXU contraction over heads.
        n_q, n_kv = qT.shape[1], kT.shape[1]
        qh = jnp.swapaxes(qT.reshape(nhead, dh, n_q), 1, 2)      # (H, n_q, dh)
        kTh = kT.reshape(nhead, dh, n_kv)                        # (H, dh, n_kv)
        vTh = vT.reshape(nhead, dh, n_kv)                        # (H, dh, n_kv)
        # scores: 1/sqrt(dh) already folded into the Q projection weights.
        s = jnp.einsum('hqe,hek->hqk', qh, kTh,
                       preferred_element_type=jnp.float32)       # (H, n_q, n_kv)
        s = s - jnp.max(s, axis=-1, keepdims=True)
        p = jnp.exp(s)
        p = p * pl.reciprocal(jnp.sum(p, axis=-1, keepdims=True), approx=True)
        pT = jnp.swapaxes(p, 1, 2)                               # (H, n_kv, n_q)
        ctxT = jnp.einsum('hek,hkq->heq', vTh, pT,
                          preferred_element_type=jnp.float32)    # (H, dh, n_q)
        return ctxT.reshape(D, n_q)                              # (D, n_q)

    x = tgt_ref[...]                                             # (S, D) f32
    mem = mem_ref[...]                                           # (M, D) f32

    # ---- self-attention (fused QKV projection) + add & norm1 ----
    qkvT = mmT(sa_w_ref, x.T, sa_b_ref)                          # (3D, S)
    ctxT = attend(qkvT[:D], qkvT[D:2 * D], qkvT[2 * D:])
    x = layernorm(x + mmT(sa_wo_ref, ctxT, sa_bo_ref).T, g1_ref, b1_ref)

    # ---- cross-attention (pre-split q / kv projections) + add & norm2 ----
    qT = mmT(ca_wq_ref, x.T, ca_bq_ref)                          # (D, S)
    kvT = mmT(ca_wkv_ref, mem.T, ca_bkv_ref)                     # (2D, M)
    ctxT = attend(qT, kvT[:D], kvT[D:])
    x = layernorm(x + mmT(ca_wo_ref, ctxT, ca_bo_ref).T, g2_ref, b2_ref)

    # ---- FFN: linear1 -> exact GELU -> linear2 + add & norm3 ----
    h = mm(x, w1_ref, fb1_ref)                                   # (S, DFF) f32
    h = 0.5 * h * (1.0 + lax.erf(h * 0.7071067811865476))
    h = h.astype(jnp.bfloat16)            # keep only the bf16 slab live
    y = mm(h, w2_ref, fb2_ref)                                   # (S, D) f32
    x = layernorm(x + y, g3_ref, b3_ref)

    out_ref[...] = x                                             # contiguous (S, D)


# ----------------------------------------------------------------------------
# Wrapper
# ----------------------------------------------------------------------------
def transformer_decoder_layer(tgt, memory, params, nhead):
    """tgt: (S,B,D) f32, memory: (M,B,D) f32 -> (S,B,D) f32 (PyTorch layout)."""
    S, B, D = tgt.shape
    M = memory.shape[0]
    dh = D // nhead
    scale = 1.0 / (dh ** 0.5)
    wdt = jnp.bfloat16   # matmul-weight dtype (f32 accumulation in-kernel)

    # One-time weight repacking (XLA, outside the kernel).  Attention weights
    # keep the PyTorch (out_features, in_features) orientation because the
    # kernel runs attention projections feature-major (W @ x^T); 1/sqrt(dh) is
    # folded into the Q rows; biases become (F, 1) columns.  Cross-attn q / kv
    # weights are pre-split so the kernel never slices weight columns.
    def col(b):
        return b.astype(jnp.float32)[:, None]

    sa_w = params['sa_in_w'].at[:D].multiply(scale).astype(wdt)       # (3D, D)
    sa_b = col(params['sa_in_b'].at[:D].multiply(scale))              # (3D, 1)
    sa_wo = params['sa_out_w'].astype(wdt)                            # (D, D)
    sa_bo = col(params['sa_out_b'])
    ca_wq = (params['ca_in_w'][:D] * scale).astype(wdt)               # (D, D)
    ca_bq = col(params['ca_in_b'][:D] * scale)
    ca_wkv = params['ca_in_w'][D:].astype(wdt)                        # (2D, D)
    ca_bkv = col(params['ca_in_b'][D:])
    ca_wo = params['ca_out_w'].astype(wdt)
    ca_bo = col(params['ca_out_b'])

    norms = (params['ln1_g'][None, :], params['ln1_b'][None, :],
             params['ln2_g'][None, :], params['ln2_b'][None, :],
             params['ln3_g'][None, :], params['ln3_b'][None, :])

    w1 = params['lin1_w'].T.astype(wdt)      # (D, DFF)
    fb1 = params['lin1_b'][None, :]          # (1, DFF)
    w2 = params['lin2_w'].T.astype(wdt)      # (DFF, D)
    fb2 = params['lin2_b'][None, :]          # (1, D)

    weights = (sa_w, sa_b, sa_wo, sa_bo,
               ca_wq, ca_bq, ca_wkv, ca_bkv, ca_wo, ca_bo,
               *norms, w1, fb1, w2, fb2)

    # Batch-major activations: transpose once in the wrapper so every kernel
    # load/store is a contiguous lane-dense (S, D) / (M, D) tile.
    tgt_b = jnp.transpose(tgt, (1, 0, 2))       # (B, S, D)
    mem_b = jnp.transpose(memory, (1, 0, 2))    # (B, M, D)

    def resident(a):
        # full-array block + constant index map -> fetched once, VMEM-resident.
        zeros = (0,) * a.ndim
        return pl.BlockSpec(a.shape, lambda b, _z=zeros: _z)

    out_b = pl.pallas_call(
        functools.partial(decoder_layer_kernel, nhead=nhead),
        out_shape=jax.ShapeDtypeStruct((B, S, D), jnp.float32),
        grid=(B,),
        in_specs=[pl.BlockSpec((None, S, D), lambda b: (b, 0, 0)),
                  pl.BlockSpec((None, M, D), lambda b: (b, 0, 0)),
                  *[resident(a) for a in weights]],
        out_specs=pl.BlockSpec((None, S, D), lambda b: (b, 0, 0)),
        compiler_params=pltpu.CompilerParams(
            dimension_semantics=("parallel",),          # v7x megacore sharding
            vmem_limit_bytes=32 * 1024 * 1024),
    )(tgt_b, mem_b, *weights)

    return jnp.transpose(out_b, (1, 0, 2))      # back to PyTorch (S, B, D)


# ----------------------------------------------------------------------------
# Plain-JAX reference (f32, canonical PyTorch-layout weights)
# ----------------------------------------------------------------------------
def ref_forward(tgt, memory, p, nhead):
    S, B, D = tgt.shape
    dh = D // nhead
    scale = 1.0 / (dh ** 0.5)

    def mha(q_in, kv_in, w_in, b_in, w_out, b_out):
        q = jnp.einsum('sbd,fd->sbf', q_in, w_in[:D]) + b_in[:D]
        k = jnp.einsum('sbd,fd->sbf', kv_in, w_in[D:2 * D]) + b_in[D:2 * D]
        v = jnp.einsum('sbd,fd->sbf', kv_in, w_in[2 * D:]) + b_in[2 * D:]
        q = q.reshape(q.shape[0], B, nhead, dh) * scale
        k = k.reshape(k.shape[0], B, nhead, dh)
        v = v.reshape(v.shape[0], B, nhead, dh)
        s = jnp.einsum('qbhe,kbhe->bhqk', q, k)
        a = jax.nn.softmax(s, axis=-1)
        ctx = jnp.einsum('bhqk,kbhe->qbhe', a, v).reshape(q.shape[0], B, D)
        return jnp.einsum('sbd,fd->sbf', ctx, w_out) + b_out

    def ln(x, g, b):
        mu = jnp.mean(x, axis=-1, keepdims=True)
        var = jnp.mean((x - mu) ** 2, axis=-1, keepdims=True)
        return (x - mu) * lax.rsqrt(var + 1e-5) * g + b

    x = tgt
    x = ln(x + mha(x, x, p['sa_in_w'], p['sa_in_b'],
                   p['sa_out_w'], p['sa_out_b']), p['ln1_g'], p['ln1_b'])
    x = ln(x + mha(x, memory, p['ca_in_w'], p['ca_in_b'],
                   p['ca_out_w'], p['ca_out_b']), p['ln2_g'], p['ln2_b'])
    h = jnp.einsum('sbd,fd->sbf', x, p['lin1_w']) + p['lin1_b']
    h = 0.5 * h * (1.0 + lax.erf(h / jnp.sqrt(jnp.float32(2.0))))
    ff = jnp.einsum('sbh,fh->sbf', h, p['lin2_w']) + p['lin2_b']
    return ln(x + ff, p['ln3_g'], p['ln3_b'])


# ----------------------------------------------------------------------------
# Deterministic parameters (canonical nn.MultiheadAttention / nn.Linear /
# nn.LayerNorm shapes of the PyTorch module)
# ----------------------------------------------------------------------------
def make_params(key, d_model, nhead, dim_feedforward):
    ks = jax.random.split(key, 18)

    def g(k, shape, s=0.05):
        return s * jax.random.normal(k, shape, jnp.float32)

    return dict(
        sa_in_w=g(ks[0], (3 * d_model, d_model)), sa_in_b=g(ks[1], (3 * d_model,)),
        sa_out_w=g(ks[2], (d_model, d_model)),    sa_out_b=g(ks[3], (d_model,)),
        ca_in_w=g(ks[4], (3 * d_model, d_model)), ca_in_b=g(ks[5], (3 * d_model,)),
        ca_out_w=g(ks[6], (d_model, d_model)),    ca_out_b=g(ks[7], (d_model,)),
        ln1_g=1.0 + g(ks[8], (d_model,), 0.1),    ln1_b=g(ks[9], (d_model,)),
        ln2_g=1.0 + g(ks[10], (d_model,), 0.1),   ln2_b=g(ks[11], (d_model,)),
        ln3_g=1.0 + g(ks[12], (d_model,), 0.1),   ln3_b=g(ks[13], (d_model,)),
        lin1_w=g(ks[14], (dim_feedforward, d_model)),
        lin1_b=g(ks[15], (dim_feedforward,)),
        lin2_w=g(ks[16], (d_model, dim_feedforward)),
        lin2_b=g(ks[17], (d_model,)),
    )


if __name__ == "__main__":
    # Small shapes: d_model=32, nhead=4, dim_feedforward=64, tgt_len=8,
    # mem_len=16, batch=2.  Masks are None (default call path).
    D, H, DFF = 32, 4, 64
    S, M, B = 8, 16, 2

    key = jax.random.PRNGKey(0)
    k_tgt, k_mem, k_par = jax.random.split(key, 3)
    tgt = jax.random.normal(k_tgt, (S, B, D), jnp.float32)
    mem = jax.random.normal(k_mem, (M, B, D), jnp.float32)
    params = make_params(k_par, D, H, DFF)

    out = jax.block_until_ready(transformer_decoder_layer(tgt, mem, params, H))
    ref = jax.block_until_ready(ref_forward(tgt, mem, params, H))

    assert out.shape == (S, B, D), out.shape
    max_err = float(jnp.max(jnp.abs(out - ref)))
    # bf16 matmul weights / bf16 FFN intermediate (f32 accumulation) and
    # approx-reciprocal softmax vs f32 reference -> loosened tolerance.
    assert jnp.allclose(out, ref, atol=3e-2, rtol=3e-2), max_err

    print("KERNEL_OK")
</pallas_src>

<mosaic_0001>
module attributes {stable_mosaic.version = 11 : i64} {
  func.func @decoder_layer_kernel(%arg0: i32, %arg1: memref<1x8x32xf32, #tpu.memory_space<vmem>>, %arg2: memref<1x16x32xf32, #tpu.memory_space<vmem>>, %arg3: memref<96x32xbf16, #tpu.memory_space<vmem>>, %arg4: memref<96x1xf32, #tpu.memory_space<vmem>>, %arg5: memref<32x32xbf16, #tpu.memory_space<vmem>>, %arg6: memref<32x1xf32, #tpu.memory_space<vmem>>, %arg7: memref<32x32xbf16, #tpu.memory_space<vmem>>, %arg8: memref<32x1xf32, #tpu.memory_space<vmem>>, %arg9: memref<64x32xbf16, #tpu.memory_space<vmem>>, %arg10: memref<64x1xf32, #tpu.memory_space<vmem>>, %arg11: memref<32x32xbf16, #tpu.memory_space<vmem>>, %arg12: memref<32x1xf32, #tpu.memory_space<vmem>>, %arg13: memref<1x32xf32, #tpu.memory_space<vmem>>, %arg14: memref<1x32xf32, #tpu.memory_space<vmem>>, %arg15: memref<1x32xf32, #tpu.memory_space<vmem>>, %arg16: memref<1x32xf32, #tpu.memory_space<vmem>>, %arg17: memref<1x32xf32, #tpu.memory_space<vmem>>, %arg18: memref<1x32xf32, #tpu.memory_space<vmem>>, %arg19: memref<32x64xbf16, #tpu.memory_space<vmem>>, %arg20: memref<1x64xf32, #tpu.memory_space<vmem>>, %arg21: memref<64x32xbf16, #tpu.memory_space<vmem>>, %arg22: memref<1x32xf32, #tpu.memory_space<vmem>>, %arg23: memref<1x8x32xf32, #tpu.memory_space<vmem>>) attributes {dimension_semantics = [#tpu.dimension_semantics<parallel>], iteration_bounds = array<i64: 2>, scalar_prefetch = 0 : i64, scratch_operands = 0 : i64, tpu.core_type = #tpu.core_type<tc>, window_params = [{transform_indices = @transform_0, window_bounds = array<i64: 1, 8, 32>}, {transform_indices = @transform_1, window_bounds = array<i64: 1, 16, 32>}, {pipeline_mode = #tpu.pipeline_mode<synchronous>, transform_indices = @transform_2, window_bounds = array<i64: 96, 32>}, {pipeline_mode = #tpu.pipeline_mode<synchronous>, transform_indices = @transform_3, window_bounds = array<i64: 96, 1>}, {pipeline_mode = #tpu.pipeline_mode<synchronous>, transform_indices = @transform_4, window_bounds = array<i64: 32, 32>}, {pipeline_mode = #tpu.pipeline_mode<synchronous>, transform_indices = @transform_5, window_bounds = array<i64: 32, 1>}, {pipeline_mode = #tpu.pipeline_mode<synchronous>, transform_indices = @transform_6, window_bounds = array<i64: 32, 32>}, {pipeline_mode = #tpu.pipeline_mode<synchronous>, transform_indices = @transform_7, window_bounds = array<i64: 32, 1>}, {pipeline_mode = #tpu.pipeline_mode<synchronous>, transform_indices = @transform_8, window_bounds = array<i64: 64, 32>}, {pipeline_mode = #tpu.pipeline_mode<synchronous>, transform_indices = @transform_9, window_bounds = array<i64: 64, 1>}, {pipeline_mode = #tpu.pipeline_mode<synchronous>, transform_indices = @transform_10, window_bounds = array<i64: 32, 32>}, {pipeline_mode = #tpu.pipeline_mode<synchronous>, transform_indices = @transform_11, window_bounds = array<i64: 32, 1>}, {pipeline_mode = #tpu.pipeline_mode<synchronous>, transform_indices = @transform_12, window_bounds = array<i64: 1, 32>}, {pipeline_mode = #tpu.pipeline_mode<synchronous>, transform_indices = @transform_13, window_bounds = array<i64: 1, 32>}, {pipeline_mode = #tpu.pipeline_mode<synchronous>, transform_indices = @transform_14, window_bounds = array<i64: 1, 32>}, {pipeline_mode = #tpu.pipeline_mode<synchronous>, transform_indices = @transform_15, window_bounds = array<i64: 1, 32>}, {pipeline_mode = #tpu.pipeline_mode<synchronous>, transform_indices = @transform_16, window_bounds = array<i64: 1, 32>}, {pipeline_mode = #tpu.pipeline_mode<synchronous>, transform_indices = @transform_17, window_bounds = array<i64: 1, 32>}, {pipeline_mode = #tpu.pipeline_mode<synchronous>, transform_indices = @transform_18, window_bounds = array<i64: 32, 64>}, {pipeline_mode = #tpu.pipeline_mode<synchronous>, transform_indices = @transform_19, window_bounds = array<i64: 1, 64>}, {pipeline_mode = #tpu.pipeline_mode<synchronous>, transform_indices = @transform_20, window_bounds = array<i64: 64, 32>}, {pipeline_mode = #tpu.pipeline_mode<synchronous>, transform_indices = @transform_21, window_bounds = array<i64: 1, 32>}, {transform_indices = @transform_22, window_bounds = array<i64: 1, 8, 32>}]} {
    %c0 = arith.constant 0 : index
    %c0_0 = arith.constant 0 : index
    %c0_1 = arith.constant 0 : index
    %0 = vector.load %arg1[%c0, %c0_0, %c0_1] : memref<1x8x32xf32, #tpu.memory_space<vmem>>, vector<1x8x32xf32>
    %1 = vector.shape_cast %0 : vector<1x8x32xf32> to vector<8x32xf32>
    %c0_2 = arith.constant 0 : index
    %c0_3 = arith.constant 0 : index
    %c0_4 = arith.constant 0 : index
    %2 = vector.load %arg2[%c0_2, %c0_3, %c0_4] : memref<1x16x32xf32, #tpu.memory_space<vmem>>, vector<1x16x32xf32>
    %3 = vector.shape_cast %2 : vector<1x16x32xf32> to vector<16x32xf32>
    %4 = tpu.transpose %1, [1, 0] : vector<8x32xf32> -> vector<32x8xf32>
    %c0_5 = arith.constant 0 : index
    %c0_6 = arith.constant 0 : index
    %5 = vector.load %arg3[%c0_5, %c0_6] : memref<96x32xbf16, #tpu.memory_space<vmem>>, vector<96x32xbf16>
    %6 = arith.truncf %4 : vector<32x8xf32> to vector<32x8xbf16>
    %cst = arith.constant dense<0.000000e+00> : vector<96x8xf32>
    %7 = tpu.matmul %5, %6, %cst {dimension_numbers = #tpu.dot_dimension_numbers<[1], [0], [0], [1], [0, 0, 1, 1], [], []>} : vector<96x32xbf16>, vector<32x8xbf16>, vector<96x8xf32> -> vector<96x8xf32>
    %c0_7 = arith.constant 0 : index
    %c0_8 = arith.constant 0 : index
    %8 = vector.load %arg4[%c0_7, %c0_8] : memref<96x1xf32, #tpu.memory_space<vmem>>, vector<96x1xf32>
    %9 = vector.broadcast %8 : vector<96x1xf32> to vector<96x8xf32>
    %10 = arith.addf %7, %9 : vector<96x8xf32>
    %11 = vector.extract_strided_slice %10 {offsets = [0, 0], sizes = [32, 8], strides = [1, 1]} : vector<96x8xf32> to vector<32x8xf32>
    %12 = vector.extract_strided_slice %10 {offsets = [32, 0], sizes = [32, 8], strides = [1, 1]} : vector<96x8xf32> to vector<32x8xf32>
    %13 = vector.extract_strided_slice %10 {offsets = [64, 0], sizes = [32, 8], strides = [1, 1]} : vector<96x8xf32> to vector<32x8xf32>
    %14 = vector.shape_cast %11 : vector<32x8xf32> to vector<4x8x8xf32>
    %15 = tpu.transpose %14, [0, 2, 1] : vector<4x8x8xf32> -> vector<4x8x8xf32>
    %16 = vector.shape_cast %12 : vector<32x8xf32> to vector<4x8x8xf32>
    %17 = vector.shape_cast %13 : vector<32x8xf32> to vector<4x8x8xf32>
    "tpu.trace_start"() <{level = 10 : i32, message = "hqe,hek->hqk"}> : () -> ()
    %cst_9 = arith.constant dense<0.000000e+00> : vector<4x8x8xf32>
    %18 = tpu.matmul %15, %16, %cst_9 {dimension_numbers = #tpu.dot_dimension_numbers<[2], [1], [1], [2], [0, 0, 0, 1, 1, 2], [0], [0]>} : vector<4x8x8xf32>, vector<4x8x8xf32>, vector<4x8x8xf32> -> vector<4x8x8xf32>
    "tpu.trace_stop"() : () -> ()
    %cst_10 = arith.constant dense<0xFF800000> : vector<4x8xf32>
    %19 = vector.multi_reduction <maximumf>, %18, %cst_10 [2] : vector<4x8x8xf32> to vector<4x8xf32>
    %20 = vector.shape_cast %19 : vector<4x8xf32> to vector<4x8x1xf32>
    %21 = vector.broadcast %20 : vector<4x8x1xf32> to vector<4x8x8xf32>
    %22 = arith.subf %18, %21 : vector<4x8x8xf32>
    %23 = math.exp %22 : vector<4x8x8xf32>
    %cst_11 = arith.constant dense<0.000000e+00> : vector<4x8xf32>
    %24 = vector.multi_reduction <add>, %23, %cst_11 [2] : vector<4x8x8xf32> to vector<4x8xf32>
    %25 = vector.shape_cast %24 : vector<4x8xf32> to vector<4x8x1xf32>
    %26 = tpu.reciprocal %25 {approx = true} : vector<4x8x1xf32> -> vector<4x8x1xf32>
    %27 = vector.broadcast %26 : vector<4x8x1xf32> to vector<4x8x8xf32>
    %28 = arith.mulf %23, %27 : vector<4x8x8xf32>
    %29 = tpu.transpose %28, [0, 2, 1] : vector<4x8x8xf32> -> vector<4x8x8xf32>
    "tpu.trace_start"() <{level = 10 : i32, message = "hek,hkq->heq"}> : () -> ()
    %cst_12 = arith.constant dense<0.000000e+00> : vector<4x8x8xf32>
    %30 = tpu.matmul %17, %29, %cst_12 {dimension_numbers = #tpu.dot_dimension_numbers<[2], [1], [1], [2], [0, 0, 0, 1, 1, 2], [0], [0]>} : vector<4x8x8xf32>, vector<4x8x8xf32>, vector<4x8x8xf32> -> vector<4x8x8xf32>
    "tpu.trace_stop"() : () -> ()
    %31 = vector.shape_cast %30 : vector<4x8x8xf32> to vector<32x8xf32>
    %c0_13 = arith.constant 0 : index
    %c0_14 = arith.constant 0 : index
    %32 = vector.load %arg5[%c0_13, %c0_14] : memref<32x32xbf16, #tpu.memory_space<vmem>>, vector<32x32xbf16>
    %33 = arith.truncf %31 : vector<32x8xf32> to vector<32x8xbf16>
    %cst_15 = arith.constant dense<0.000000e+00> : vector<32x8xf32>
    %34 = tpu.matmul %32, %33, %cst_15 {dimension_numbers = #tpu.dot_dimension_numbers<[1], [0], [0], [1], [0, 0, 1, 1], [], []>} : vector<32x32xbf16>, vector<32x8xbf16>, vector<32x8xf32> -> vector<32x8xf32>
    %c0_16 = arith.constant 0 : index
    %c0_17 = arith.constant 0 : index
    %35 = vector.load %arg6[%c0_16, %c0_17] : memref<32x1xf32, #tpu.memory_space<vmem>>, vector<32x1xf32>
    %36 = vector.broadcast %35 : vector<32x1xf32> to vector<32x8xf32>
    %37 = arith.addf %34, %36 : vector<32x8xf32>
    %38 = tpu.transpose %37, [1, 0] : vector<32x8xf32> -> vector<8x32xf32>
    %39 = arith.addf %1, %38 : vector<8x32xf32>
    %cst_18 = arith.constant dense<0.000000e+00> : vector<8xf32>
    %40 = vector.multi_reduction <add>, %39, %cst_18 [1] : vector<8x32xf32> to vector<8xf32>
    %41 = vector.shape_cast %40 : vector<8xf32> to vector<8x1xf32>
    %cst_19 = arith.constant 3.200000e+01 : f32
    %42 = vector.broadcast %cst_19 : f32 to vector<8x1xf32>
    %43 = arith.divf %41, %42 : vector<8x1xf32>
    %44 = vector.broadcast %43 : vector<8x1xf32> to vector<8x32xf32>
    %45 = arith.subf %39, %44 : vector<8x32xf32>
    %46 = arith.mulf %45, %45 : vector<8x32xf32>
    %cst_20 = arith.constant dense<0.000000e+00> : vector<8xf32>
    %47 = vector.multi_reduction <add>, %46, %cst_20 [1] : vector<8x32xf32> to vector<8xf32>
    %48 = vector.shape_cast %47 : vector<8xf32> to vector<8x1xf32>
    %cst_21 = arith.constant 3.200000e+01 : f32
    %49 = vector.broadcast %cst_21 : f32 to vector<8x1xf32>
    %50 = arith.divf %48, %49 : vector<8x1xf32>
    %51 = vector.broadcast %43 : vector<8x1xf32> to vector<8x32xf32>
    %52 = arith.subf %39, %51 : vector<8x32xf32>
    %cst_22 = arith.constant 9.99999974E-6 : f32
    %53 = vector.broadcast %cst_22 : f32 to vector<8x1xf32>
    %54 = arith.addf %50, %53 : vector<8x1xf32>
    %55 = math.rsqrt %54 : vector<8x1xf32>
    %56 = vector.broadcast %55 : vector<8x1xf32> to vector<8x32xf32>
    %57 = arith.mulf %52, %56 : vector<8x32xf32>
    %c0_23 = arith.constant 0 : index
    %c0_24 = arith.constant 0 : index
    %58 = vector.load %arg13[%c0_23, %c0_24] : memref<1x32xf32, #tpu.memory_space<vmem>>, vector<1x32xf32>
    %59 = vector.broadcast %58 : vector<1x32xf32> to vector<8x32xf32>
    %60 = arith.mulf %57, %59 : vector<8x32xf32>
    %c0_25 = arith.constant 0 : index
    %c0_26 = arith.constant 0 : index
    %61 = vector.load %arg14[%c0_25, %c0_26] : memref<1x32xf32, #tpu.memory_space<vmem>>, vector<1x32xf32>
    %62 = vector.broadcast %61 : vector<1x32xf32> to vector<8x32xf32>
    %63 = arith.addf %60, %62 : vector<8x32xf32>
    %64 = tpu.transpose %63, [1, 0] : vector<8x32xf32> -> vector<32x8xf32>
    %c0_27 = arith.constant 0 : index
    %c0_28 = arith.constant 0 : index
    %65 = vector.load %arg7[%c0_27, %c0_28] : memref<32x32xbf16, #tpu.memory_space<vmem>>, vector<32x32xbf16>
    %66 = arith.truncf %64 : vector<32x8xf32> to vector<32x8xbf16>
    %cst_29 = arith.constant dense<0.000000e+00> : vector<32x8xf32>
    %67 = tpu.matmul %65, %66, %cst_29 {dimension_numbers = #tpu.dot_dimension_numbers<[1], [0], [0], [1], [0, 0, 1, 1], [], []>} : vector<32x32xbf16>, vector<32x8xbf16>, vector<32x8xf32> -> vector<32x8xf32>
    %c0_30 = arith.constant 0 : index
    %c0_31 = arith.constant 0 : index
    %68 = vector.load %arg8[%c0_30, %c0_31] : memref<32x1xf32, #tpu.memory_space<vmem>>, vector<32x1xf32>
    %69 = vector.broadcast %68 : vector<32x1xf32> to vector<32x8xf32>
    %70 = arith.addf %67, %69 : vector<32x8xf32>
    %71 = tpu.transpose %3, [1, 0] : vector<16x32xf32> -> vector<32x16xf32>
    %c0_32 = arith.constant 0 : index
    %c0_33 = arith.constant 0 : index
    %72 = vector.load %arg9[%c0_32, %c0_33] : memref<64x32xbf16, #tpu.memory_space<vmem>>, vector<64x32xbf16>
    %73 = arith.truncf %71 : vector<32x16xf32> to vector<32x16xbf16>
    %cst_34 = arith.constant dense<0.000000e+00> : vector<64x16xf32>
    %74 = tpu.matmul %72, %73, %cst_34 {dimension_numbers = #tpu.dot_dimension_numbers<[1], [0], [0], [1], [0, 0, 1, 1], [], []>} : vector<64x32xbf16>, vector<32x16xbf16>, vector<64x16xf32> -> vector<64x16xf32>
    %c0_35 = arith.constant 0 : index
    %c0_36 = arith.constant 0 : index
    %75 = vector.load %arg10[%c0_35, %c0_36] : memref<64x1xf32, #tpu.memory_space<vmem>>, vector<64x1xf32>
    %76 = vector.broadcast %75 : vector<64x1xf32> to vector<64x16xf32>
    %77 = arith.addf %74, %76 : vector<64x16xf32>
    %78 = vector.extract_strided_slice %77 {offsets = [0, 0], sizes = [32, 16], strides = [1, 1]} : vector<64x16xf32> to vector<32x16xf32>
    %79 = vector.extract_strided_slice %77 {offsets = [32, 0], sizes = [32, 16], strides = [1, 1]} : vector<64x16xf32> to vector<32x16xf32>
    %80 = vector.shape_cast %70 : vector<32x8xf32> to vector<4x8x8xf32>
    %81 = tpu.transpose %80, [0, 2, 1] : vector<4x8x8xf32> -> vector<4x8x8xf32>
    %82 = vector.shape_cast %78 : vector<32x16xf32> to vector<4x8x16xf32>
    %83 = vector.shape_cast %79 : vector<32x16xf32> to vector<4x8x16xf32>
    "tpu.trace_start"() <{level = 10 : i32, message = "hqe,hek->hqk"}> : () -> ()
    %cst_37 = arith.constant dense<0.000000e+00> : vector<4x8x16xf32>
    %84 = tpu.matmul %81, %82, %cst_37 {dimension_numbers = #tpu.dot_dimension_numbers<[2], [1], [1], [2], [0, 0, 0, 1, 1, 2], [0], [0]>} : vector<4x8x8xf32>, vector<4x8x16xf32>, vector<4x8x16xf32> -> vector<4x8x16xf32>
    "tpu.trace_stop"() : () -> ()
    %cst_38 = arith.constant dense<0xFF800000> : vector<4x8xf32>
    %85 = vector.multi_reduction <maximumf>, %84, %cst_38 [2] : vector<4x8x16xf32> to vector<4x8xf32>
    %86 = vector.shape_cast %85 : vector<4x8xf32> to vector<4x8x1xf32>
    %87 = vector.broadcast %86 : vector<4x8x1xf32> to vector<4x8x16xf32>
    %88 = arith.subf %84, %87 : vector<4x8x16xf32>
    %89 = math.exp %88 : vector<4x8x16xf32>
    %cst_39 = arith.constant dense<0.000000e+00> : vector<4x8xf32>
    %90 = vector.multi_reduction <add>, %89, %cst_39 [2] : vector<4x8x16xf32> to vector<4x8xf32>
    %91 = vector.shape_cast %90 : vector<4x8xf32> to vector<4x8x1xf32>
    %92 = tpu.reciprocal %91 {approx = true} : vector<4x8x1xf32> -> vector<4x8x1xf32>
    %93 = vector.broadcast %92 : vector<4x8x1xf32> to vector<4x8x16xf32>
    %94 = arith.mulf %89, %93 : vector<4x8x16xf32>
    %95 = tpu.transpose %94, [0, 2, 1] : vector<4x8x16xf32> -> vector<4x16x8xf32>
    "tpu.trace_start"() <{level = 10 : i32, message = "hek,hkq->heq"}> : () -> ()
    %cst_40 = arith.constant dense<0.000000e+00> : vector<4x8x8xf32>
    %96 = tpu.matmul %83, %95, %cst_40 {dimension_numbers = #tpu.dot_dimension_numbers<[2], [1], [1], [2], [0, 0, 0, 1, 1, 2], [0], [0]>} : vector<4x8x16xf32>, vector<4x16x8xf32>, vector<4x8x8xf32> -> vector<4x8x8xf32>
    "tpu.trace_stop"() : () -> ()
    %97 = vector.shape_cast %96 : vector<4x8x8xf32> to vector<32x8xf32>
    %c0_41 = arith.constant 0 : index
    %c0_42 = arith.constant 0 : index
    %98 = vector.load %arg11[%c0_41, %c0_42] : memref<32x32xbf16, #tpu.memory_space<vmem>>, vector<32x32xbf16>
    %99 = arith.truncf %97 : vector<32x8xf32> to vector<32x8xbf16>
    %cst_43 = arith.constant dense<0.000000e+00> : vector<32x8xf32>
    %100 = tpu.matmul %98, %99, %cst_43 {dimension_numbers = #tpu.dot_dimension_numbers<[1], [0], [0], [1], [0, 0, 1, 1], [], []>} : vector<32x32xbf16>, vector<32x8xbf16>, vector<32x8xf32> -> vector<32x8xf32>
    %c0_44 = arith.constant 0 : index
    %c0_45 = arith.constant 0 : index
    %101 = vector.load %arg12[%c0_44, %c0_45] : memref<32x1xf32, #tpu.memory_space<vmem>>, vector<32x1xf32>
    %102 = vector.broadcast %101 : vector<32x1xf32> to vector<32x8xf32>
    %103 = arith.addf %100, %102 : vector<32x8xf32>
    %104 = tpu.transpose %103, [1, 0] : vector<32x8xf32> -> vector<8x32xf32>
    %105 = arith.addf %63, %104 : vector<8x32xf32>
    %cst_46 = arith.constant dense<0.000000e+00> : vector<8xf32>
    %106 = vector.multi_reduction <add>, %105, %cst_46 [1] : vector<8x32xf32> to vector<8xf32>
    %107 = vector.shape_cast %106 : vector<8xf32> to vector<8x1xf32>
    %cst_47 = arith.constant 3.200000e+01 : f32
    %108 = vector.broadcast %cst_47 : f32 to vector<8x1xf32>
    %109 = arith.divf %107, %108 : vector<8x1xf32>
    %110 = vector.broadcast %109 : vector<8x1xf32> to vector<8x32xf32>
    %111 = arith.subf %105, %110 : vector<8x32xf32>
    %112 = arith.mulf %111, %111 : vector<8x32xf32>
    %cst_48 = arith.constant dense<0.000000e+00> : vector<8xf32>
    %113 = vector.multi_reduction <add>, %112, %cst_48 [1] : vector<8x32xf32> to vector<8xf32>
    %114 = vector.shape_cast %113 : vector<8xf32> to vector<8x1xf32>
    %cst_49 = arith.constant 3.200000e+01 : f32
    %115 = vector.broadcast %cst_49 : f32 to vector<8x1xf32>
    %116 = arith.divf %114, %115 : vector<8x1xf32>
    %117 = vector.broadcast %109 : vector<8x1xf32> to vector<8x32xf32>
    %118 = arith.subf %105, %117 : vector<8x32xf32>
    %cst_50 = arith.constant 9.99999974E-6 : f32
    %119 = vector.broadcast %cst_50 : f32 to vector<8x1xf32>
    %120 = arith.addf %116, %119 : vector<8x1xf32>
    %121 = math.rsqrt %120 : vector<8x1xf32>
    %122 = vector.broadcast %121 : vector<8x1xf32> to vector<8x32xf32>
    %123 = arith.mulf %118, %122 : vector<8x32xf32>
    %c0_51 = arith.constant 0 : index
    %c0_52 = arith.constant 0 : index
    %124 = vector.load %arg15[%c0_51, %c0_52] : memref<1x32xf32, #tpu.memory_space<vmem>>, vector<1x32xf32>
    %125 = vector.broadcast %124 : vector<1x32xf32> to vector<8x32xf32>
    %126 = arith.mulf %123, %125 : vector<8x32xf32>
    %c0_53 = arith.constant 0 : index
    %c0_54 = arith.constant 0 : index
    %127 = vector.load %arg16[%c0_53, %c0_54] : memref<1x32xf32, #tpu.memory_space<vmem>>, vector<1x32xf32>
    %128 = vector.broadcast %127 : vector<1x32xf32> to vector<8x32xf32>
    %129 = arith.addf %126, %128 : vector<8x32xf32>
    %130 = arith.truncf %129 : vector<8x32xf32> to vector<8x32xbf16>
    %c0_55 = arith.constant 0 : index
    %c0_56 = arith.constant 0 : index
    %131 = vector.load %arg19[%c0_55, %c0_56] : memref<32x64xbf16, #tpu.memory_space<vmem>>, vector<32x64xbf16>
    %cst_57 = arith.constant dense<0.000000e+00> : vector<8x64xf32>
    %132 = tpu.matmul %130, %131, %cst_57 {dimension_numbers = #tpu.dot_dimension_numbers<[1], [0], [0], [1], [0, 0, 1, 1], [], []>} : vector<8x32xbf16>, vector<32x64xbf16>, vector<8x64xf32> -> vector<8x64xf32>
    %c0_58 = arith.constant 0 : index
    %c0_59 = arith.constant 0 : index
    %133 = vector.load %arg20[%c0_58, %c0_59] : memref<1x64xf32, #tpu.memory_space<vmem>>, vector<1x64xf32>
    %134 = vector.broadcast %133 : vector<1x64xf32> to vector<8x64xf32>
    %135 = arith.addf %132, %134 : vector<8x64xf32>
    %cst_60 = arith.constant 5.000000e-01 : f32
    %136 = vector.broadcast %cst_60 : f32 to vector<8x64xf32>
    %137 = arith.mulf %136, %135 : vector<8x64xf32>
    %cst_61 = arith.constant 0.707106769 : f32
    %138 = vector.broadcast %cst_61 : f32 to vector<8x64xf32>
    %139 = arith.mulf %135, %138 : vector<8x64xf32>
    %140 = math.erf %139 : vector<8x64xf32>
    %cst_62 = arith.constant 1.000000e+00 : f32
    %141 = vector.broadcast %cst_62 : f32 to vector<8x64xf32>
    %142 = arith.addf %141, %140 : vector<8x64xf32>
    %143 = arith.mulf %137, %142 : vector<8x64xf32>
    %144 = arith.truncf %143 : vector<8x64xf32> to vector<8x64xbf16>
    %c0_63 = arith.constant 0 : index
    %c0_64 = arith.constant 0 : index
    %145 = vector.load %arg21[%c0_63, %c0_64] : memref<64x32xbf16, #tpu.memory_space<vmem>>, vector<64x32xbf16>
    %cst_65 = arith.constant dense<0.000000e+00> : vector<8x32xf32>
    %146 = tpu.matmul %144, %145, %cst_65 {dimension_numbers = #tpu.dot_dimension_numbers<[1], [0], [0], [1], [0, 0, 1, 1], [], []>} : vector<8x64xbf16>, vector<64x32xbf16>, vector<8x32xf32> -> vector<8x32xf32>
    %c0_66 = arith.constant 0 : index
    %c0_67 = arith.constant 0 : index
    %147 = vector.load %arg22[%c0_66, %c0_67] : memref<1x32xf32, #tpu.memory_space<vmem>>, vector<1x32xf32>
    %148 = vector.broadcast %147 : vector<1x32xf32> to vector<8x32xf32>
    %149 = arith.addf %146, %148 : vector<8x32xf32>
    %150 = arith.addf %129, %149 : vector<8x32xf32>
    %cst_68 = arith.constant dense<0.000000e+00> : vector<8xf32>
    %151 = vector.multi_reduction <add>, %150, %cst_68 [1] : vector<8x32xf32> to vector<8xf32>
    %152 = vector.shape_cast %151 : vector<8xf32> to vector<8x1xf32>
    %cst_69 = arith.constant 3.200000e+01 : f32
    %153 = vector.broadcast %cst_69 : f32 to vector<8x1xf32>
    %154 = arith.divf %152, %153 : vector<8x1xf32>
    %155 = vector.broadcast %154 : vector<8x1xf32> to vector<8x32xf32>
    %156 = arith.subf %150, %155 : vector<8x32xf32>
    %157 = arith.mulf %156, %156 : vector<8x32xf32>
    %cst_70 = arith.constant dense<0.000000e+00> : vector<8xf32>
    %158 = vector.multi_reduction <add>, %157, %cst_70 [1] : vector<8x32xf32> to vector<8xf32>
    %159 = vector.shape_cast %158 : vector<8xf32> to vector<8x1xf32>
    %cst_71 = arith.constant 3.200000e+01 : f32
    %160 = vector.broadcast %cst_71 : f32 to vector<8x1xf32>
    %161 = arith.divf %159, %160 : vector<8x1xf32>
    %162 = vector.broadcast %154 : vector<8x1xf32> to vector<8x32xf32>
    %163 = arith.subf %150, %162 : vector<8x32xf32>
    %cst_72 = arith.constant 9.99999974E-6 : f32
    %164 = vector.broadcast %cst_72 : f32 to vector<8x1xf32>
    %165 = arith.addf %161, %164 : vector<8x1xf32>
    %166 = math.rsqrt %165 : vector<8x1xf32>
    %167 = vector.broadcast %166 : vector<8x1xf32> to vector<8x32xf32>
    %168 = arith.mulf %163, %167 : vector<8x32xf32>
    %c0_73 = arith.constant 0 : index
    %c0_74 = arith.constant 0 : index
    %169 = vector.load %arg17[%c0_73, %c0_74] : memref<1x32xf32, #tpu.memory_space<vmem>>, vector<1x32xf32>
    %170 = vector.broadcast %169 : vector<1x32xf32> to vector<8x32xf32>
    %171 = arith.mulf %168, %170 : vector<8x32xf32>
    %c0_75 = arith.constant 0 : index
    %c0_76 = arith.constant 0 : index
    %172 = vector.load %arg18[%c0_75, %c0_76] : memref<1x32xf32, #tpu.memory_space<vmem>>, vector<1x32xf32>
    %173 = vector.broadcast %172 : vector<1x32xf32> to vector<8x32xf32>
    %174 = arith.addf %171, %173 : vector<8x32xf32>
    %c0_77 = arith.constant 0 : index
    %c0_78 = arith.constant 0 : index
    %c0_79 = arith.constant 0 : index
    %175 = vector.load %arg23[%c0_77, %c0_78, %c0_79] : memref<1x8x32xf32, #tpu.memory_space<vmem>>, vector<1x8x32xf32>
    %176 = vector.shape_cast %175 : vector<1x8x32xf32> to vector<8x32xf32>
    %177 = vector.shape_cast %174 : vector<8x32xf32> to vector<1x8x32xf32>
    tpu.vector_store %arg23[%c0_77, %c0_78, %c0_79], %177 {strides = array<i32>} : memref<1x8x32xf32, #tpu.memory_space<vmem>>, vector<1x8x32xf32>,
    return
  }
  func.func @transform_0(%arg0: i32) -> (i32, i32, i32) {
    %c0_i32 = arith.constant 0 : i32
    %c0_i32_0 = arith.constant 0 : i32
    %c0_i32_1 = arith.constant 0 : i32
    return %arg0, %c0_i32, %c0_i32_0 : i32, i32, i32
  }
  func.func @transform_1(%arg0: i32) -> (i32, i32, i32) {
    %c0_i32 = arith.constant 0 : i32
    %c0_i32_0 = arith.constant 0 : i32
    %c0_i32_1 = arith.constant 0 : i32
    return %arg0, %c0_i32, %c0_i32_0 : i32, i32, i32
  }
  func.func @transform_2(%arg0: i32) -> (i32, i32) {
    %c0_i32 = arith.constant 0 : i32
    %c0_i32_0 = arith.constant 0 : i32
    %c0_i32_1 = arith.constant 0 : i32
    return %c0_i32, %c0_i32_0 : i32, i32
  }
  func.func @transform_3(%arg0: i32) -> (i32, i32) {
    %c0_i32 = arith.constant 0 : i32
    %c0_i32_0 = arith.constant 0 : i32
    %c0_i32_1 = arith.constant 0 : i32
    return %c0_i32, %c0_i32_0 : i32, i32
  }
  func.func @transform_4(%arg0: i32) -> (i32, i32) {
    %c0_i32 = arith.constant 0 : i32
    %c0_i32_0 = arith.constant 0 : i32
    %c0_i32_1 = arith.constant 0 : i32
    return %c0_i32, %c0_i32_0 : i32, i32
  }
  func.func @transform_5(%arg0: i32) -> (i32, i32) {
    %c0_i32 = arith.constant 0 : i32
    %c0_i32_0 = arith.constant 0 : i32
    %c0_i32_1 = arith.constant 0 : i32
    return %c0_i32, %c0_i32_0 : i32, i32
  }
  func.func @transform_6(%arg0: i32) -> (i32, i32) {
    %c0_i32 = arith.constant 0 : i32
    %c0_i32_0 = arith.constant 0 : i32
    %c0_i32_1 = arith.constant 0 : i32
    return %c0_i32, %c0_i32_0 : i32, i32
  }
  func.func @transform_7(%arg0: i32) -> (i32, i32) {
    %c0_i32 = arith.constant 0 : i32
    %c0_i32_0 = arith.constant 0 : i32
    %c0_i32_1 = arith.constant 0 : i32
    return %c0_i32, %c0_i32_0 : i32, i32
  }
  func.func @transform_8(%arg0: i32) -> (i32, i32) {
    %c0_i32 = arith.constant 0 : i32
    %c0_i32_0 = arith.constant 0 : i32
    %c0_i32_1 = arith.constant 0 : i32
    return %c0_i32, %c0_i32_0 : i32, i32
  }
  func.func @transform_9(%arg0: i32) -> (i32, i32) {
    %c0_i32 = arith.constant 0 : i32
    %c0_i32_0 = arith.constant 0 : i32
    %c0_i32_1 = arith.constant 0 : i32
    return %c0_i32, %c0_i32_0 : i32, i32
  }
  func.func @transform_10(%arg0: i32) -> (i32, i32) {
    %c0_i32 = arith.constant 0 : i32
    %c0_i32_0 = arith.constant 0 : i32
    %c0_i32_1 = arith.constant 0 : i32
    return %c0_i32, %c0_i32_0 : i32, i32
  }
  func.func @transform_11(%arg0: i32) -> (i32, i32) {
    %c0_i32 = arith.constant 0 : i32
    %c0_i32_0 = arith.constant 0 : i32
    %c0_i32_1 = arith.constant 0 : i32
    return %c0_i32, %c0_i32_0 : i32, i32
  }
  func.func @transform_12(%arg0: i32) -> (i32, i32) {
    %c0_i32 = arith.constant 0 : i32
    %c0_i32_0 = arith.constant 0 : i32
    %c0_i32_1 = arith.constant 0 : i32
    return %c0_i32, %c0_i32_0 : i32, i32
  }
  func.func @transform_13(%arg0: i32) -> (i32, i32) {
    %c0_i32 = arith.constant 0 : i32
    %c0_i32_0 = arith.constant 0 : i32
    %c0_i32_1 = arith.constant 0 : i32
    return %c0_i32, %c0_i32_0 : i32, i32
  }
  func.func @transform_14(%arg0: i32) -> (i32, i32) {
    %c0_i32 = arith.constant 0 : i32
    %c0_i32_0 = arith.constant 0 : i32
    %c0_i32_1 = arith.constant 0 : i32
    return %c0_i32, %c0_i32_0 : i32, i32
  }
  func.func @transform_15(%arg0: i32) -> (i32, i32) {
    %c0_i32 = arith.constant 0 : i32
    %c0_i32_0 = arith.constant 0 : i32
    %c0_i32_1 = arith.constant 0 : i32
    return %c0_i32, %c0_i32_0 : i32, i32
  }
  func.func @transform_16(%arg0: i32) -> (i32, i32) {
    %c0_i32 = arith.constant 0 : i32
    %c0_i32_0 = arith.constant 0 : i32
    %c0_i32_1 = arith.constant 0 : i32
    return %c0_i32, %c0_i32_0 : i32, i32
  }
  func.func @transform_17(%arg0: i32) -> (i32, i32) {
    %c0_i32 = arith.constant 0 : i32
    %c0_i32_0 = arith.constant 0 : i32
    %c0_i32_1 = arith.constant 0 : i32
    return %c0_i32, %c0_i32_0 : i32, i32
  }
  func.func @transform_18(%arg0: i32) -> (i32, i32) {
    %c0_i32 = arith.constant 0 : i32
    %c0_i32_0 = arith.constant 0 : i32
    %c0_i32_1 = arith.constant 0 : i32
    return %c0_i32, %c0_i32_0 : i32, i32
  }
  func.func @transform_19(%arg0: i32) -> (i32, i32) {
    %c0_i32 = arith.constant 0 : i32
    %c0_i32_0 = arith.constant 0 : i32
    %c0_i32_1 = arith.constant 0 : i32
    return %c0_i32, %c0_i32_0 : i32, i32
  }
  func.func @transform_20(%arg0: i32) -> (i32, i32) {
    %c0_i32 = arith.constant 0 : i32
    %c0_i32_0 = arith.constant 0 : i32
    %c0_i32_1 = arith.constant 0 : i32
    return %c0_i32, %c0_i32_0 : i32, i32
  }
  func.func @transform_21(%arg0: i32) -> (i32, i32) {
    %c0_i32 = arith.constant 0 : i32
    %c0_i32_0 = arith.constant 0 : i32
    %c0_i32_1 = arith.constant 0 : i32
    return %c0_i32, %c0_i32_0 : i32, i32
  }
  func.func @transform_22(%arg0: i32) -> (i32, i32, i32) {
    %c0_i32 = arith.constant 0 : i32
    %c0_i32_0 = arith.constant 0 : i32
    %c0_i32_1 = arith.constant 0 : i32
    return %arg0, %c0_i32, %c0_i32_0 : i32, i32, i32
  }
}

</mosaic_0001>

<llo_original>
// kernel: tpu_custom_call.1
$region0: #{tpu_custom_call.1}
  #allocation0 [shape = 'u32[]', space=smem, size = 0x4, offset = 0x4, fixed_abs, tag = 'smem constant byte address 0x4 - core index']
  #allocation1 [shape = 'u32[144,128]{1,0:T(1,128)}', space=vmem, size = 0x12000, scoped, tag = 'internal scratch']
  %s0 = inlined_call_operand.vmem [shape: f32[2,8,32], index: 0, kind: input, shape index: {}]
  %s1 = inlined_call_operand.vmem [shape: f32[2,16,32], index: 1, kind: input, shape index: {}]
  %s2 = inlined_call_operand.vmem [shape: bf16[96,32], index: 2, kind: input, shape index: {}]
  %s3 = inlined_call_operand.vmem [shape: f32[96,1], index: 3, kind: input, shape index: {}]
  %s4 = inlined_call_operand.vmem [shape: bf16[32,32], index: 4, kind: input, shape index: {}]
  %s5 = inlined_call_operand.vmem [shape: f32[32,1], index: 5, kind: input, shape index: {}]
  %s6 = inlined_call_operand.vmem [shape: bf16[32,32], index: 6, kind: input, shape index: {}]
  %s7 = inlined_call_operand.vmem [shape: f32[32,1], index: 7, kind: input, shape index: {}]
  %s8 = inlined_call_operand.vmem [shape: bf16[64,32], index: 8, kind: input, shape index: {}]
  %s9 = inlined_call_operand.vmem [shape: f32[64,1], index: 9, kind: input, shape index: {}]
  %s10 = inlined_call_operand.vmem [shape: bf16[32,32], index: 10, kind: input, shape index: {}]
  %s11 = inlined_call_operand.vmem [shape: f32[32,1], index: 11, kind: input, shape index: {}]
  %s12 = inlined_call_operand.vmem [shape: f32[1,32], index: 12, kind: input, shape index: {}]
  %s13 = inlined_call_operand.vmem [shape: f32[1,32], index: 13, kind: input, shape index: {}]
  %s14 = inlined_call_operand.vmem [shape: f32[1,32], index: 14, kind: input, shape index: {}]
  %s15 = inlined_call_operand.vmem [shape: f32[1,32], index: 15, kind: input, shape index: {}]
  %s16 = inlined_call_operand.vmem [shape: f32[1,32], index: 16, kind: input, shape index: {}]
  %s17 = inlined_call_operand.vmem [shape: f32[1,32], index: 17, kind: input, shape index: {}]
  %s18 = inlined_call_operand.vmem [shape: bf16[32,64], index: 18, kind: input, shape index: {}]
  %s19 = inlined_call_operand.vmem [shape: f32[1,64], index: 19, kind: input, shape index: {}]
  %s20 = inlined_call_operand.vmem [shape: bf16[64,32], index: 20, kind: input, shape index: {}]
  %s21 = inlined_call_operand.vmem [shape: f32[1,32], index: 21, kind: input, shape index: {}]
  %s22 = inlined_call_operand.hbm [shape: f32[2,8,32], index: 22, kind: output, shape index: {}]
  %s23 = sld [smem:[#allocation0]]
  $region121: #{tpu_custom_call.1} parent=0
    _
  %s25 = ssub.s32 1, %s23
  %s26 = scalar_select 0, %s25, %s23
  $region1: #{tpu_custom_call.1} parent=0
    #allocation2 [shape = 'u8[8192]{0}', space=vmem, size = 0x2000, scoped, tag = 'output window, operand 0']
    #allocation3 [shape = 's32[2]{0}', space=sflag, size = 0x8, scoped, tag = 'scoped memory for tpu_custom_call.1']
    %27 = vsyncpa [#allocation3], 0
    %s28 = scalar_lea.sflag [#allocation3], 1
    %29 = vsyncpa %s28, 0
    loop: start=0, step=1, limit=4
    $region2: #{tpu_custom_call.1} parent=1 // loop_pre_header
      _
    $region3: #{tpu_custom_call.1} parent=1 // loop_header
      %s31 = sphi 0, %s35
      %p32 = scmp.ge.s32.totalorder %s31, 4
      %s41 = sphi 0, %s43
      %s44 = sphi 0, %s41
      %s45 = sphi 0, %s44
      %s61 = sphi 0, %s45
      %s67 = sphi 0, %s69
      %s70 = sphi 0, %s67
      %s71 = sphi 0, %s70
      %s87 = sphi 0, %s71
      %s91 = sphi 0, %s91
      %s93 = sphi 0, %s91
      %s94 = sphi 0, %s93
      %s108 = sphi 0, %s94
      %s112 = sphi 0, %s112
      %s114 = sphi 0, %s112
      %s115 = sphi 0, %s114
      %s129 = sphi 0, %s115
      %s133 = sphi 0, %s133
      %s135 = sphi 0, %s133
      %s136 = sphi 0, %s135
      %s150 = sphi 0, %s136
      %s154 = sphi 0, %s154
      %s156 = sphi 0, %s154
      %s157 = sphi 0, %s156
      %s171 = sphi 0, %s157
      %s175 = sphi 0, %s175
      %s177 = sphi 0, %s175
      %s178 = sphi 0, %s177
      %s192 = sphi 0, %s178
      %s196 = sphi 0, %s196
      %s198 = sphi 0, %s196
      %s199 = sphi 0, %s198
      %s213 = sphi 0, %s199
      %s217 = sphi 0, %s217
      %s219 = sphi 0, %s217
      %s220 = sphi 0, %s219
      %s234 = sphi 0, %s220
      %s238 = sphi 0, %s238
      %s240 = sphi 0, %s238
      %s241 = sphi 0, %s240
      %s255 = sphi 0, %s241
      %s259 = sphi 0, %s259
      %s261 = sphi 0, %s259
      %s262 = sphi 0, %s261
      %s276 = sphi 0, %s262
      %s280 = sphi 0, %s280
      %s282 = sphi 0, %s280
      %s283 = sphi 0, %s282
      %s297 = sphi 0, %s283
      %s301 = sphi 0, %s301
      %s303 = sphi 0, %s301
      %s304 = sphi 0, %s303
      %s318 = sphi 0, %s304
      %s322 = sphi 0, %s322
      %s324 = sphi 0, %s322
      %s325 = sphi 0, %s324
      %s339 = sphi 0, %s325
      %s343 = sphi 0, %s343
      %s345 = sphi 0, %s343
      %s346 = sphi 0, %s345
      %s360 = sphi 0, %s346
      %s364 = sphi 0, %s364
      %s366 = sphi 0, %s364
      %s367 = sphi 0, %s366
      %s381 = sphi 0, %s367
      %s385 = sphi 0, %s385
      %s387 = sphi 0, %s385
      %s388 = sphi 0, %s387
      %s402 = sphi 0, %s388
      %s406 = sphi 0, %s406
      %s408 = sphi 0, %s406
      %s409 = sphi 0, %s408
      %s423 = sphi 0, %s409
      %s427 = sphi 0, %s427
      %s429 = sphi 0, %s427
      %s430 = sphi 0, %s429
      %s444 = sphi 0, %s430
      %s448 = sphi 0, %s448
      %s450 = sphi 0, %s448
      %s451 = sphi 0, %s450
      %s465 = sphi 0, %s451
      %s469 = sphi 0, %s469
      %s471 = sphi 0, %s469
      %s472 = sphi 0, %s471
      %s486 = sphi 0, %s472
      %s490 = sphi 0, %s490
      %s492 = sphi 0, %s490
      %s493 = sphi 0, %s492
      %s507 = sphi 0, %s493
      %s513 = sphi 0, %s515
      %s516 = sphi 0, %s513
      %s517 = sphi 0, %s516
      %s533 = sphi 0, %s517
    $region4: #{tpu_custom_call.1} parent=1 // loop_header_branch
      %34 = sbr.rel (%p32) target = $region8
    $region5: #{tpu_custom_call.1} parent=1 // loop_body
      %s36 = ssub.s32 %s31, 1
      %s37 = ssub.s32 %s31, 2
      %s38 = sadd.s32 %s31, 1
      %s39 = ssub.s32 %s31, %s38
      %p40 = scmp.eq.s32.totalorder %s39, 0
      %s42 = sadd.s32 %s41, 1
      %s43 = scalar_select %p40, %s41, %s42
      %p46 = pneg %p40
      %p47 = scmp.eq.s32.totalorder %s31, 1
      %p48 = por %p46, %p47
      %p49 = scmp.ne.s32.totalorder %s41, %s44
      %p50 = scmp.eq.s32.totalorder %s31, 0
      %p51 = por %p49, %p50
      %p52 = scmp.ne.s32.totalorder %s41, %s44
      %p53 = scmp.eq.s32.totalorder %s36, 1
      %p54 = por %p52, %p53
      %p55 = scmp.ne.s32.totalorder %s44, %s45
      %p56 = scmp.eq.s32.totalorder %s36, 0
      %p57 = por %p55, %p56
      %p58 = scmp.ne.s32.totalorder %s44, %s45
      %p59 = scmp.eq.s32.totalorder %s37, 1
      %p60 = por %p58, %p59
      %p62 = scmp.ne.s32.totalorder %s45, %s61
      %p63 = scmp.eq.s32.totalorder %s37, 0
      %p64 = por %p62, %p63
      %s65 = ssub.s32 %s31, %s38
      %p66 = scmp.eq.s32.totalorder %s65, 0
      %s68 = sadd.s32 %s67, 1
      %s69 = scalar_select %p66, %s67, %s68
      %p72 = pneg %p66
      %p73 = scmp.eq.s32.totalorder %s31, 1
      %p74 = por %p72, %p73
      %p75 = scmp.ne.s32.totalorder %s67, %s70
      %p76 = scmp.eq.s32.totalorder %s31, 0
      %p77 = por %p75, %p76
      %p78 = scmp.ne.s32.totalorder %s67, %s70
      %p79 = scmp.eq.s32.totalorder %s36, 1
      %p80 = por %p78, %p79
      %p81 = scmp.ne.s32.totalorder %s70, %s71
      %p82 = scmp.eq.s32.totalorder %s36, 0
      %p83 = por %p81, %p82
      %p84 = scmp.ne.s32.totalorder %s70, %s71
      %p85 = scmp.eq.s32.totalorder %s37, 1
      %p86 = por %p84, %p85
      %p88 = scmp.ne.s32.totalorder %s71, %s87
      %p89 = scmp.eq.s32.totalorder %s37, 0
      %p90 = por %p88, %p89
      %s92 = sadd.s32 %s91, 1
      %p95 = scmp.eq.s32.totalorder %s31, 1
      %p96 = scmp.ne.s32.totalorder %s91, %s93
      %p97 = scmp.eq.s32.totalorder %s31, 0
      %p98 = por %p96, %p97
      %p99 = scmp.ne.s32.totalorder %s91, %s93
      %p100 = scmp.eq.s32.totalorder %s36, 1
      %p101 = por %p99, %p100
      %p102 = scmp.ne.s32.totalorder %s93, %s94
      %p103 = scmp.eq.s32.totalorder %s36, 0
      %p104 = por %p102, %p103
      %p105 = scmp.ne.s32.totalorder %s93, %s94
      %p106 = scmp.eq.s32.totalorder %s37, 1
      %p107 = por %p105, %p106
      %p109 = scmp.ne.s32.totalorder %s94, %s108
      %p110 = scmp.eq.s32.totalorder %s37, 0
      %p111 = por %p109, %p110
      %s113 = sadd.s32 %s112, 1
      %p116 = scmp.eq.s32.totalorder %s31, 1
      %p117 = scmp.ne.s32.totalorder %s112, %s114
      %p118 = scmp.eq.s32.totalorder %s31, 0
      %p119 = por %p117, %p118
      %p120 = scmp.ne.s32.totalorder %s112, %s114
      %p121 = scmp.eq.s32.totalorder %s36, 1
      %p122 = por %p120, %p121
      %p123 = scmp.ne.s32.totalorder %s114, %s115
      %p124 = scmp.eq.s32.totalorder %s36, 0
      %p125 = por %p123, %p124
      %p126 = scmp.ne.s32.totalorder %s114, %s115
      %p127 = scmp.eq.s32.totalorder %s37, 1
      %p128 = por %p126, %p127
      %p130 = scmp.ne.s32.totalorder %s115, %s129
      %p131 = scmp.eq.s32.totalorder %s37, 0
      %p132 = por %p130, %p131
      %s134 = sadd.s32 %s133, 1
      %p137 = scmp.eq.s32.totalorder %s31, 1
      %p138 = scmp.ne.s32.totalorder %s133, %s135
      %p139 = scmp.eq.s32.totalorder %s31, 0
      %p140 = por %p138, %p139
      %p141 = scmp.ne.s32.totalorder %s133, %s135
      %p142 = scmp.eq.s32.totalorder %s36, 1
      %p143 = por %p141, %p142
      %p144 = scmp.ne.s32.totalorder %s135, %s136
      %p145 = scmp.eq.s32.totalorder %s36, 0
      %p146 = por %p144, %p145
      %p147 = scmp.ne.s32.totalorder %s135, %s136
      %p148 = scmp.eq.s32.totalorder %s37, 1
      %p149 = por %p147, %p148
      %p151 = scmp.ne.s32.totalorder %s136, %s150
      %p152 = scmp.eq.s32.totalorder %s37, 0
      %p153 = por %p151, %p152
      %s155 = sadd.s32 %s154, 1
      %p158 = scmp.eq.s32.totalorder %s31, 1
      %p159 = scmp.ne.s32.totalorder %s154, %s156
      %p160 = scmp.eq.s32.totalorder %s31, 0
      %p161 = por %p159, %p160
      %p162 = scmp.ne.s32.totalorder %s154, %s156
      %p163 = scmp.eq.s32.totalorder %s36, 1
      %p164 = por %p162, %p163
      %p165 = scmp.ne.s32.totalorder %s156, %s157
      %p166 = scmp.eq.s32.totalorder %s36, 0
      %p167 = por %p165, %p166
      %p168 = scmp.ne.s32.totalorder %s156, %s157
      %p169 = scmp.eq.s32.totalorder %s37, 1
      %p170 = por %p168, %p169
      %p172 = scmp.ne.s32.totalorder %s157, %s171
      %p173 = scmp.eq.s32.totalorder %s37, 0
      %p174 = por %p172, %p173
      %s176 = sadd.s32 %s175, 1
      %p179 = scmp.eq.s32.totalorder %s31, 1
      %p180 = scmp.ne.s32.totalorder %s175, %s177
      %p181 = scmp.eq.s32.totalorder %s31, 0
      %p182 = por %p180, %p181
      %p183 = scmp.ne.s32.totalorder %s175, %s177
      %p184 = scmp.eq.s32.totalorder %s36, 1
      %p185 = por %p183, %p184
      %p186 = scmp.ne.s32.totalorder %s177, %s178
      %p187 = scmp.eq.s32.totalorder %s36, 0
      %p188 = por %p186, %p187
      %p189 = scmp.ne.s32.totalorder %s177, %s178
      %p190 = scmp.eq.s32.totalorder %s37, 1
      %p191 = por %p189, %p190
      %p193 = scmp.ne.s32.totalorder %s178, %s192
      %p194 = scmp.eq.s32.totalorder %s37, 0
      %p195 = por %p193, %p194
      %s197 = sadd.s32 %s196, 1
      %p200 = scmp.eq.s32.totalorder %s31, 1
      %p201 = scmp.ne.s32.totalorder %s196, %s198
      %p202 = scmp.eq.s32.totalorder %s31, 0
      %p203 = por %p201, %p202
      %p204 = scmp.ne.s32.totalorder %s196, %s198
      %p205 = scmp.eq.s32.totalorder %s36, 1
      %p206 = por %p204, %p205
      %p207 = scmp.ne.s32.totalorder %s198, %s199
      %p208 = scmp.eq.s32.totalorder %s36, 0
      %p209 = por %p207, %p208
      %p210 = scmp.ne.s32.totalorder %s198, %s199
      %p211 = scmp.eq.s32.totalorder %s37, 1
      %p212 = por %p210, %p211
      %p214 = scmp.ne.s32.totalorder %s199, %s213
      %p215 = scmp.eq.s32.totalorder %s37, 0
      %p216 = por %p214, %p215
      %s218 = sadd.s32 %s217, 1
      %p221 = scmp.eq.s32.totalorder %s31, 1
      %p222 = scmp.ne.s32.totalorder %s217, %s219
      %p223 = scmp.eq.s32.totalorder %s31, 0
      %p224 = por %p222, %p223
      %p225 = scmp.ne.s32.totalorder %s217, %s219
      %p226 = scmp.eq.s32.totalorder %s36, 1
      %p227 = por %p225, %p226
      %p228 = scmp.ne.s32.totalorder %s219, %s220
      %p229 = scmp.eq.s32.totalorder %s36, 0
      %p230 = por %p228, %p229
      %p231 = scmp.ne.s32.totalorder %s219, %s220
      %p232 = scmp.eq.s32.totalorder %s37, 1
      %p233 = por %p231, %p232
      %p235 = scmp.ne.s32.totalorder %s220, %s234
      %p236 = scmp.eq.s32.totalorder %s37, 0
      %p237 = por %p235, %p236
      %s239 = sadd.s32 %s238, 1
      %p242 = scmp.eq.s32.totalorder %s31, 1
      %p243 = scmp.ne.s32.totalorder %s238, %s240
      %p244 = scmp.eq.s32.totalorder %s31, 0
      %p245 = por %p243, %p244
      %p246 = scmp.ne.s32.totalorder %s238, %s240
      %p247 = scmp.eq.s32.totalorder %s36, 1
      %p248 = por %p246, %p247
      %p249 = scmp.ne.s32.totalorder %s240, %s241
      %p250 = scmp.eq.s32.totalorder %s36, 0
      %p251 = por %p249, %p250
      %p252 = scmp.ne.s32.totalorder %s240, %s241
      %p253 = scmp.eq.s32.totalorder %s37, 1
      %p254 = por %p252, %p253
      %p256 = scmp.ne.s32.totalorder %s241, %s255
      %p257 = scmp.eq.s32.totalorder %s37, 0
      %p258 = por %p256, %p257
      %s260 = sadd.s32 %s259, 1
      %p263 = scmp.eq.s32.totalorder %s31, 1
      %p264 = scmp.ne.s32.totalorder %s259, %s261
      %p265 = scmp.eq.s32.totalorder %s31, 0
      %p266 = por %p264, %p265
      %p267 = scmp.ne.s32.totalorder %s259, %s261
      %p268 = scmp.eq.s32.totalorder %s36, 1
      %p269 = por %p267, %p268
      %p270 = scmp.ne.s32.totalorder %s261, %s262
      %p271 = scmp.eq.s32.totalorder %s36, 0
      %p272 = por %p270, %p271
      %p273 = scmp.ne.s32.totalorder %s261, %s262
      %p274 = scmp.eq.s32.totalorder %s37, 1
      %p275 = por %p273, %p274
      %p277 = scmp.ne.s32.totalorder %s262, %s276
      %p278 = scmp.eq.s32.totalorder %s37, 0
      %p279 = por %p277, %p278
      %s281 = sadd.s32 %s280, 1
      %p284 = scmp.eq.s32.totalorder %s31, 1
      %p285 = scmp.ne.s32.totalorder %s280, %s282
      %p286 = scmp.eq.s32.totalorder %s31, 0
      %p287 = por %p285, %p286
      %p288 = scmp.ne.s32.totalorder %s280, %s282
      %p289 = scmp.eq.s32.totalorder %s36, 1
      %p290 = por %p288, %p289
      %p291 = scmp.ne.s32.totalorder %s282, %s283
      %p292 = scmp.eq.s32.totalorder %s36, 0
      %p293 = por %p291, %p292
      %p294 = scmp.ne.s32.totalorder %s282, %s283
      %p295 = scmp.eq.s32.totalorder %s37, 1
      %p296 = por %p294, %p295
      %p298 = scmp.ne.s32.totalorder %s283, %s297
      %p299 = scmp.eq.s32.totalorder %s37, 0
      %p300 = por %p298, %p299
      %s302 = sadd.s32 %s301, 1
      %p305 = scmp.eq.s32.totalorder %s31, 1
      %p306 = scmp.ne.s32.totalorder %s301, %s303
      %p307 = scmp.eq.s32.totalorder %s31, 0
      %p308 = por %p306, %p307
      %p309 = scmp.ne.s32.totalorder %s301, %s303
      %p310 = scmp.eq.s32.totalorder %s36, 1
      %p311 = por %p309, %p310
      %p312 = scmp.ne.s32.totalorder %s303, %s304
      %p313 = scmp.eq.s32.totalorder %s36, 0
      %p314 = por %p312, %p313
      %p315 = scmp.ne.s32.totalorder %s303, %s304
      %p316 = scmp.eq.s32.totalorder %s37, 1
      %p317 = por %p315, %p316
      %p319 = scmp.ne.s32.totalorder %s304, %s318
      %p320 = scmp.eq.s32.totalorder %s37, 0
      %p321 = por %p319, %p320
      %s323 = sadd.s32 %s322, 1
      %p326 = scmp.eq.s32.totalorder %s31, 1
      %p327 = scmp.ne.s32.totalorder %s322, %s324
      %p328 = scmp.eq.s32.totalorder %s31, 0
      %p329 = por %p327, %p328
      %p330 = scmp.ne.s32.totalorder %s322, %s324
      %p331 = scmp.eq.s32.totalorder %s36, 1
      %p332 = por %p330, %p331
      %p333 = scmp.ne.s32.totalorder %s324, %s325
      %p334 = scmp.eq.s32.totalorder %s36, 0
      %p335 = por %p333, %p334
      %p336 = scmp.ne.s32.totalorder %s324, %s325
      %p337 = scmp.eq.s32.totalorder %s37, 1
      %p338 = por %p336, %p337
      %p340 = scmp.ne.s32.totalorder %s325, %s339
      %p341 = scmp.eq.s32.totalorder %s37, 0
      %p342 = por %p340, %p341
      %s344 = sadd.s32 %s343, 1
      %p347 = scmp.eq.s32.totalorder %s31, 1
      %p348 = scmp.ne.s32.totalorder %s343, %s345
      %p349 = scmp.eq.s32.totalorder %s31, 0
      %p350 = por %p348, %p349
      %p351 = scmp.ne.s32.totalorder %s343, %s345
      %p352 = scmp.eq.s32.totalorder %s36, 1
      %p353 = por %p351, %p352
      %p354 = scmp.ne.s32.totalorder %s345, %s346
      %p355 = scmp.eq.s32.totalorder %s36, 0
      %p356 = por %p354, %p355
      %p357 = scmp.ne.s32.totalorder %s345, %s346
      %p358 = scmp.eq.s32.totalorder %s37, 1
      %p359 = por %p357, %p358
      %p361 = scmp.ne.s32.totalorder %s346, %s360
      %p362 = scmp.eq.s32.totalorder %s37, 0
      %p363 = por %p361, %p362
      %s365 = sadd.s32 %s364, 1
      %p368 = scmp.eq.s32.totalorder %s31, 1
      %p369 = scmp.ne.s32.totalorder %s364, %s366
      %p370 = scmp.eq.s32.totalorder %s31, 0
      %p371 = por %p369, %p370
      %p372 = scmp.ne.s32.totalorder %s364, %s366
      %p373 = scmp.eq.s32.totalorder %s36, 1
      %p374 = por %p372, %p373
      %p375 = scmp.ne.s32.totalorder %s366, %s367
      %p376 = scmp.eq.s32.totalorder %s36, 0
      %p377 = por %p375, %p376
      %p378 = scmp.ne.s32.totalorder %s366, %s367
      %p379 = scmp.eq.s32.totalorder %s37, 1
      %p380 = por %p378, %p379
      %p382 = scmp.ne.s32.totalorder %s367, %s381
      %p383 = scmp.eq.s32.totalorder %s37, 0
      %p384 = por %p382, %p383
      %s386 = sadd.s32 %s385, 1
      %p389 = scmp.eq.s32.totalorder %s31, 1
      %p390 = scmp.ne.s32.totalorder %s385, %s387
      %p391 = scmp.eq.s32.totalorder %s31, 0
      %p392 = por %p390, %p391
      %p393 = scmp.ne.s32.totalorder %s385, %s387
      %p394 = scmp.eq.s32.totalorder %s36, 1
      %p395 = por %p393, %p394
      %p396 = scmp.ne.s32.totalorder %s387, %s388
      %p397 = scmp.eq.s32.totalorder %s36, 0
      %p398 = por %p396, %p397
      %p399 = scmp.ne.s32.totalorder %s387, %s388
      %p400 = scmp.eq.s32.totalorder %s37, 1
      %p401 = por %p399, %p400
      %p403 = scmp.ne.s32.totalorder %s388, %s402
      %p404 = scmp.eq.s32.totalorder %s37, 0
      %p405 = por %p403, %p404
      %s407 = sadd.s32 %s406, 1
      %p410 = scmp.eq.s32.totalorder %s31, 1
      %p411 = scmp.ne.s32.totalorder %s406, %s408
      %p412 = scmp.eq.s32.totalorder %s31, 0
      %p413 = por %p411, %p412
      %p414 = scmp.ne.s32.totalorder %s406, %s408
      %p415 = scmp.eq.s32.totalorder %s36, 1
      %p416 = por %p414, %p415
      %p417 = scmp.ne.s32.totalorder %s408, %s409
      %p418 = scmp.eq.s32.totalorder %s36, 0
      %p419 = por %p417, %p418
      %p420 = scmp.ne.s32.totalorder %s408, %s409
      %p421 = scmp.eq.s32.totalorder %s37, 1
      %p422 = por %p420, %p421
      %p424 = scmp.ne.s32.totalorder %s409, %s423
      %p425 = scmp.eq.s32.totalorder %s37, 0
      %p426 = por %p424, %p425
      %s428 = sadd.s32 %s427, 1
      %p431 = scmp.eq.s32.totalorder %s31, 1
      %p432 = scmp.ne.s32.totalorder %s427, %s429
      %p433 = scmp.eq.s32.totalorder %s31, 0
      %p434 = por %p432, %p433
      %p435 = scmp.ne.s32.totalorder %s427, %s429
      %p436 = scmp.eq.s32.totalorder %s36, 1
      %p437 = por %p435, %p436
      %p438 = scmp.ne.s32.totalorder %s429, %s430
      %p439 = scmp.eq.s32.totalorder %s36, 0
      %p440 = por %p438, %p439
      %p441 = scmp.ne.s32.totalorder %s429, %s430
      %p442 = scmp.eq.s32.totalorder %s37, 1
      %p443 = por %p441, %p442
      %p445 = scmp.ne.s32.totalorder %s430, %s444
      %p446 = scmp.eq.s32.totalorder %s37, 0
      %p447 = por %p445, %p446
      %s449 = sadd.s32 %s448, 1
      %p452 = scmp.eq.s32.totalorder %s31, 1
      %p453 = scmp.ne.s32.totalorder %s448, %s450
      %p454 = scmp.eq.s32.totalorder %s31, 0
      %p455 = por %p453, %p454
      %p456 = scmp.ne.s32.totalorder %s448, %s450
      %p457 = scmp.eq.s32.totalorder %s36, 1
      %p458 = por %p456, %p457
      %p459 = scmp.ne.s32.totalorder %s450, %s451
      %p460 = scmp.eq.s32.totalorder %s36, 0
      %p461 = por %p459, %p460
      %p462 = scmp.ne.s32.totalorder %s450, %s451
      %p463 = scmp.eq.s32.totalorder %s37, 1
      %p464 = por %p462, %p463
      %p466 = scmp.ne.s32.totalorder %s451, %s465
      %p467 = scmp.eq.s32.totalorder %s37, 0
      %p468 = por %p466, %p467
      %s470 = sadd.s32 %s469, 1
      %p473 = scmp.eq.s32.totalorder %s31, 1
      %p474 = scmp.ne.s32.totalorder %s469, %s471
      %p475 = scmp.eq.s32.totalorder %s31, 0
      %p476 = por %p474, %p475
      %p477 = scmp.ne.s32.totalorder %s469, %s471
      %p478 = scmp.eq.s32.totalorder %s36, 1
      %p479 = por %p477, %p478
      %p480 = scmp.ne.s32.totalorder %s471, %s472
      %p481 = scmp.eq.s32.totalorder %s36, 0
      %p482 = por %p480, %p481
      %p483 = scmp.ne.s32.totalorder %s471, %s472
      %p484 = scmp.eq.s32.totalorder %s37, 1
      %p485 = por %p483, %p484
      %p487 = scmp.ne.s32.totalorder %s472, %s486
      %p488 = scmp.eq.s32.totalorder %s37, 0
      %p489 = por %p487, %p488
      %s491 = sadd.s32 %s490, 1
      %p494 = scmp.eq.s32.totalorder %s31, 1
      %p495 = scmp.ne.s32.totalorder %s490, %s492
      %p496 = scmp.eq.s32.totalorder %s31, 0
      %p497 = por %p495, %p496
      %p498 = scmp.ne.s32.totalorder %s490, %s492
      %p499 = scmp.eq.s32.totalorder %s36, 1
      %p500 = por %p498, %p499
      %p501 = scmp.ne.s32.totalorder %s492, %s493
      %p502 = scmp.eq.s32.totalorder %s36, 0
      %p503 = por %p501, %p502
      %p504 = scmp.ne.s32.totalorder %s492, %s493
      %p505 = scmp.eq.s32.totalorder %s37, 1
      %p506 = por %p504, %p505
      %p508 = scmp.ne.s32.totalorder %s493, %s507
      %p509 = scmp.eq.s32.totalorder %s37, 0
      %p510 = por %p508, %p509
      %s511 = ssub.s32 %s31, %s38
      %p512 = scmp.eq.s32.totalorder %s511, 0
      %s514 = sadd.s32 %s513, 1
      %s515 = scalar_select %p512, %s513, %s514
      %p518 = pneg %p512
      %p519 = scmp.eq.s32.totalorder %s31, 1
      %p520 = por %p518, %p519
      %p521 = scmp.ne.s32.totalorder %s513, %s516
      %p522 = scmp.eq.s32.totalorder %s31, 0
      %p523 = por %p521, %p522
      %p524 = scmp.ne.s32.totalorder %s513, %s516
      %p525 = scmp.eq.s32.totalorder %s36, 1
      %p526 = por %p524, %p525
      %p527 = scmp.ne.s32.totalorder %s516, %s517
      %p528 = scmp.eq.s32.totalorder %s36, 0
      %p529 = por %p527, %p528
      %p530 = scmp.ne.s32.totalorder %s516, %s517
      %p531 = scmp.eq.s32.totalorder %s37, 1
      %p532 = por %p530, %p531
      %p534 = scmp.ne.s32.totalorder %s517, %s533
      %p535 = scmp.eq.s32.totalorder %s37, 0
      %p536 = por %p534, %p535
      %p537 = scmp.le.s32.totalorder 1, %s31
      %p538 = scmp.lt.s32.totalorder %s31, 3
      %p539 = pnand %p537, %p538
      %p540 = pneg %p539
      // Predicated region
      $region9: #{tpu_custom_call.1} parent=5 // pred_check
        _
      $region10: #{tpu_custom_call.1} parent=5 // pred_check_branch
        %542 = sbr.rel (%p539) target = $region12
      $region11: #{tpu_custom_call.1} parent=5 // pred_region
        %s543 = ssub.s32 %s31, 1
        // Predicated region
        $region13: #{tpu_custom_call.1} parent=11 // pred_check
          %p544 = pneg %p104
        $region14: #{tpu_custom_call.1} parent=11 // pred_check_branch
          %546 = sbr.rel (%p544) target = $region16
        $region15: #{tpu_custom_call.1} parent=11 // pred_region
          _
        $region16: #{tpu_custom_call.1} parent=11 // pred_fallthru
          _
        // Predicated region
        $region17: #{tpu_custom_call.1} parent=11 // pred_check
          %p547 = pneg %p125
        $region18: #{tpu_custom_call.1} parent=11 // pred_check_branch
          %549 = sbr.rel (%p547) target = $region20
        $region19: #{tpu_custom_call.1} parent=11 // pred_region
          _
        $region20: #{tpu_custom_call.1} parent=11 // pred_fallthru
          _
        // Predicated region
        $region21: #{tpu_custom_call.1} parent=11 // pred_check
          %p550 = pneg %p146
        $region22: #{tpu_custom_call.1} parent=11 // pred_check_branch
          %552 = sbr.rel (%p550) target = $region24
        $region23: #{tpu_custom_call.1} parent=11 // pred_region
          _
        $region24: #{tpu_custom_call.1} parent=11 // pred_fallthru
          _
        // Predicated region
        $region25: #{tpu_custom_call.1} parent=11 // pred_check
          %p553 = pneg %p167
        $region26: #{tpu_custom_call.1} parent=11 // pred_check_branch
          %555 = sbr.rel (%p553) target = $region28
        $region27: #{tpu_custom_call.1} parent=11 // pred_region
          _
        $region28: #{tpu_custom_call.1} parent=11 // pred_fallthru
          _
        // Predicated region
        $region29: #{tpu_custom_call.1} parent=11 // pred_check
          %p556 = pneg %p188
        $region30: #{tpu_custom_call.1} parent=11 // pred_check_branch
          %558 = sbr.rel (%p556) target = $region32
        $region31: #{tpu_custom_call.1} parent=11 // pred_region
          _
        $region32: #{tpu_custom_call.1} parent=11 // pred_fallthru
          _
        // Predicated region
        $region33: #{tpu_custom_call.1} parent=11 // pred_check
          %p559 = pneg %p209
        $region34: #{tpu_custom_call.1} parent=11 // pred_check_branch
          %561 = sbr.rel (%p559) target = $region36
        $region35: #{tpu_custom_call.1} parent=11 // pred_region
          _
        $region36: #{tpu_custom_call.1} parent=11 // pred_fallthru
          _
        // Predicated region
        $region37: #{tpu_custom_call.1} parent=11 // pred_check
          %p562 = pneg %p230
        $region38: #{tpu_custom_call.1} parent=11 // pred_check_branch
          %564 = sbr.rel (%p562) target = $region40
        $region39: #{tpu_custom_call.1} parent=11 // pred_region
          _
        $region40: #{tpu_custom_call.1} parent=11 // pred_fallthru
          _
        // Predicated region
        $region41: #{tpu_custom_call.1} parent=11 // pred_check
          %p565 = pneg %p251
        $region42: #{tpu_custom_call.1} parent=11 // pred_check_branch
          %567 = sbr.rel (%p565) target = $region44
        $region43: #{tpu_custom_call.1} parent=11 // pred_region
          _
        $region44: #{tpu_custom_call.1} parent=11 // pred_fallthru
          _
        // Predicated region
        $region45: #{tpu_custom_call.1} parent=11 // pred_check
          %p568 = pneg %p272
        $region46: #{tpu_custom_call.1} parent=11 // pred_check_branch
          %570 = sbr.rel (%p568) target = $region48
        $region47: #{tpu_custom_call.1} parent=11 // pred_region
          _
        $region48: #{tpu_custom_call.1} parent=11 // pred_fallthru
          _
        // Predicated region
        $region49: #{tpu_custom_call.1} parent=11 // pred_check
          %p571 = pneg %p293
        $region50: #{tpu_custom_call.1} parent=11 // pred_check_branch
          %573 = sbr.rel (%p571) target = $region52
        $region51: #{tpu_custom_call.1} parent=11 // pred_region
          _
        $region52: #{tpu_custom_call.1} parent=11 // pred_fallthru
          _
        // Predicated region
        $region53: #{tpu_custom_call.1} parent=11 // pred_check
          %p574 = pneg %p314
        $region54: #{tpu_custom_call.1} parent=11 // pred_check_branch
          %576 = sbr.rel (%p574) target = $region56
        $region55: #{tpu_custom_call.1} parent=11 // pred_region
          _
        $region56: #{tpu_custom_call.1} parent=11 // pred_fallthru
          _
        // Predicated region
        $region57: #{tpu_custom_call.1} parent=11 // pred_check
          %p577 = pneg %p335
        $region58: #{tpu_custom_call.1} parent=11 // pred_check_branch
          %579 = sbr.rel (%p577) target = $region60
        $region59: #{tpu_custom_call.1} parent=11 // pred_region
          _
        $region60: #{tpu_custom_call.1} parent=11 // pred_fallthru
          _
        // Predicated region
        $region61: #{tpu_custom_call.1} parent=11 // pred_check
          %p580 = pneg %p356
        $region62: #{tpu_custom_call.1} parent=11 // pred_check_branch
          %582 = sbr.rel (%p580) target = $region64
        $region63: #{tpu_custom_call.1} parent=11 // pred_region
          _
        $region64: #{tpu_custom_call.1} parent=11 // pred_fallthru
          _
        // Predicated region
        $region65: #{tpu_custom_call.1} parent=11 // pred_check
          %p583 = pneg %p377
        $region66: #{tpu_custom_call.1} parent=11 // pred_check_branch
          %585 = sbr.rel (%p583) target = $region68
        $region67: #{tpu_custom_call.1} parent=11 // pred_region
          _
        $region68: #{tpu_custom_call.1} parent=11 // pred_fallthru
          _
        // Predicated region
        $region69: #{tpu_custom_call.1} parent=11 // pred_check
          %p586 = pneg %p398
        $region70: #{tpu_custom_call.1} parent=11 // pred_check_branch
          %588 = sbr.rel (%p586) target = $region72
        $region71: #{tpu_custom_call.1} parent=11 // pred_region
          _
        $region72: #{tpu_custom_call.1} parent=11 // pred_fallthru
          _
        // Predicated region
        $region73: #{tpu_custom_call.1} parent=11 // pred_check
          %p589 = pneg %p419
        $region74: #{tpu_custom_call.1} parent=11 // pred_check_branch
          %591 = sbr.rel (%p589) target = $region76
        $region75: #{tpu_custom_call.1} parent=11 // pred_region
          _
        $region76: #{tpu_custom_call.1} parent=11 // pred_fallthru
          _
        // Predicated region
        $region77: #{tpu_custom_call.1} parent=11 // pred_check
          %p592 = pneg %p440
        $region78: #{tpu_custom_call.1} parent=11 // pred_check_branch
          %594 = sbr.rel (%p592) target = $region80
        $region79: #{tpu_custom_call.1} parent=11 // pred_region
          _
        $region80: #{tpu_custom_call.1} parent=11 // pred_fallthru
          _
        // Predicated region
        $region81: #{tpu_custom_call.1} parent=11 // pred_check
          %p595 = pneg %p461
        $region82: #{tpu_custom_call.1} parent=11 // pred_check_branch
          %597 = sbr.rel (%p595) target = $region84
        $region83: #{tpu_custom_call.1} parent=11 // pred_region
          _
        $region84: #{tpu_custom_call.1} parent=11 // pred_fallthru
          _
        // Predicated region
        $region85: #{tpu_custom_call.1} parent=11 // pred_check
          %p598 = pneg %p482
        $region86: #{tpu_custom_call.1} parent=11 // pred_check_branch
          %600 = sbr.rel (%p598) target = $region88
        $region87: #{tpu_custom_call.1} parent=11 // pred_region
          _
        $region88: #{tpu_custom_call.1} parent=11 // pred_fallthru
          _
        // Predicated region
        $region89: #{tpu_custom_call.1} parent=11 // pred_check
          %p601 = pneg %p503
        $region90: #{tpu_custom_call.1} parent=11 // pred_check_branch
          %603 = sbr.rel (%p601) target = $region92
        $region91: #{tpu_custom_call.1} parent=11 // pred_region
          _
        $region92: #{tpu_custom_call.1} parent=11 // pred_fallthru
          _
      $region12: #{tpu_custom_call.1} parent=5 // pred_fallthru
        _
      %p604 = scmp.lt.s32.totalorder %s31, 2
      // Predicated region
      $region93: #{tpu_custom_call.1} parent=5 // pred_check
        %p605 = pneg %p604
      $region94: #{tpu_custom_call.1} parent=5 // pred_check_branch
        %607 = sbr.rel (%p605) target = $region96
      $region95: #{tpu_custom_call.1} parent=5 // pred_region
        // Predicated region
        $region97: #{tpu_custom_call.1} parent=95 // pred_check
          %p608 = pneg %p51
        $region98: #{tpu_custom_call.1} parent=95 // pred_check_branch
          %610 = sbr.rel (%p608) target = $region100
        $region99: #{tpu_custom_call.1} parent=95 // pred_region
          %p611 = scmp.lt.s32.totalorder %s31, 1
          %s612 = scalar_select %p611, %s31, 1
          %s613 = smul.addr %s612, 8
          %s614 = scalar_lea.vmem %s0, %s613
        $region100: #{tpu_custom_call.1} parent=95 // pred_fallthru
          _
        // Predicated region
        $region101: #{tpu_custom_call.1} parent=95 // pred_check
          %p615 = pneg %p77
        $region102: #{tpu_custom_call.1} parent=95 // pred_check_branch
          %617 = sbr.rel (%p615) target = $region104
        $region103: #{tpu_custom_call.1} parent=95 // pred_region
          %p618 = scmp.lt.s32.totalorder %s31, 1
          %s619 = scalar_select %p618, %s31, 1
          %s620 = smul.addr %s619, 2
          %s621 = smul.addr %s620, 8
          %s622 = scalar_lea.vmem %s1, %s621
        $region104: #{tpu_custom_call.1} parent=95 // pred_fallthru
          _
      $region96: #{tpu_custom_call.1} parent=5 // pred_fallthru
        _
      %p623 = scmp.le.s32.totalorder 1, %s31
      %p624 = scmp.lt.s32.totalorder %s31, 3
      %p625 = pnand %p623, %p624
      %p626 = pneg %p625
      // Predicated region
      $region105: #{tpu_custom_call.1} parent=5 // pred_check
        _
      $region106: #{tpu_custom_call.1} parent=5 // pred_check_branch
        %628 = sbr.rel (%p625) target = $region108
      $region107: #{tpu_custom_call.1} parent=5 // pred_region
        %s629 = ssub.s32 %s31, 1
        %p630 = scmp.lt.s32.totalorder %s36, 1
        %s631 = scalar_select %p630, %s36, 1
        %s632 = smul.addr %s631, 8
        %s633 = scalar_lea.vmem %s0, %s632
        %p634 = pneg %p57
        %p635 = pneg %p54
        %p636 = scmp.lt.s32.totalorder %s36, 1
        %s637 = scalar_select %p636, %s36, 1
        %s638 = smul.addr %s637, 2
        %s639 = smul.addr %s638, 8
        %s640 = scalar_lea.vmem %s1, %s639
        %p641 = pneg %p83
        %p642 = pneg %p80
        %p643 = pneg %p104
        %p644 = pneg %p101
        %p645 = pneg %p125
        %p646 = pneg %p122
        %p647 = pneg %p146
        %p648 = pneg %p143
        %p649 = pneg %p167
        %p650 = pneg %p164
        %p651 = pneg %p188
        %p652 = pneg %p185
        %p653 = pneg %p209
        %p654 = pneg %p206
        %p655 = pneg %p230
        %p656 = pneg %p227
        %p657 = pneg %p251
        %p658 = pneg %p248
        %p659 = pneg %p272
        %p660 = pneg %p269
        %p661 = pneg %p293
        %p662 = pneg %p290
        %p663 = pneg %p314
        %p664 = pneg %p311
        %p665 = pneg %p335
        %p666 = pneg %p332
        %p667 = pneg %p356
        %p668 = pneg %p353
        %p669 = pneg %p377
        %p670 = pneg %p374
        %p671 = pneg %p398
        %p672 = pneg %p395
        %p673 = pneg %p419
        %p674 = pneg %p416
        %p675 = pneg %p440
        %p676 = pneg %p437
        %p677 = pneg %p461
        %p678 = pneg %p458
        %p679 = pneg %p482
        %p680 = pneg %p479
        %p681 = pneg %p503
        %p682 = pneg %p500
        %p683 = pneg %p529
        %p684 = pneg %p526
        %s685 = sand.u32 %s516, 1
        %s686 = scalar_lea.sflag [#allocation3], %s685
        %s687 = sand.u32 %s516, 1
        %s688 = smul.addr %s687, 8
        %s689 = scalar_lea.vmem [#allocation2], %s688
        %p690 = scmp.lt.s32.totalorder %s36, 1
        %s691 = scalar_select %p690, %s36, 1
        %s692 = smul.addr %s691, 8
        %s693 = scalar_lea.vmem %s0, %s692
        %p694 = scmp.lt.s32.totalorder %s36, 1
        %s695 = scalar_select %p694, %s36, 1
        %s696 = smul.addr %s695, 2
        %s697 = smul.addr %s696, 8
        %s698 = scalar_lea.vmem %s1, %s697
        %v700 = vld [vmem:[%s693] sm:$0xff]
        %v701 = vld [vmem:[%s698] sm:$0xff]
        %v702 = vld [vmem:[%s698 + $0x8] sm:$0xff]
        %703 = vxpose.xlu0.b32.start [1/16] %v700, 128
        %704 = vxpose.xlu0.b32.cont [2/16] 0.0, 128
        %705 = vxpose.xlu0.b32.cont [3/16] 0.0, 128
        %706 = vxpose.xlu0.b32.cont [4/16] 0.0, 128
        %707 = vxpose.xlu0.b32.cont [5/16] 0.0, 128
        %708 = vxpose.xlu0.b32.cont [6/16] 0.0, 128
        %709 = vxpose.xlu0.b32.cont [7/16] 0.0, 128
        %710 = vxpose.xlu0.b32.cont [8/16] 0.0, 128
        %711 = vxpose.xlu0.b32.cont [9/16] 0.0, 128
        %712 = vxpose.xlu0.b32.cont [10/16] 0.0, 128
        %713 = vxpose.xlu0.b32.cont [11/16] 0.0, 128
        %714 = vxpose.xlu0.b32.cont [12/16] 0.0, 128
        %715 = vxpose.xlu0.b32.cont [13/16] 0.0, 128
        %716 = vxpose.xlu0.b32.cont [14/16] 0.0, 128
        %717 = vxpose.xlu0.b32.cont [15/16] 0.0, 128
        %718 = vxpose.xlu0.b32.end [16/16] 0.0, 128
        %v719 = vpop.trf.xlu0
        %v720 = vpop.trf.xlu0
        %v721 = vpop.trf.xlu0
        %v722 = vpop.trf.xlu0
        %v723 = vpop.trf.xlu0
        %v724 = vpop.trf.xlu0
        %v725 = vpop.trf.xlu0
        %v726 = vpop.trf.xlu0
        %v727 = vpop.trf.xlu0
        %v728 = vpop.trf.xlu0
        %v729 = vpop.trf.xlu0
        %v730 = vpop.trf.xlu0
        %v731 = vpop.trf.xlu0
        %v732 = vpop.trf.xlu0
        %v733 = vpop.trf.xlu0
        %v734 = vpop.trf.xlu0
        %v735 = vld [vmem:[%s2] sm:$0xf]
        %v736 = vld [vmem:[%s2 + $0x4] sm:$0xf]
        %v737 = vld [vmem:[%s2 + $0x8] sm:$0xf]
        %v738 = vld [vmem:[%s2 + $0xc] sm:$0xf]
        %v739 = vld [vmem:[%s2 + $0x10] sm:$0xf]
        %v740 = vld [vmem:[%s2 + $0x14] sm:$0xf]
        %v741 = vld [vmem:[%s2 + $0x18] sm:$0xf]
        %v742 = vld [vmem:[%s2 + $0x1c] sm:$0xf]
        %v743 = vld [vmem:[%s2 + $0x20] sm:$0xf]
        %v744 = vld [vmem:[%s2 + $0x24] sm:$0xf]
        %v745 = vld [vmem:[%s2 + $0x28] sm:$0xf]
        %v746 = vld [vmem:[%s2 + $0x2c] sm:$0xf]
        %v747 = vpack.c.bf16 %v720, %v719
        %v748 = vpack.c.bf16 %v722, %v721
        %v749 = vld [vmem:[%s3] sm:$0xff]
        %v750 = vld [vmem:[%s3 + $0x8] sm:$0xff]
        %v751 = vld [vmem:[%s3 + $0x10] sm:$0xff]
        %v752 = vld [vmem:[%s3 + $0x18] sm:$0xff]
        %v753 = vld [vmem:[%s3 + $0x20] sm:$0xff]
        %v754 = vld [vmem:[%s3 + $0x28] sm:$0xff]
        %v755 = vld [vmem:[%s3 + $0x30] sm:$0xff]
        %v756 = vld [vmem:[%s3 + $0x38] sm:$0xff]
        %v757 = vld [vmem:[%s3 + $0x40] sm:$0xff]
        %v758 = vld [vmem:[%s3 + $0x48] sm:$0xff]
        %v759 = vld [vmem:[%s3 + $0x50] sm:$0xff]
        %v760 = vld [vmem:[%s3 + $0x58] sm:$0xff]
        %762 = vset.pattern.permute.xlu0 0
        %763 = vperm.xlu0 %762, %v749
        %v764 = vpop.permute.xlu0 %763
        %767 = vset.pattern.permute.xlu0 0
        %768 = vperm.xlu0 %767, %v750
        %v769 = vpop.permute.xlu0 %768
        %772 = vset.pattern.permute.xlu0 0
        %773 = vperm.xlu0 %772, %v751
        %v774 = vpop.permute.xlu0 %773
        %777 = vset.pattern.permute.xlu0 0
        %778 = vperm.xlu0 %777, %v752
        %v779 = vpop.permute.xlu0 %778
        %782 = vset.pattern.permute.xlu0 0
        %783 = vperm.xlu0 %782, %v753
        %v784 = vpop.permute.xlu0 %783
        %787 = vset.pattern.permute.xlu0 0
        %788 = vperm.xlu0 %787, %v754
        %v789 = vpop.permute.xlu0 %788
        %792 = vset.pattern.permute.xlu0 0
        %793 = vperm.xlu0 %792, %v755
        %v794 = vpop.permute.xlu0 %793
        %797 = vset.pattern.permute.xlu0 0
        %798 = vperm.xlu0 %797, %v756
        %v799 = vpop.permute.xlu0 %798
        %802 = vset.pattern.permute.xlu0 0
        %803 = vperm.xlu0 %802, %v757
        %v804 = vpop.permute.xlu0 %803
        %807 = vset.pattern.permute.xlu0 0
        %808 = vperm.xlu0 %807, %v758
        %v809 = vpop.permute.xlu0 %808
        %812 = vset.pattern.permute.xlu0 0
        %813 = vperm.xlu0 %812, %v759
        %v814 = vpop.permute.xlu0 %813
        %817 = vset.pattern.permute.xlu0 0
        %818 = vperm.xlu0 %817, %v760
        %v819 = vpop.permute.xlu0 %818
        %v833 = vunpack.c.l.b16 %v735
        %v834 = vunpack.c.l.b16 %v736
        %v835 = vunpack.c.l.b16 %v737
        %v836 = vunpack.c.l.b16 %v738
        %v837 = vunpack.c.l.b16 %v739
        %v838 = vunpack.c.l.b16 %v740
        %v839 = vunpack.c.l.b16 %v741
        %v840 = vunpack.c.l.b16 %v742
        %v841 = vunpack.c.l.b16 %v743
        %v842 = vunpack.c.l.b16 %v744
        %v843 = vunpack.c.l.b16 %v745
        %v844 = vunpack.c.l.b16 %v746
        %v845 = vpack.c.b16 %v834, %v833
        %v846 = vpack.c.b16 %v836, %v835
        %v847 = vpack.c.b16 %v838, %v837
        %v848 = vpack.c.b16 %v840, %v839
        %v849 = vpack.c.b16 %v842, %v841
        %v850 = vpack.c.b16 %v844, %v843
        %vm851 = vcmask 261120
        %v853 = vsel %vm851, %v845, 0
        %v856 = vsel %vm851, %v846, 0
        %v859 = vsel %vm851, %v847, 0
        %v862 = vsel %vm851, %v848, 0
        %v865 = vsel %vm851, %v849, 0
        %v868 = vsel %vm851, %v850, 0
        %870 = vmatprep.subr.bf16.mxu0 0
        %871 = vmatpush1.bf16.msra.mxu0 %v747
        %872 = vmatprep.subr.bf16.mxu0 0
        %873 = vmatpush1.bf16.msra.mxu0 %v748
        %874 = vmatprep.subr.bf16.mxu0 0
        %875 = vmatpush1.bf16.msra.mxu0 0
        %876 = vmatprep.subr.bf16.mxu0 0
        %877 = vmatpush1.bf16.msra.mxu0 0
        %878 = vmatprep.subr.bf16.mxu0 0
        %879 = vmatpush1.bf16.msra.mxu0 0
        %880 = vmatprep.subr.bf16.mxu0 0
        %881 = vmatpush1.bf16.msra.mxu0 0
        %882 = vmatprep.subr.bf16.mxu0 0
        %883 = vmatpush1.bf16.msra.mxu0 0
        %884 = vmatprep.subr.bf16.mxu0 0
        %885 = vmatpush1.bf16.msra.mxu0 0
        %886 = vmatprep.subr.bf16.mxu0 0
        %887 = vmatpush1.bf16.msra.mxu0 0
        %888 = vmatprep.subr.bf16.mxu0 0
        %889 = vmatpush1.bf16.msra.mxu0 0
        %890 = vmatprep.subr.bf16.mxu0 0
        %891 = vmatpush1.bf16.msra.mxu0 0
        %892 = vmatprep.subr.bf16.mxu0 0
        %893 = vmatpush1.bf16.msra.mxu0 0
        %894 = vmatprep.subr.bf16.mxu0 0
        %895 = vmatpush1.bf16.msra.mxu0 0
        %896 = vmatprep.subr.bf16.mxu0 0
        %897 = vmatpush1.bf16.msra.mxu0 0
        %898 = vmatprep.subr.bf16.mxu0 0
        %899 = vmatpush1.bf16.msra.mxu0 0
        %900 = vmatprep.subr.bf16.mxu0 0
        %901 = vmatpush1.bf16.msra.mxu0 0
        %902 = vmatprep.mubr.bf16.mxu0 0
        %903 = vmatmul.mubr.bf16.gmra.mrb[0].mxu0 %v853
        %v904 = vpop.f32.mrb[0].mxu0
        %v905 = vadd.f32 %v764, %v904
        %v906 = vpop.f32.mrb[0].mxu0
        %v907 = vpop.f32.mrb[0].mxu0
        %v908 = vadd.f32 %v769, %v907
        %v909 = vpop.f32.mrb[0].mxu0
        %910 = vmatprep.mubr.bf16.mxu0 0
        %911 = vmatmul.mubr.bf16.gmra.mrb[0].mxu0 %v856
        %v912 = vpop.f32.mrb[0].mxu0
        %v913 = vadd.f32 %v774, %v912
        %v914 = vpop.f32.mrb[0].mxu0
        %v915 = vpop.f32.mrb[0].mxu0
        %v916 = vadd.f32 %v779, %v915
        %v917 = vpop.f32.mrb[0].mxu0
        %918 = vmatprep.mubr.bf16.mxu0 0
        %919 = vmatmul.mubr.bf16.gmra.mrb[0].mxu0 %v859
        %v920 = vpop.f32.mrb[0].mxu0
        %v921 = vadd.f32 %v784, %v920
        %v922 = vpop.f32.mrb[0].mxu0
        %v923 = vpop.f32.mrb[0].mxu0
        %v924 = vadd.f32 %v789, %v923
        %v925 = vpop.f32.mrb[0].mxu0
        %926 = vmatprep.mubr.bf16.mxu0 0
        %927 = vmatmul.mubr.bf16.gmra.mrb[0].mxu0 %v862
        %v928 = vpop.f32.mrb[0].mxu0
        %v929 = vadd.f32 %v794, %v928
        %v930 = vpop.f32.mrb[0].mxu0
        %v931 = vpop.f32.mrb[0].mxu0
        %v932 = vadd.f32 %v799, %v931
        %v933 = vpop.f32.mrb[0].mxu0
        %934 = vmatprep.mubr.bf16.mxu0 0
        %935 = vmatmul.mubr.bf16.gmra.mrb[0].mxu0 %v865
        %v936 = vpop.f32.mrb[0].mxu0
        %v937 = vadd.f32 %v804, %v936
        %v938 = vpop.f32.mrb[0].mxu0
        %v939 = vpop.f32.mrb[0].mxu0
        %v940 = vadd.f32 %v809, %v939
        %v941 = vpop.f32.mrb[0].mxu0
        %942 = vmatprep.mubr.bf16.mxu0 0
        %943 = vmatmul.mubr.bf16.gmra.mrb[0].mxu0 %v868
        %v944 = vpop.f32.mrb[0].mxu0
        %v945 = vadd.f32 %v814, %v944
        %v946 = vpop.f32.mrb[0].mxu0
        %v947 = vpop.f32.mrb[0].mxu0
        %v948 = vadd.f32 %v819, %v947
        %v949 = vpop.f32.mrb[0].mxu0
        %950 = vdwg.mxu0
        %951 = vxpose.xlu0.b32.start [1/16] %v905, 128
        %952 = vxpose.xlu0.b32.cont [2/16] 0.0, 128
        %953 = vxpose.xlu0.b32.cont [3/16] 0.0, 128
        %954 = vxpose.xlu0.b32.cont [4/16] 0.0, 128
        %955 = vxpose.xlu0.b32.cont [5/16] 0.0, 128
        %956 = vxpose.xlu0.b32.cont [6/16] 0.0, 128
        %957 = vxpose.xlu0.b32.cont [7/16] 0.0, 128
        %958 = vxpose.xlu0.b32.cont [8/16] 0.0, 128
        %959 = vxpose.xlu0.b32.cont [9/16] 0.0, 128
        %960 = vxpose.xlu0.b32.cont [10/16] 0.0, 128
        %961 = vxpose.xlu0.b32.cont [11/16] 0.0, 128
        %962 = vxpose.xlu0.b32.cont [12/16] 0.0, 128
        %963 = vxpose.xlu0.b32.cont [13/16] 0.0, 128
        %964 = vxpose.xlu0.b32.cont [14/16] 0.0, 128
        %965 = vxpose.xlu0.b32.cont [15/16] 0.0, 128
        %966 = vxpose.xlu0.b32.end [16/16] 0.0, 128
        %v967 = vpop.trf.xlu0
        %v968 = vpop.trf.xlu0
        %v969 = vpop.trf.xlu0
        %v970 = vpop.trf.xlu0
        %v971 = vpop.trf.xlu0
        %v972 = vpop.trf.xlu0
        %v973 = vpop.trf.xlu0
        %v974 = vpop.trf.xlu0
        %v975 = vpop.trf.xlu0
        %v976 = vpop.trf.xlu0
        %v977 = vpop.trf.xlu0
        %v978 = vpop.trf.xlu0
        %v979 = vpop.trf.xlu0
        %v980 = vpop.trf.xlu0
        %v981 = vpop.trf.xlu0
        %v982 = vpop.trf.xlu0
        %983 = vxpose.xlu0.b32.start [1/16] %v908, 128
        %984 = vxpose.xlu0.b32.cont [2/16] 0.0, 128
        %985 = vxpose.xlu0.b32.cont [3/16] 0.0, 128
        %986 = vxpose.xlu0.b32.cont [4/16] 0.0, 128
        %987 = vxpose.xlu0.b32.cont [5/16] 0.0, 128
        %988 = vxpose.xlu0.b32.cont [6/16] 0.0, 128
        %989 = vxpose.xlu0.b32.cont [7/16] 0.0, 128
        %990 = vxpose.xlu0.b32.cont [8/16] 0.0, 128
        %991 = vxpose.xlu0.b32.cont [9/16] 0.0, 128
        %992 = vxpose.xlu0.b32.cont [10/16] 0.0, 128
        %993 = vxpose.xlu0.b32.cont [11/16] 0.0, 128
        %994 = vxpose.xlu0.b32.cont [12/16] 0.0, 128
        %995 = vxpose.xlu0.b32.cont [13/16] 0.0, 128
        %996 = vxpose.xlu0.b32.cont [14/16] 0.0, 128
        %997 = vxpose.xlu0.b32.cont [15/16] 0.0, 128
        %998 = vxpose.xlu0.b32.end [16/16] 0.0, 128
        %v999 = vpop.trf.xlu0
        %v1000 = vpop.trf.xlu0
        %v1001 = vpop.trf.xlu0
        %v1002 = vpop.trf.xlu0
        %v1003 = vpop.trf.xlu0
        %v1004 = vpop.trf.xlu0
        %v1005 = vpop.trf.xlu0
        %v1006 = vpop.trf.xlu0
        %v1007 = vpop.trf.xlu0
        %v1008 = vpop.trf.xlu0
        %v1009 = vpop.trf.xlu0
        %v1010 = vpop.trf.xlu0
        %v1011 = vpop.trf.xlu0
        %v1012 = vpop.trf.xlu0
        %v1013 = vpop.trf.xlu0
        %v1014 = vpop.trf.xlu0
        %1015 = vxpose.xlu0.b32.start [1/16] %v913, 128
        %1016 = vxpose.xlu0.b32.cont [2/16] 0.0, 128
        %1017 = vxpose.xlu0.b32.cont [3/16] 0.0, 128
        %1018 = vxpose.xlu0.b32.cont [4/16] 0.0, 128
        %1019 = vxpose.xlu0.b32.cont [5/16] 0.0, 128
        %1020 = vxpose.xlu0.b32.cont [6/16] 0.0, 128
        %1021 = vxpose.xlu0.b32.cont [7/16] 0.0, 128
        %1022 = vxpose.xlu0.b32.cont [8/16] 0.0, 128
        %1023 = vxpose.xlu0.b32.cont [9/16] 0.0, 128
        %1024 = vxpose.xlu0.b32.cont [10/16] 0.0, 128
        %1025 = vxpose.xlu0.b32.cont [11/16] 0.0, 128
        %1026 = vxpose.xlu0.b32.cont [12/16] 0.0, 128
        %1027 = vxpose.xlu0.b32.cont [13/16] 0.0, 128
        %1028 = vxpose.xlu0.b32.cont [14/16] 0.0, 128
        %1029 = vxpose.xlu0.b32.cont [15/16] 0.0, 128
        %1030 = vxpose.xlu0.b32.end [16/16] 0.0, 128
        %v1031 = vpop.trf.xlu0
        %v1032 = vpop.trf.xlu0
        %v1033 = vpop.trf.xlu0
        %v1034 = vpop.trf.xlu0
        %v1035 = vpop.trf.xlu0
        %v1036 = vpop.trf.xlu0
        %v1037 = vpop.trf.xlu0
        %v1038 = vpop.trf.xlu0
        %v1039 = vpop.trf.xlu0
        %v1040 = vpop.trf.xlu0
        %v1041 = vpop.trf.xlu0
        %v1042 = vpop.trf.xlu0
        %v1043 = vpop.trf.xlu0
        %v1044 = vpop.trf.xlu0
        %v1045 = vpop.trf.xlu0
        %v1046 = vpop.trf.xlu0
        %1047 = vxpose.xlu0.b32.start [1/16] %v916, 128
        %1048 = vxpose.xlu0.b32.cont [2/16] 0.0, 128
        %1049 = vxpose.xlu0.b32.cont [3/16] 0.0, 128
        %1050 = vxpose.xlu0.b32.cont [4/16] 0.0, 128
        %1051 = vxpose.xlu0.b32.cont [5/16] 0.0, 128
        %1052 = vxpose.xlu0.b32.cont [6/16] 0.0, 128
        %1053 = vxpose.xlu0.b32.cont [7/16] 0.0, 128
        %1054 = vxpose.xlu0.b32.cont [8/16] 0.0, 128
        %1055 = vxpose.xlu0.b32.cont [9/16] 0.0, 128
        %1056 = vxpose.xlu0.b32.cont [10/16] 0.0, 128
        %1057 = vxpose.xlu0.b32.cont [11/16] 0.0, 128
        %1058 = vxpose.xlu0.b32.cont [12/16] 0.0, 128
        %1059 = vxpose.xlu0.b32.cont [13/16] 0.0, 128
        %1060 = vxpose.xlu0.b32.cont [14/16] 0.0, 128
        %1061 = vxpose.xlu0.b32.cont [15/16] 0.0, 128
        %1062 = vxpose.xlu0.b32.end [16/16] 0.0, 128
        %v1063 = vpop.trf.xlu0
        %v1064 = vpop.trf.xlu0
        %v1065 = vpop.trf.xlu0
        %v1066 = vpop.trf.xlu0
        %v1067 = vpop.trf.xlu0
        %v1068 = vpop.trf.xlu0
        %v1069 = vpop.trf.xlu0
        %v1070 = vpop.trf.xlu0
        %v1071 = vpop.trf.xlu0
        %v1072 = vpop.trf.xlu0
        %v1073 = vpop.trf.xlu0
        %v1074 = vpop.trf.xlu0
        %v1075 = vpop.trf.xlu0
        %v1076 = vpop.trf.xlu0
        %v1077 = vpop.trf.xlu0
        %v1078 = vpop.trf.xlu0
        %vm1079 = vcmask 64512
        %v1081 = vsel %vm1079, %v967, 0
        %1083 = vmatprep.subr.mxu0 0.0
        %1084 = vmatpush1.msra.mxu0 %v921
        %1085 = vmatprep.subr.mxu0 0.0
        %1086 = vmatpush1.msra.mxu0 0.0
        %1087 = vmatprep.subr.mxu0 0.0
        %1088 = vmatpush1.msra.mxu0 0.0
        %1089 = vmatprep.subr.mxu0 0.0
        %1090 = vmatpush1.msra.mxu0 0.0
        %1091 = vmatprep.subr.mxu0 0.0
        %1092 = vmatpush1.msra.mxu0 0.0
        %1093 = vmatprep.subr.mxu0 0.0
        %1094 = vmatpush1.msra.mxu0 0.0
        %1095 = vmatprep.subr.mxu0 0.0
        %1096 = vmatpush1.msra.mxu0 0.0
        %1097 = vmatprep.subr.mxu0 0.0
        %1098 = vmatpush1.msra.mxu0 0.0
        %1099 = vmatprep.subr.mxu0 0.0
        %1100 = vmatpush1.msra.mxu0 0.0
        %1101 = vmatprep.subr.mxu0 0.0
        %1102 = vmatpush1.msra.mxu0 0.0
        %1103 = vmatprep.subr.mxu0 0.0
        %1104 = vmatpush1.msra.mxu0 0.0
        %1105 = vmatprep.subr.mxu0 0.0
        %1106 = vmatpush1.msra.mxu0 0.0
        %1107 = vmatprep.subr.mxu0 0.0
        %1108 = vmatpush1.msra.mxu0 0.0
        %1109 = vmatprep.subr.mxu0 0.0
        %1110 = vmatpush1.msra.mxu0 0.0
        %1111 = vmatprep.subr.mxu0 0.0
        %1112 = vmatpush1.msra.mxu0 0.0
        %1113 = vmatprep.subr.mxu0 0.0
        %1114 = vmatpush1.msra.mxu0 0.0
        %1115 = vmatprep.subr.mxu0 0.0
        %1116 = vmatpush1.msra.mxu0 0.0
        %1117 = vmatprep.subr.mxu0 0.0
        %1118 = vmatpush1.msra.mxu0 0.0
        %1119 = vmatprep.subr.mxu0 0.0
        %1120 = vmatpush1.msra.mxu0 0.0
        %1121 = vmatprep.subr.mxu0 0.0
        %1122 = vmatpush1.msra.mxu0 0.0
        %1123 = vmatprep.subr.mxu0 0.0
        %1124 = vmatpush1.msra.mxu0 0.0
        %1125 = vmatprep.subr.mxu0 0.0
        %1126 = vmatpush1.msra.mxu0 0.0
        %1127 = vmatprep.subr.mxu0 0.0
        %1128 = vmatpush1.msra.mxu0 0.0
        %1129 = vmatprep.subr.mxu0 0.0
        %1130 = vmatpush1.msra.mxu0 0.0
        %1131 = vmatprep.subr.mxu0 0.0
        %1132 = vmatpush1.msra.mxu0 0.0
        %1133 = vmatprep.subr.mxu0 0.0
        %1134 = vmatpush1.msra.mxu0 0.0
        %1135 = vmatprep.subr.mxu0 0.0
        %1136 = vmatpush1.msra.mxu0 0.0
        %1137 = vmatprep.subr.mxu0 0.0
        %1138 = vmatpush1.msra.mxu0 0.0
        %1139 = vmatprep.subr.mxu0 0.0
        %1140 = vmatpush1.msra.mxu0 0.0
        %1141 = vmatprep.subr.mxu0 0.0
        %1142 = vmatpush1.msra.mxu0 0.0
        %1143 = vmatprep.subr.mxu0 0.0
        %1144 = vmatpush1.msra.mxu0 0.0
        %1145 = vmatprep.subr.mxu0 0.0
        %1146 = vmatpush1.msra.mxu0 0.0
        %1147 = vmatprep.mubr.f32.mxu0 0.0
        %1148 = vmatmul.mubr.f32.gmra.mrb[0].mxu0 %v1081
        %v1149 = vpop.f32.mrb[0].mxu0
        %v1150 = vadd.f32 0.0, %v1149
        %v1151 = vpop.f32.mrb[0].mxu0
        %1152 = vdwg.mxu0
        %v1154 = vsel %vm1079, %v999, 0
        %1156 = vmatprep.subr.mxu0 0.0
        %1157 = vmatpush1.msra.mxu0 %v924
        %1158 = vmatprep.subr.mxu0 0.0
        %1159 = vmatpush1.msra.mxu0 0.0
        %1160 = vmatprep.subr.mxu0 0.0
        %1161 = vmatpush1.msra.mxu0 0.0
        %1162 = vmatprep.subr.mxu0 0.0
        %1163 = vmatpush1.msra.mxu0 0.0
        %1164 = vmatprep.subr.mxu0 0.0
        %1165 = vmatpush1.msra.mxu0 0.0
        %1166 = vmatprep.subr.mxu0 0.0
        %1167 = vmatpush1.msra.mxu0 0.0
        %1168 = vmatprep.subr.mxu0 0.0
        %1169 = vmatpush1.msra.mxu0 0.0
        %1170 = vmatprep.subr.mxu0 0.0
        %1171 = vmatpush1.msra.mxu0 0.0
        %1172 = vmatprep.subr.mxu0 0.0
        %1173 = vmatpush1.msra.mxu0 0.0
        %1174 = vmatprep.subr.mxu0 0.0
        %1175 = vmatpush1.msra.mxu0 0.0
        %1176 = vmatprep.subr.mxu0 0.0
        %1177 = vmatpush1.msra.mxu0 0.0
        %1178 = vmatprep.subr.mxu0 0.0
        %1179 = vmatpush1.msra.mxu0 0.0
        %1180 = vmatprep.subr.mxu0 0.0
        %1181 = vmatpush1.msra.mxu0 0.0
        %1182 = vmatprep.subr.mxu0 0.0
        %1183 = vmatpush1.msra.mxu0 0.0
        %1184 = vmatprep.subr.mxu0 0.0
        %1185 = vmatpush1.msra.mxu0 0.0
        %1186 = vmatprep.subr.mxu0 0.0
        %1187 = vmatpush1.msra.mxu0 0.0
        %1188 = vmatprep.subr.mxu0 0.0
        %1189 = vmatpush1.msra.mxu0 0.0
        %1190 = vmatprep.subr.mxu0 0.0
        %1191 = vmatpush1.msra.mxu0 0.0
        %1192 = vmatprep.subr.mxu0 0.0
        %1193 = vmatpush1.msra.mxu0 0.0
        %1194 = vmatprep.subr.mxu0 0.0
        %1195 = vmatpush1.msra.mxu0 0.0
        %1196 = vmatprep.subr.mxu0 0.0
        %1197 = vmatpush1.msra.mxu0 0.0
        %1198 = vmatprep.subr.mxu0 0.0
        %1199 = vmatpush1.msra.mxu0 0.0
        %1200 = vmatprep.subr.mxu0 0.0
        %1201 = vmatpush1.msra.mxu0 0.0
        %1202 = vmatprep.subr.mxu0 0.0
        %1203 = vmatpush1.msra.mxu0 0.0
        %1204 = vmatprep.subr.mxu0 0.0
        %1205 = vmatpush1.msra.mxu0 0.0
        %1206 = vmatprep.subr.mxu0 0.0
        %1207 = vmatpush1.msra.mxu0 0.0
        %1208 = vmatprep.subr.mxu0 0.0
        %1209 = vmatpush1.msra.mxu0 0.0
        %1210 = vmatprep.subr.mxu0 0.0
        %1211 = vmatpush1.msra.mxu0 0.0
        %1212 = vmatprep.subr.mxu0 0.0
        %1213 = vmatpush1.msra.mxu0 0.0
        %1214 = vmatprep.subr.mxu0 0.0
        %1215 = vmatpush1.msra.mxu0 0.0
        %1216 = vmatprep.subr.mxu0 0.0
        %1217 = vmatpush1.msra.mxu0 0.0
        %1218 = vmatprep.subr.mxu0 0.0
        %1219 = vmatpush1.msra.mxu0 0.0
        %1220 = vmatprep.mubr.f32.mxu0 0.0
        %1221 = vmatmul.mubr.f32.gmra.mrb[0].mxu0 %v1154
        %v1222 = vpop.f32.mrb[0].mxu0
        %v1223 = vadd.f32 0.0, %v1222
        %v1224 = vpop.f32.mrb[0].mxu0
        %1225 = vdwg.mxu0
        %v1227 = vsel %vm1079, %v1031, 0
        %1229 = vmatprep.subr.mxu0 0.0
        %1230 = vmatpush1.msra.mxu0 %v929
        %1231 = vmatprep.subr.mxu0 0.0
        %1232 = vmatpush1.msra.mxu0 0.0
        %1233 = vmatprep.subr.mxu0 0.0
        %1234 = vmatpush1.msra.mxu0 0.0
        %1235 = vmatprep.subr.mxu0 0.0
        %1236 = vmatpush1.msra.mxu0 0.0
        %1237 = vmatprep.subr.mxu0 0.0
        %1238 = vmatpush1.msra.mxu0 0.0
        %1239 = vmatprep.subr.mxu0 0.0
        %1240 = vmatpush1.msra.mxu0 0.0
        %1241 = vmatprep.subr.mxu0 0.0
        %1242 = vmatpush1.msra.mxu0 0.0
        %1243 = vmatprep.subr.mxu0 0.0
        %1244 = vmatpush1.msra.mxu0 0.0
        %1245 = vmatprep.subr.mxu0 0.0
        %1246 = vmatpush1.msra.mxu0 0.0
        %1247 = vmatprep.subr.mxu0 0.0
        %1248 = vmatpush1.msra.mxu0 0.0
        %1249 = vmatprep.subr.mxu0 0.0
        %1250 = vmatpush1.msra.mxu0 0.0
        %1251 = vmatprep.subr.mxu0 0.0
        %1252 = vmatpush1.msra.mxu0 0.0
        %1253 = vmatprep.subr.mxu0 0.0
        %1254 = vmatpush1.msra.mxu0 0.0
        %1255 = vmatprep.subr.mxu0 0.0
        %1256 = vmatpush1.msra.mxu0 0.0
        %1257 = vmatprep.subr.mxu0 0.0
        %1258 = vmatpush1.msra.mxu0 0.0
        %1259 = vmatprep.subr.mxu0 0.0
        %1260 = vmatpush1.msra.mxu0 0.0
        %1261 = vmatprep.subr.mxu0 0.0
        %1262 = vmatpush1.msra.mxu0 0.0
        %1263 = vmatprep.subr.mxu0 0.0
        %1264 = vmatpush1.msra.mxu0 0.0
        %1265 = vmatprep.subr.mxu0 0.0
        %1266 = vmatpush1.msra.mxu0 0.0
        %1267 = vmatprep.subr.mxu0 0.0
        %1268 = vmatpush1.msra.mxu0 0.0
        %1269 = vmatprep.subr.mxu0 0.0
        %1270 = vmatpush1.msra.mxu0 0.0
        %1271 = vmatprep.subr.mxu0 0.0
        %1272 = vmatpush1.msra.mxu0 0.0
        %1273 = vmatprep.subr.mxu0 0.0
        %1274 = vmatpush1.msra.mxu0 0.0
        %1275 = vmatprep.subr.mxu0 0.0
        %1276 = vmatpush1.msra.mxu0 0.0
        %1277 = vmatprep.subr.mxu0 0.0
        %1278 = vmatpush1.msra.mxu0 0.0
        %1279 = vmatprep.subr.mxu0 0.0
        %1280 = vmatpush1.msra.mxu0 0.0
        %1281 = vmatprep.subr.mxu0 0.0
        %1282 = vmatpush1.msra.mxu0 0.0
        %1283 = vmatprep.subr.mxu0 0.0
        %1284 = vmatpush1.msra.mxu0 0.0
        %1285 = vmatprep.subr.mxu0 0.0
        %1286 = vmatpush1.msra.mxu0 0.0
        %1287 = vmatprep.subr.mxu0 0.0
        %1288 = vmatpush1.msra.mxu0 0.0
        %1289 = vmatprep.subr.mxu0 0.0
        %1290 = vmatpush1.msra.mxu0 0.0
        %1291 = vmatprep.subr.mxu0 0.0
        %1292 = vmatpush1.msra.mxu0 0.0
        %1293 = vmatprep.mubr.f32.mxu0 0.0
        %1294 = vmatmul.mubr.f32.gmra.mrb[0].mxu0 %v1227
        %v1295 = vpop.f32.mrb[0].mxu0
        %v1296 = vadd.f32 0.0, %v1295
        %v1297 = vpop.f32.mrb[0].mxu0
        %1298 = vdwg.mxu0
        %v1300 = vsel %vm1079, %v1063, 0
        %1302 = vmatprep.subr.mxu0 0.0
        %1303 = vmatpush1.msra.mxu0 %v932
        %1304 = vmatprep.subr.mxu0 0.0
        %1305 = vmatpush1.msra.mxu0 0.0
        %1306 = vmatprep.subr.mxu0 0.0
        %1307 = vmatpush1.msra.mxu0 0.0
        %1308 = vmatprep.subr.mxu0 0.0
        %1309 = vmatpush1.msra.mxu0 0.0
        %1310 = vmatprep.subr.mxu0 0.0
        %1311 = vmatpush1.msra.mxu0 0.0
        %1312 = vmatprep.subr.mxu0 0.0
        %1313 = vmatpush1.msra.mxu0 0.0
        %1314 = vmatprep.subr.mxu0 0.0
        %1315 = vmatpush1.msra.mxu0 0.0
        %1316 = vmatprep.subr.mxu0 0.0
        %1317 = vmatpush1.msra.mxu0 0.0
        %1318 = vmatprep.subr.mxu0 0.0
        %1319 = vmatpush1.msra.mxu0 0.0
        %1320 = vmatprep.subr.mxu0 0.0
        %1321 = vmatpush1.msra.mxu0 0.0
        %1322 = vmatprep.subr.mxu0 0.0
        %1323 = vmatpush1.msra.mxu0 0.0
        %1324 = vmatprep.subr.mxu0 0.0
        %1325 = vmatpush1.msra.mxu0 0.0
        %1326 = vmatprep.subr.mxu0 0.0
        %1327 = vmatpush1.msra.mxu0 0.0
        %1328 = vmatprep.subr.mxu0 0.0
        %1329 = vmatpush1.msra.mxu0 0.0
        %1330 = vmatprep.subr.mxu0 0.0
        %1331 = vmatpush1.msra.mxu0 0.0
        %1332 = vmatprep.subr.mxu0 0.0
        %1333 = vmatpush1.msra.mxu0 0.0
        %1334 = vmatprep.subr.mxu0 0.0
        %1335 = vmatpush1.msra.mxu0 0.0
        %1336 = vmatprep.subr.mxu0 0.0
        %1337 = vmatpush1.msra.mxu0 0.0
        %1338 = vmatprep.subr.mxu0 0.0
        %1339 = vmatpush1.msra.mxu0 0.0
        %1340 = vmatprep.subr.mxu0 0.0
        %1341 = vmatpush1.msra.mxu0 0.0
        %1342 = vmatprep.subr.mxu0 0.0
        %1343 = vmatpush1.msra.mxu0 0.0
        %1344 = vmatprep.subr.mxu0 0.0
        %1345 = vmatpush1.msra.mxu0 0.0
        %1346 = vmatprep.subr.mxu0 0.0
        %1347 = vmatpush1.msra.mxu0 0.0
        %1348 = vmatprep.subr.mxu0 0.0
        %1349 = vmatpush1.msra.mxu0 0.0
        %1350 = vmatprep.subr.mxu0 0.0
        %1351 = vmatpush1.msra.mxu0 0.0
        %1352 = vmatprep.subr.mxu0 0.0
        %1353 = vmatpush1.msra.mxu0 0.0
        %1354 = vmatprep.subr.mxu0 0.0
        %1355 = vmatpush1.msra.mxu0 0.0
        %1356 = vmatprep.subr.mxu0 0.0
        %1357 = vmatpush1.msra.mxu0 0.0
        %1358 = vmatprep.subr.mxu0 0.0
        %1359 = vmatpush1.msra.mxu0 0.0
        %1360 = vmatprep.subr.mxu0 0.0
        %1361 = vmatpush1.msra.mxu0 0.0
        %1362 = vmatprep.subr.mxu0 0.0
        %1363 = vmatpush1.msra.mxu0 0.0
        %1364 = vmatprep.subr.mxu0 0.0
        %1365 = vmatpush1.msra.mxu0 0.0
        %1366 = vmatprep.mubr.f32.mxu0 0.0
        %1367 = vmatmul.mubr.f32.gmra.mrb[0].mxu0 %v1300
        %v1368 = vpop.f32.mrb[0].mxu0
        %v1369 = vadd.f32 0.0, %v1368
        %v1370 = vpop.f32.mrb[0].mxu0
        %1371 = vdwg.mxu0
        %v1372 = vsel %vm1079, %v1150, -inf
        %1373 = vmax.xlane.f32.xlu0 %v1372
        %v1374 = vpop.xlane.xlu0 %1373
        %v1375 = vsel %vm1079, %v1223, -inf
        %1376 = vmax.xlane.f32.xlu0 %v1375
        %v1377 = vpop.xlane.xlu0 %1376
        %v1378 = vsel %vm1079, %v1296, -inf
        %1379 = vmax.xlane.f32.xlu0 %v1378
        %v1380 = vpop.xlane.xlu0 %1379
        %v1381 = vsel %vm1079, %v1369, -inf
        %1382 = vmax.xlane.f32.xlu0 %v1381
        %v1383 = vpop.xlane.xlu0 %1382
        %v1384 = vsub.f32 %v1150, %v1374
        %v1385 = vsub.f32 %v1223, %v1377
        %v1386 = vsub.f32 %v1296, %v1380
        %v1387 = vsub.f32 %v1369, %v1383
        %v1388 = vmul.f32 %v1384, 1.442695
        %v1389 = vpow.pop %v1388
        %v1390 = vmul.f32 %v1385, 1.442695
        %v1391 = vpow.pop %v1390
        %v1392 = vmul.f32 %v1386, 1.442695
        %v1393 = vpow.pop %v1392
        %v1394 = vmul.f32 %v1387, 1.442695
        %v1395 = vpow.pop %v1394
        %v1396 = vsel %vm1079, %v1389, 0.0
        %1397 = vadd.xlane.f32.xlu0 %v1396
        %v1398 = vpop.xlane.xlu0 %1397
        %v1399 = vsel %vm1079, %v1391, 0.0
        %1400 = vadd.xlane.f32.xlu0 %v1399
        %v1401 = vpop.xlane.xlu0 %1400
        %v1402 = vsel %vm1079, %v1393, 0.0
        %1403 = vadd.xlane.f32.xlu0 %v1402
        %v1404 = vpop.xlane.xlu0 %1403
        %v1405 = vsel %vm1079, %v1395, 0.0
        %1406 = vadd.xlane.f32.xlu0 %v1405
        %v1407 = vpop.xlane.xlu0 %1406
        %v1408 = vrcp.pop %v1398
        %v1409 = vrcp.pop %v1401
        %v1410 = vrcp.pop %v1404
        %v1411 = vrcp.pop %v1407
        %v1412 = vmul.f32 %v1389, %v1408
        %v1413 = vmul.f32 %v1391, %v1409
        %v1414 = vmul.f32 %v1393, %v1410
        %v1415 = vmul.f32 %v1395, %v1411
        %v1417 = vsel %vm1079, %v937, 0
        %v1420 = vsel %vm1079, %v1412, 0
        %1422 = vmatprep.subr.mxu0 0.0
        %1423 = vmatpush1.xpose.msra.mxu0 %v1420
        %1424 = vmatprep.subr.mxu0 0.0
        %1425 = vmatpush1.xpose.msra.mxu0 0.0
        %1426 = vmatprep.subr.mxu0 0.0
        %1427 = vmatpush1.xpose.msra.mxu0 0.0
        %1428 = vmatprep.subr.mxu0 0.0
        %1429 = vmatpush1.xpose.msra.mxu0 0.0
        %1430 = vmatprep.subr.mxu0 0.0
        %1431 = vmatpush1.xpose.msra.mxu0 0.0
        %1432 = vmatprep.subr.mxu0 0.0
        %1433 = vmatpush1.xpose.msra.mxu0 0.0
        %1434 = vmatprep.subr.mxu0 0.0
        %1435 = vmatpush1.xpose.msra.mxu0 0.0
        %1436 = vmatprep.subr.mxu0 0.0
        %1437 = vmatpush1.xpose.msra.mxu0 0.0
        %1438 = vmatprep.subr.mxu0 0.0
        %1439 = vmatpush1.xpose.msra.mxu0 0.0
        %1440 = vmatprep.subr.mxu0 0.0
        %1441 = vmatpush1.xpose.msra.mxu0 0.0
        %1442 = vmatprep.subr.mxu0 0.0
        %1443 = vmatpush1.xpose.msra.mxu0 0.0
        %1444 = vmatprep.subr.mxu0 0.0
        %1445 = vmatpush1.xpose.msra.mxu0 0.0
        %1446 = vmatprep.subr.mxu0 0.0
        %1447 = vmatpush1.xpose.msra.mxu0 0.0
        %1448 = vmatprep.subr.mxu0 0.0
        %1449 = vmatpush1.xpose.msra.mxu0 0.0
        %1450 = vmatprep.subr.mxu0 0.0
        %1451 = vmatpush1.xpose.msra.mxu0 0.0
        %1452 = vmatprep.subr.mxu0 0.0
        %1453 = vmatpush1.xpose.msra.mxu0 0.0
        %1454 = vmatprep.subr.mxu0 0.0
        %1455 = vmatpush1.xpose.msra.mxu0 0.0
        %1456 = vmatprep.subr.mxu0 0.0
        %1457 = vmatpush1.xpose.msra.mxu0 0.0
        %1458 = vmatprep.subr.mxu0 0.0
        %1459 = vmatpush1.xpose.msra.mxu0 0.0
        %1460 = vmatprep.subr.mxu0 0.0
        %1461 = vmatpush1.xpose.msra.mxu0 0.0
        %1462 = vmatprep.subr.mxu0 0.0
        %1463 = vmatpush1.xpose.msra.mxu0 0.0
        %1464 = vmatprep.subr.mxu0 0.0
        %1465 = vmatpush1.xpose.msra.mxu0 0.0
        %1466 = vmatprep.subr.mxu0 0.0
        %1467 = vmatpush1.xpose.msra.mxu0 0.0
        %1468 = vmatprep.subr.mxu0 0.0
        %1469 = vmatpush1.xpose.msra.mxu0 0.0
        %1470 = vmatprep.subr.mxu0 0.0
        %1471 = vmatpush1.xpose.msra.mxu0 0.0
        %1472 = vmatprep.subr.mxu0 0.0
        %1473 = vmatpush1.xpose.msra.mxu0 0.0
        %1474 = vmatprep.subr.mxu0 0.0
        %1475 = vmatpush1.xpose.msra.mxu0 0.0
        %1476 = vmatprep.subr.mxu0 0.0
        %1477 = vmatpush1.xpose.msra.mxu0 0.0
        %1478 = vmatprep.subr.mxu0 0.0
        %1479 = vmatpush1.xpose.msra.mxu0 0.0
        %1480 = vmatprep.subr.mxu0 0.0
        %1481 = vmatpush1.xpose.msra.mxu0 0.0
        %1482 = vmatprep.subr.mxu0 0.0
        %1483 = vmatpush1.xpose.msra.mxu0 0.0
        %1484 = vmatprep.subr.mxu0 0.0
        %1485 = vmatpush1.xpose.msra.mxu0 0.0
        %1486 = vmatprep.mubr.f32.mxu0 0.0
        %1487 = vmatmul.mubr.f32.gmra.mrb[0].mxu0 %v1417
        %v1488 = vpop.f32.mrb[0].mxu0
        %v1489 = vadd.f32 0.0, %v1488
        %v1490 = vpop.f32.mrb[0].mxu0
        %1491 = vdwg.mxu0
        %v1493 = vsel %vm1079, %v940, 0
        %v1496 = vsel %vm1079, %v1413, 0
        %1498 = vmatprep.subr.mxu0 0.0
        %1499 = vmatpush1.xpose.msra.mxu0 %v1496
        %1500 = vmatprep.subr.mxu0 0.0
        %1501 = vmatpush1.xpose.msra.mxu0 0.0
        %1502 = vmatprep.subr.mxu0 0.0
        %1503 = vmatpush1.xpose.msra.mxu0 0.0
        %1504 = vmatprep.subr.mxu0 0.0
        %1505 = vmatpush1.xpose.msra.mxu0 0.0
        %1506 = vmatprep.subr.mxu0 0.0
        %1507 = vmatpush1.xpose.msra.mxu0 0.0
        %1508 = vmatprep.subr.mxu0 0.0
        %1509 = vmatpush1.xpose.msra.mxu0 0.0
        %1510 = vmatprep.subr.mxu0 0.0
        %1511 = vmatpush1.xpose.msra.mxu0 0.0
        %1512 = vmatprep.subr.mxu0 0.0
        %1513 = vmatpush1.xpose.msra.mxu0 0.0
        %1514 = vmatprep.subr.mxu0 0.0
        %1515 = vmatpush1.xpose.msra.mxu0 0.0
        %1516 = vmatprep.subr.mxu0 0.0
        %1517 = vmatpush1.xpose.msra.mxu0 0.0
        %1518 = vmatprep.subr.mxu0 0.0
        %1519 = vmatpush1.xpose.msra.mxu0 0.0
        %1520 = vmatprep.subr.mxu0 0.0
        %1521 = vmatpush1.xpose.msra.mxu0 0.0
        %1522 = vmatprep.subr.mxu0 0.0
        %1523 = vmatpush1.xpose.msra.mxu0 0.0
        %1524 = vmatprep.subr.mxu0 0.0
        %1525 = vmatpush1.xpose.msra.mxu0 0.0
        %1526 = vmatprep.subr.mxu0 0.0
        %1527 = vmatpush1.xpose.msra.mxu0 0.0
        %1528 = vmatprep.subr.mxu0 0.0
        %1529 = vmatpush1.xpose.msra.mxu0 0.0
        %1530 = vmatprep.subr.mxu0 0.0
        %1531 = vmatpush1.xpose.msra.mxu0 0.0
        %1532 = vmatprep.subr.mxu0 0.0
        %1533 = vmatpush1.xpose.msra.mxu0 0.0
        %1534 = vmatprep.subr.mxu0 0.0
        %1535 = vmatpush1.xpose.msra.mxu0 0.0
        %1536 = vmatprep.subr.mxu0 0.0
        %1537 = vmatpush1.xpose.msra.mxu0 0.0
        %1538 = vmatprep.subr.mxu0 0.0
        %1539 = vmatpush1.xpose.msra.mxu0 0.0
        %1540 = vmatprep.subr.mxu0 0.0
        %1541 = vmatpush1.xpose.msra.mxu0 0.0
        %1542 = vmatprep.subr.mxu0 0.0
        %1543 = vmatpush1.xpose.msra.mxu0 0.0
        %1544 = vmatprep.subr.mxu0 0.0
        %1545 = vmatpush1.xpose.msra.mxu0 0.0
        %1546 = vmatprep.subr.mxu0 0.0
        %1547 = vmatpush1.xpose.msra.mxu0 0.0
        %1548 = vmatprep.subr.mxu0 0.0
        %1549 = vmatpush1.xpose.msra.mxu0 0.0
        %1550 = vmatprep.subr.mxu0 0.0
        %1551 = vmatpush1.xpose.msra.mxu0 0.0
        %1552 = vmatprep.subr.mxu0 0.0
        %1553 = vmatpush1.xpose.msra.mxu0 0.0
        %1554 = vmatprep.subr.mxu0 0.0
        %1555 = vmatpush1.xpose.msra.mxu0 0.0
        %1556 = vmatprep.subr.mxu0 0.0
        %1557 = vmatpush1.xpose.msra.mxu0 0.0
        %1558 = vmatprep.subr.mxu0 0.0
        %1559 = vmatpush1.xpose.msra.mxu0 0.0
        %1560 = vmatprep.subr.mxu0 0.0
        %1561 = vmatpush1.xpose.msra.mxu0 0.0
        %1562 = vmatprep.mubr.f32.mxu0 0.0
        %1563 = vmatmul.mubr.f32.gmra.mrb[0].mxu0 %v1493
        %v1564 = vpop.f32.mrb[0].mxu0
        %v1565 = vadd.f32 0.0, %v1564
        %v1566 = vpop.f32.mrb[0].mxu0
        %1567 = vdwg.mxu0
        %v1569 = vsel %vm1079, %v945, 0
        %v1572 = vsel %vm1079, %v1414, 0
        %1574 = vmatprep.subr.mxu0 0.0
        %1575 = vmatpush1.xpose.msra.mxu0 %v1572
        %1576 = vmatprep.subr.mxu0 0.0
        %1577 = vmatpush1.xpose.msra.mxu0 0.0
        %1578 = vmatprep.subr.mxu0 0.0
        %1579 = vmatpush1.xpose.msra.mxu0 0.0
        %1580 = vmatprep.subr.mxu0 0.0
        %1581 = vmatpush1.xpose.msra.mxu0 0.0
        %1582 = vmatprep.subr.mxu0 0.0
        %1583 = vmatpush1.xpose.msra.mxu0 0.0
        %1584 = vmatprep.subr.mxu0 0.0
        %1585 = vmatpush1.xpose.msra.mxu0 0.0
        %1586 = vmatprep.subr.mxu0 0.0
        %1587 = vmatpush1.xpose.msra.mxu0 0.0
        %1588 = vmatprep.subr.mxu0 0.0
        %1589 = vmatpush1.xpose.msra.mxu0 0.0
        %1590 = vmatprep.subr.mxu0 0.0
        %1591 = vmatpush1.xpose.msra.mxu0 0.0
        %1592 = vmatprep.subr.mxu0 0.0
        %1593 = vmatpush1.xpose.msra.mxu0 0.0
        %1594 = vmatprep.subr.mxu0 0.0
        %1595 = vmatpush1.xpose.msra.mxu0 0.0
        %1596 = vmatprep.subr.mxu0 0.0
        %1597 = vmatpush1.xpose.msra.mxu0 0.0
        %1598 = vmatprep.subr.mxu0 0.0
        %1599 = vmatpush1.xpose.msra.mxu0 0.0
        %1600 = vmatprep.subr.mxu0 0.0
        %1601 = vmatpush1.xpose.msra.mxu0 0.0
        %1602 = vmatprep.subr.mxu0 0.0
        %1603 = vmatpush1.xpose.msra.mxu0 0.0
        %1604 = vmatprep.subr.mxu0 0.0
        %1605 = vmatpush1.xpose.msra.mxu0 0.0
        %1606 = vmatprep.subr.mxu0 0.0
        %1607 = vmatpush1.xpose.msra.mxu0 0.0
        %1608 = vmatprep.subr.mxu0 0.0
        %1609 = vmatpush1.xpose.msra.mxu0 0.0
        %1610 = vmatprep.subr.mxu0 0.0
        %1611 = vmatpush1.xpose.msra.mxu0 0.0
        %1612 = vmatprep.subr.mxu0 0.0
        %1613 = vmatpush1.xpose.msra.mxu0 0.0
        %1614 = vmatprep.subr.mxu0 0.0
        %1615 = vmatpush1.xpose.msra.mxu0 0.0
        %1616 = vmatprep.subr.mxu0 0.0
        %1617 = vmatpush1.xpose.msra.mxu0 0.0
        %1618 = vmatprep.subr.mxu0 0.0
        %1619 = vmatpush1.xpose.msra.mxu0 0.0
        %1620 = vmatprep.subr.mxu0 0.0
        %1621 = vmatpush1.xpose.msra.mxu0 0.0
        %1622 = vmatprep.subr.mxu0 0.0
        %1623 = vmatpush1.xpose.msra.mxu0 0.0
        %1624 = vmatprep.subr.mxu0 0.0
        %1625 = vmatpush1.xpose.msra.mxu0 0.0
        %1626 = vmatprep.subr.mxu0 0.0
        %1627 = vmatpush1.xpose.msra.mxu0 0.0
        %1628 = vmatprep.subr.mxu0 0.0
        %1629 = vmatpush1.xpose.msra.mxu0 0.0
        %1630 = vmatprep.subr.mxu0 0.0
        %1631 = vmatpush1.xpose.msra.mxu0 0.0
        %1632 = vmatprep.subr.mxu0 0.0
        %1633 = vmatpush1.xpose.msra.mxu0 0.0
        %1634 = vmatprep.subr.mxu0 0.0
        %1635 = vmatpush1.xpose.msra.mxu0 0.0
        %1636 = vmatprep.subr.mxu0 0.0
        %1637 = vmatpush1.xpose.msra.mxu0 0.0
        %1638 = vmatprep.mubr.f32.mxu0 0.0
        %1639 = vmatmul.mubr.f32.gmra.mrb[0].mxu0 %v1569
        %v1640 = vpop.f32.mrb[0].mxu0
        %v1641 = vadd.f32 0.0, %v1640
        %v1642 = vpop.f32.mrb[0].mxu0
        %1643 = vdwg.mxu0
        %v1645 = vsel %vm1079, %v948, 0
        %v1648 = vsel %vm1079, %v1415, 0
        %1650 = vmatprep.subr.mxu0 0.0
        %1651 = vmatpush1.xpose.msra.mxu0 %v1648
        %1652 = vmatprep.subr.mxu0 0.0
        %1653 = vmatpush1.xpose.msra.mxu0 0.0
        %1654 = vmatprep.subr.mxu0 0.0
        %1655 = vmatpush1.xpose.msra.mxu0 0.0
        %1656 = vmatprep.subr.mxu0 0.0
        %1657 = vmatpush1.xpose.msra.mxu0 0.0
        %1658 = vmatprep.subr.mxu0 0.0
        %1659 = vmatpush1.xpose.msra.mxu0 0.0
        %1660 = vmatprep.subr.mxu0 0.0
        %1661 = vmatpush1.xpose.msra.mxu0 0.0
        %1662 = vmatprep.subr.mxu0 0.0
        %1663 = vmatpush1.xpose.msra.mxu0 0.0
        %1664 = vmatprep.subr.mxu0 0.0
        %1665 = vmatpush1.xpose.msra.mxu0 0.0
        %1666 = vmatprep.subr.mxu0 0.0
        %1667 = vmatpush1.xpose.msra.mxu0 0.0
        %1668 = vmatprep.subr.mxu0 0.0
        %1669 = vmatpush1.xpose.msra.mxu0 0.0
        %1670 = vmatprep.subr.mxu0 0.0
        %1671 = vmatpush1.xpose.msra.mxu0 0.0
        %1672 = vmatprep.subr.mxu0 0.0
        %1673 = vmatpush1.xpose.msra.mxu0 0.0
        %1674 = vmatprep.subr.mxu0 0.0
        %1675 = vmatpush1.xpose.msra.mxu0 0.0
        %1676 = vmatprep.subr.mxu0 0.0
        %1677 = vmatpush1.xpose.msra.mxu0 0.0
        %1678 = vmatprep.subr.mxu0 0.0
        %1679 = vmatpush1.xpose.msra.mxu0 0.0
        %1680 = vmatprep.subr.mxu0 0.0
        %1681 = vmatpush1.xpose.msra.mxu0 0.0
        %1682 = vmatprep.subr.mxu0 0.0
        %1683 = vmatpush1.xpose.msra.mxu0 0.0
        %1684 = vmatprep.subr.mxu0 0.0
        %1685 = vmatpush1.xpose.msra.mxu0 0.0
        %1686 = vmatprep.subr.mxu0 0.0
        %1687 = vmatpush1.xpose.msra.mxu0 0.0
        %1688 = vmatprep.subr.mxu0 0.0
        %1689 = vmatpush1.xpose.msra.mxu0 0.0
        %1690 = vmatprep.subr.mxu0 0.0
        %1691 = vmatpush1.xpose.msra.mxu0 0.0
        %1692 = vmatprep.subr.mxu0 0.0
        %1693 = vmatpush1.xpose.msra.mxu0 0.0
        %1694 = vmatprep.subr.mxu0 0.0
        %1695 = vmatpush1.xpose.msra.mxu0 0.0
        %1696 = vmatprep.subr.mxu0 0.0
        %1697 = vmatpush1.xpose.msra.mxu0 0.0
        %1698 = vmatprep.subr.mxu0 0.0
        %1699 = vmatpush1.xpose.msra.mxu0 0.0
        %1700 = vmatprep.subr.mxu0 0.0
        %1701 = vmatpush1.xpose.msra.mxu0 0.0
        %1702 = vmatprep.subr.mxu0 0.0
        %1703 = vmatpush1.xpose.msra.mxu0 0.0
        %1704 = vmatprep.subr.mxu0 0.0
        %1705 = vmatpush1.xpose.msra.mxu0 0.0
        %1706 = vmatprep.subr.mxu0 0.0
        %1707 = vmatpush1.xpose.msra.mxu0 0.0
        %1708 = vmatprep.subr.mxu0 0.0
        %1709 = vmatpush1.xpose.msra.mxu0 0.0
        %1710 = vmatprep.subr.mxu0 0.0
        %1711 = vmatpush1.xpose.msra.mxu0 0.0
        %1712 = vmatprep.subr.mxu0 0.0
        %1713 = vmatpush1.xpose.msra.mxu0 0.0
        %1714 = vmatprep.mubr.f32.mxu0 0.0
        %1715 = vmatmul.mubr.f32.gmra.mrb[0].mxu0 %v1645
        %v1716 = vpop.f32.mrb[0].mxu0
        %v1717 = vadd.f32 0.0, %v1716
        %v1718 = vpop.f32.mrb[0].mxu0
        %1719 = vdwg.mxu0
        %v1720 = vld [vmem:[%s4] sm:$0xf]
        %v1721 = vld [vmem:[%s4 + $0x4] sm:$0xf]
        %v1722 = vld [vmem:[%s4 + $0x8] sm:$0xf]
        %v1723 = vld [vmem:[%s4 + $0xc] sm:$0xf]
        %v1724 = vpack.c.bf16 %v1565, %v1489
        %v1725 = vpack.c.bf16 %v1717, %v1641
        %v1726 = vld [vmem:[%s5] sm:$0xff]
        %v1727 = vld [vmem:[%s5 + $0x8] sm:$0xff]
        %v1728 = vld [vmem:[%s5 + $0x10] sm:$0xff]
        %v1729 = vld [vmem:[%s5 + $0x18] sm:$0xff]
        %1731 = vset.pattern.permute.xlu0 0
        %1732 = vperm.xlu0 %1731, %v1726
        %v1733 = vpop.permute.xlu0 %1732
        %1736 = vset.pattern.permute.xlu0 0
        %1737 = vperm.xlu0 %1736, %v1727
        %v1738 = vpop.permute.xlu0 %1737
        %1741 = vset.pattern.permute.xlu0 0
        %1742 = vperm.xlu0 %1741, %v1728
        %v1743 = vpop.permute.xlu0 %1742
        %1746 = vset.pattern.permute.xlu0 0
        %1747 = vperm.xlu0 %1746, %v1729
        %v1748 = vpop.permute.xlu0 %1747
        %v1754 = vunpack.c.l.b16 %v1720
        %v1755 = vunpack.c.l.b16 %v1721
        %v1756 = vunpack.c.l.b16 %v1722
        %v1757 = vunpack.c.l.b16 %v1723
        %v1758 = vpack.c.b16 %v1755, %v1754
        %v1759 = vpack.c.b16 %v1757, %v1756
        %v1761 = vsel %vm851, %v1758, 0
        %v1764 = vsel %vm851, %v1759, 0
        %1766 = vmatprep.subr.bf16.mxu0 0
        %1767 = vmatpush1.bf16.msra.mxu0 %v1724
        %1768 = vmatprep.subr.bf16.mxu0 0
        %1769 = vmatpush1.bf16.msra.mxu0 %v1725
        %1770 = vmatprep.subr.bf16.mxu0 0
        %1771 = vmatpush1.bf16.msra.mxu0 0
        %1772 = vmatprep.subr.bf16.mxu0 0
        %1773 = vmatpush1.bf16.msra.mxu0 0
        %1774 = vmatprep.subr.bf16.mxu0 0
        %1775 = vmatpush1.bf16.msra.mxu0 0
        %1776 = vmatprep.subr.bf16.mxu0 0
        %1777 = vmatpush1.bf16.msra.mxu0 0
        %1778 = vmatprep.subr.bf16.mxu0 0
        %1779 = vmatpush1.bf16.msra.mxu0 0
        %1780 = vmatprep.subr.bf16.mxu0 0
        %1781 = vmatpush1.bf16.msra.mxu0 0
        %1782 = vmatprep.subr.bf16.mxu0 0
        %1783 = vmatpush1.bf16.msra.mxu0 0
        %1784 = vmatprep.subr.bf16.mxu0 0
        %1785 = vmatpush1.bf16.msra.mxu0 0
        %1786 = vmatprep.subr.bf16.mxu0 0
        %1787 = vmatpush1.bf16.msra.mxu0 0
        %1788 = vmatprep.subr.bf16.mxu0 0
        %1789 = vmatpush1.bf16.msra.mxu0 0
        %1790 = vmatprep.subr.bf16.mxu0 0
        %1791 = vmatpush1.bf16.msra.mxu0 0
        %1792 = vmatprep.subr.bf16.mxu0 0
        %1793 = vmatpush1.bf16.msra.mxu0 0
        %1794 = vmatprep.subr.bf16.mxu0 0
        %1795 = vmatpush1.bf16.msra.mxu0 0
        %1796 = vmatprep.subr.bf16.mxu0 0
        %1797 = vmatpush1.bf16.msra.mxu0 0
        %1798 = vmatprep.mubr.bf16.mxu0 0
        %1799 = vmatmul.mubr.bf16.gmra.mrb[0].mxu0 %v1761
        %v1800 = vpop.f32.mrb[0].mxu0
        %v1801 = vadd.f32 %v1733, %v1800
        %v1802 = vpop.f32.mrb[0].mxu0
        %v1803 = vpop.f32.mrb[0].mxu0
        %v1804 = vadd.f32 %v1738, %v1803
        %v1805 = vpop.f32.mrb[0].mxu0
        %1806 = vmatprep.mubr.bf16.mxu0 0
        %1807 = vmatmul.mubr.bf16.gmra.mrb[0].mxu0 %v1764
        %v1808 = vpop.f32.mrb[0].mxu0
        %v1809 = vadd.f32 %v1743, %v1808
        %v1810 = vpop.f32.mrb[0].mxu0
        %v1811 = vpop.f32.mrb[0].mxu0
        %v1812 = vadd.f32 %v1748, %v1811
        %v1813 = vpop.f32.mrb[0].mxu0
        %1814 = vdwg.mxu0
        %1815 = vxpose.xlu0.b32.start [1/16] %v1801, 128
        %1816 = vxpose.xlu0.b32.cont [2/16] %v1804, 128
        %1817 = vxpose.xlu0.b32.cont [3/16] %v1809, 128
        %1818 = vxpose.xlu0.b32.cont [4/16] %v1812, 128
        %1819 = vxpose.xlu0.b32.cont [5/16] 0.0, 128
        %1820 = vxpose.xlu0.b32.cont [6/16] 0.0, 128
        %1821 = vxpose.xlu0.b32.cont [7/16] 0.0, 128
        %1822 = vxpose.xlu0.b32.cont [8/16] 0.0, 128
        %1823 = vxpose.xlu0.b32.cont [9/16] 0.0, 128
        %1824 = vxpose.xlu0.b32.cont [10/16] 0.0, 128
        %1825 = vxpose.xlu0.b32.cont [11/16] 0.0, 128
        %1826 = vxpose.xlu0.b32.cont [12/16] 0.0, 128
        %1827 = vxpose.xlu0.b32.cont [13/16] 0.0, 128
        %1828 = vxpose.xlu0.b32.cont [14/16] 0.0, 128
        %1829 = vxpose.xlu0.b32.cont [15/16] 0.0, 128
        %1830 = vxpose.xlu0.b32.end [16/16] 0.0, 128
        %v1831 = vpop.trf.xlu0
        %v1832 = vpop.trf.xlu0
        %v1833 = vpop.trf.xlu0
        %v1834 = vpop.trf.xlu0
        %v1835 = vpop.trf.xlu0
        %v1836 = vpop.trf.xlu0
        %v1837 = vpop.trf.xlu0
        %v1838 = vpop.trf.xlu0
        %v1839 = vpop.trf.xlu0
        %v1840 = vpop.trf.xlu0
        %v1841 = vpop.trf.xlu0
        %v1842 = vpop.trf.xlu0
        %v1843 = vpop.trf.xlu0
        %v1844 = vpop.trf.xlu0
        %v1845 = vpop.trf.xlu0
        %v1846 = vpop.trf.xlu0
        %v1847 = vadd.f32 %v700, %v1831
        %v1848 = vsel %vm851, %v1847, 0.0
        %1849 = vadd.xlane.f32.xlu0 %v1848
        %v1850 = vpop.xlane.xlu0 %1849
        %v1851 = vrcp.pop 32.0
        %v1852 = vmul.f32 %v1850, %v1851
        %v1853 = vsub.f32 %v1847, %v1852
        %v1854 = vmul.f32 %v1853, %v1853
        %v1855 = vsel %vm851, %v1854, 0.0
        %1856 = vadd.xlane.f32.xlu0 %v1855
        %v1857 = vpop.xlane.xlu0 %1856
        %v1858 = vmul.f32 %v1857, %v1851
        %v1859 = vadd.f32 %v1858, 1e-05
        %v1860 = vrsqrt.pop %v1859
        %v1861 = vmul.f32 %v1853, %v1860
        %v1862 = vld [vmem:[%s12] sm:$0x1]
        %v1864 = vlaneseq
        %v1865 = vshrl.u32 %v1864, 7
        %v1866 = vsub.s32 0, %v1865
        %v1867 = vrot.slane %v1862, %v1866
        %v1869 = vmul.f32 %v1861, %v1867
        %v1870 = vld [vmem:[%s13] sm:$0x1]
        %v1872 = vlaneseq
        %v1873 = vshrl.u32 %v1872, 7
        %v1874 = vsub.s32 0, %v1873
        %v1875 = vrot.slane %v1870, %v1874
        %v1877 = vadd.f32 %v1869, %v1875
        %1878 = vxpose.xlu0.b32.start [1/16] %v1877, 128
        %1879 = vxpose.xlu0.b32.cont [2/16] 0.0, 128
        %1880 = vxpose.xlu0.b32.cont [3/16] 0.0, 128
        %1881 = vxpose.xlu0.b32.cont [4/16] 0.0, 128
        %1882 = vxpose.xlu0.b32.cont [5/16] 0.0, 128
        %1883 = vxpose.xlu0.b32.cont [6/16] 0.0, 128
        %1884 = vxpose.xlu0.b32.cont [7/16] 0.0, 128
        %1885 = vxpose.xlu0.b32.cont [8/16] 0.0, 128
        %1886 = vxpose.xlu0.b32.cont [9/16] 0.0, 128
        %1887 = vxpose.xlu0.b32.cont [10/16] 0.0, 128
        %1888 = vxpose.xlu0.b32.cont [11/16] 0.0, 128
        %1889 = vxpose.xlu0.b32.cont [12/16] 0.0, 128
        %1890 = vxpose.xlu0.b32.cont [13/16] 0.0, 128
        %1891 = vxpose.xlu0.b32.cont [14/16] 0.0, 128
        %1892 = vxpose.xlu0.b32.cont [15/16] 0.0, 128
        %1893 = vxpose.xlu0.b32.end [16/16] 0.0, 128
        %v1894 = vpop.trf.xlu0
        %v1895 = vpop.trf.xlu0
        %v1896 = vpop.trf.xlu0
        %v1897 = vpop.trf.xlu0
        %v1898 = vpop.trf.xlu0
        %v1899 = vpop.trf.xlu0
        %v1900 = vpop.trf.xlu0
        %v1901 = vpop.trf.xlu0
        %v1902 = vpop.trf.xlu0
        %v1903 = vpop.trf.xlu0
        %v1904 = vpop.trf.xlu0
        %v1905 = vpop.trf.xlu0
        %v1906 = vpop.trf.xlu0
        %v1907 = vpop.trf.xlu0
        %v1908 = vpop.trf.xlu0
        %v1909 = vpop.trf.xlu0
        %v1910 = vld [vmem:[%s6] sm:$0xf]
        %v1911 = vld [vmem:[%s6 + $0x4] sm:$0xf]
        %v1912 = vld [vmem:[%s6 + $0x8] sm:$0xf]
        %v1913 = vld [vmem:[%s6 + $0xc] sm:$0xf]
        %v1914 = vpack.c.bf16 %v1895, %v1894
        %v1915 = vpack.c.bf16 %v1897, %v1896
        %v1916 = vld [vmem:[%s7] sm:$0xff]
        %v1917 = vld [vmem:[%s7 + $0x8] sm:$0xff]
        %v1918 = vld [vmem:[%s7 + $0x10] sm:$0xff]
        %v1919 = vld [vmem:[%s7 + $0x18] sm:$0xff]
        %1921 = vset.pattern.permute.xlu0 0
        %1922 = vperm.xlu0 %1921, %v1916
        %v1923 = vpop.permute.xlu0 %1922
        %1926 = vset.pattern.permute.xlu0 0
        %1927 = vperm.xlu0 %1926, %v1917
        %v1928 = vpop.permute.xlu0 %1927
        %1931 = vset.pattern.permute.xlu0 0
        %1932 = vperm.xlu0 %1931, %v1918
        %v1933 = vpop.permute.xlu0 %1932
        %1936 = vset.pattern.permute.xlu0 0
        %1937 = vperm.xlu0 %1936, %v1919
        %v1938 = vpop.permute.xlu0 %1937
        %v1944 = vunpack.c.l.b16 %v1910
        %v1945 = vunpack.c.l.b16 %v1911
        %v1946 = vunpack.c.l.b16 %v1912
        %v1947 = vunpack.c.l.b16 %v1913
        %v1948 = vpack.c.b16 %v1945, %v1944
        %v1949 = vpack.c.b16 %v1947, %v1946
        %v1951 = vsel %vm851, %v1948, 0
        %v1954 = vsel %vm851, %v1949, 0
        %1956 = vmatprep.subr.bf16.mxu0 0
        %1957 = vmatpush1.bf16.msra.mxu0 %v1914
        %1958 = vmatprep.subr.bf16.mxu0 0
        %1959 = vmatpush1.bf16.msra.mxu0 %v1915
        %1960 = vmatprep.subr.bf16.mxu0 0
        %1961 = vmatpush1.bf16.msra.mxu0 0
        %1962 = vmatprep.subr.bf16.mxu0 0
        %1963 = vmatpush1.bf16.msra.mxu0 0
        %1964 = vmatprep.subr.bf16.mxu0 0
        %1965 = vmatpush1.bf16.msra.mxu0 0
        %1966 = vmatprep.subr.bf16.mxu0 0
        %1967 = vmatpush1.bf16.msra.mxu0 0
        %1968 = vmatprep.subr.bf16.mxu0 0
        %1969 = vmatpush1.bf16.msra.mxu0 0
        %1970 = vmatprep.subr.bf16.mxu0 0
        %1971 = vmatpush1.bf16.msra.mxu0 0
        %1972 = vmatprep.subr.bf16.mxu0 0
        %1973 = vmatpush1.bf16.msra.mxu0 0
        %1974 = vmatprep.subr.bf16.mxu0 0
        %1975 = vmatpush1.bf16.msra.mxu0 0
        %1976 = vmatprep.subr.bf16.mxu0 0
        %1977 = vmatpush1.bf16.msra.mxu0 0
        %1978 = vmatprep.subr.bf16.mxu0 0
        %1979 = vmatpush1.bf16.msra.mxu0 0
        %1980 = vmatprep.subr.bf16.mxu0 0
        %1981 = vmatpush1.bf16.msra.mxu0 0
        %1982 = vmatprep.subr.bf16.mxu0 0
        %1983 = vmatpush1.bf16.msra.mxu0 0
        %1984 = vmatprep.subr.bf16.mxu0 0
        %1985 = vmatpush1.bf16.msra.mxu0 0
        %1986 = vmatprep.subr.bf16.mxu0 0
        %1987 = vmatpush1.bf16.msra.mxu0 0
        %1988 = vmatprep.mubr.bf16.mxu0 0
        %1989 = vmatmul.mubr.bf16.gmra.mrb[0].mxu0 %v1951
        %v1990 = vpop.f32.mrb[0].mxu0
        %v1991 = vadd.f32 %v1923, %v1990
        %v1992 = vpop.f32.mrb[0].mxu0
        %v1993 = vpop.f32.mrb[0].mxu0
        %v1994 = vadd.f32 %v1928, %v1993
        %v1995 = vpop.f32.mrb[0].mxu0
        %1996 = vmatprep.mubr.bf16.mxu0 0
        %1997 = vmatmul.mubr.bf16.gmra.mrb[0].mxu0 %v1954
        %v1998 = vpop.f32.mrb[0].mxu0
        %v1999 = vadd.f32 %v1933, %v1998
        %v2000 = vpop.f32.mrb[0].mxu0
        %v2001 = vpop.f32.mrb[0].mxu0
        %v2002 = vadd.f32 %v1938, %v2001
        %v2003 = vpop.f32.mrb[0].mxu0
        %2004 = vdwg.mxu0
        %2005 = vxpose.xlu0.b32.start [1/16] %v701, 128
        %2006 = vxpose.xlu0.b32.cont [2/16] %v702, 128
        %2007 = vxpose.xlu0.b32.cont [3/16] 0.0, 128
        %2008 = vxpose.xlu0.b32.cont [4/16] 0.0, 128
        %2009 = vxpose.xlu0.b32.cont [5/16] 0.0, 128
        %2010 = vxpose.xlu0.b32.cont [6/16] 0.0, 128
        %2011 = vxpose.xlu0.b32.cont [7/16] 0.0, 128
        %2012 = vxpose.xlu0.b32.cont [8/16] 0.0, 128
        %2013 = vxpose.xlu0.b32.cont [9/16] 0.0, 128
        %2014 = vxpose.xlu0.b32.cont [10/16] 0.0, 128
        %2015 = vxpose.xlu0.b32.cont [11/16] 0.0, 128
        %2016 = vxpose.xlu0.b32.cont [12/16] 0.0, 128
        %2017 = vxpose.xlu0.b32.cont [13/16] 0.0, 128
        %2018 = vxpose.xlu0.b32.cont [14/16] 0.0, 128
        %2019 = vxpose.xlu0.b32.cont [15/16] 0.0, 128
        %2020 = vxpose.xlu0.b32.end [16/16] 0.0, 128
        %v2021 = vpop.trf.xlu0
        %v2022 = vpop.trf.xlu0
        %v2023 = vpop.trf.xlu0
        %v2024 = vpop.trf.xlu0
        %v2025 = vpop.trf.xlu0
        %v2026 = vpop.trf.xlu0
        %v2027 = vpop.trf.xlu0
        %v2028 = vpop.trf.xlu0
        %v2029 = vpop.trf.xlu0
        %v2030 = vpop.trf.xlu0
        %v2031 = vpop.trf.xlu0
        %v2032 = vpop.trf.xlu0
        %v2033 = vpop.trf.xlu0
        %v2034 = vpop.trf.xlu0
        %v2035 = vpop.trf.xlu0
        %v2036 = vpop.trf.xlu0
        %v2037 = vld [vmem:[%s8] sm:$0xf]
        %v2038 = vld [vmem:[%s8 + $0x4] sm:$0xf]
        %v2039 = vld [vmem:[%s8 + $0x8] sm:$0xf]
        %v2040 = vld [vmem:[%s8 + $0xc] sm:$0xf]
        %v2041 = vld [vmem:[%s8 + $0x10] sm:$0xf]
        %v2042 = vld [vmem:[%s8 + $0x14] sm:$0xf]
        %v2043 = vld [vmem:[%s8 + $0x18] sm:$0xf]
        %v2044 = vld [vmem:[%s8 + $0x1c] sm:$0xf]
        %v2045 = vpack.c.bf16 %v2022, %v2021
        %v2046 = vpack.c.bf16 %v2024, %v2023
        %v2047 = vld [vmem:[%s9] sm:$0xff]
        %v2048 = vld [vmem:[%s9 + $0x8] sm:$0xff]
        %v2049 = vld [vmem:[%s9 + $0x10] sm:$0xff]
        %v2050 = vld [vmem:[%s9 + $0x18] sm:$0xff]
        %v2051 = vld [vmem:[%s9 + $0x20] sm:$0xff]
        %v2052 = vld [vmem:[%s9 + $0x28] sm:$0xff]
        %v2053 = vld [vmem:[%s9 + $0x30] sm:$0xff]
        %v2054 = vld [vmem:[%s9 + $0x38] sm:$0xff]
        %2056 = vset.pattern.permute.xlu0 0
        %2057 = vperm.xlu0 %2056, %v2047
        %v2058 = vpop.permute.xlu0 %2057
        %2061 = vset.pattern.permute.xlu0 0
        %2062 = vperm.xlu0 %2061, %v2048
        %v2063 = vpop.permute.xlu0 %2062
        %2066 = vset.pattern.permute.xlu0 0
        %2067 = vperm.xlu0 %2066, %v2049
        %v2068 = vpop.permute.xlu0 %2067
        %2071 = vset.pattern.permute.xlu0 0
        %2072 = vperm.xlu0 %2071, %v2050
        %v2073 = vpop.permute.xlu0 %2072
        %2076 = vset.pattern.permute.xlu0 0
        %2077 = vperm.xlu0 %2076, %v2051
        %v2078 = vpop.permute.xlu0 %2077
        %2081 = vset.pattern.permute.xlu0 0
        %2082 = vperm.xlu0 %2081, %v2052
        %v2083 = vpop.permute.xlu0 %2082
        %2086 = vset.pattern.permute.xlu0 0
        %2087 = vperm.xlu0 %2086, %v2053
        %v2088 = vpop.permute.xlu0 %2087
        %2091 = vset.pattern.permute.xlu0 0
        %2092 = vperm.xlu0 %2091, %v2054
        %v2093 = vpop.permute.xlu0 %2092
        %v2103 = vunpack.c.l.b16 %v2037
        %v2104 = vunpack.c.l.b16 %v2038
        %v2105 = vunpack.c.l.b16 %v2039
        %v2106 = vunpack.c.l.b16 %v2040
        %v2107 = vunpack.c.l.b16 %v2041
        %v2108 = vunpack.c.l.b16 %v2042
        %v2109 = vunpack.c.l.b16 %v2043
        %v2110 = vunpack.c.l.b16 %v2044
        %v2111 = vpack.c.b16 %v2104, %v2103
        %v2112 = vpack.c.b16 %v2106, %v2105
        %v2113 = vpack.c.b16 %v2108, %v2107
        %v2114 = vpack.c.b16 %v2110, %v2109
        %v2116 = vsel %vm851, %v2111, 0
        %v2119 = vsel %vm851, %v2112, 0
        %v2122 = vsel %vm851, %v2113, 0
        %v2125 = vsel %vm851, %v2114, 0
        %2127 = vmatprep.subr.bf16.mxu0 0
        %2128 = vmatpush1.bf16.msra.mxu0 %v2045
        %2129 = vmatprep.subr.bf16.mxu0 0
        %2130 = vmatpush1.bf16.msra.mxu0 %v2046
        %2131 = vmatprep.subr.bf16.mxu0 0
        %2132 = vmatpush1.bf16.msra.mxu0 0
        %2133 = vmatprep.subr.bf16.mxu0 0
        %2134 = vmatpush1.bf16.msra.mxu0 0
        %2135 = vmatprep.subr.bf16.mxu0 0
        %2136 = vmatpush1.bf16.msra.mxu0 0
        %2137 = vmatprep.subr.bf16.mxu0 0
        %2138 = vmatpush1.bf16.msra.mxu0 0
        %2139 = vmatprep.subr.bf16.mxu0 0
        %2140 = vmatpush1.bf16.msra.mxu0 0
        %2141 = vmatprep.subr.bf16.mxu0 0
        %2142 = vmatpush1.bf16.msra.mxu0 0
        %2143 = vmatprep.subr.bf16.mxu0 0
        %2144 = vmatpush1.bf16.msra.mxu0 0
        %2145 = vmatprep.subr.bf16.mxu0 0
        %2146 = vmatpush1.bf16.msra.mxu0 0
        %2147 = vmatprep.subr.bf16.mxu0 0
        %2148 = vmatpush1.bf16.msra.mxu0 0
        %2149 = vmatprep.subr.bf16.mxu0 0
        %2150 = vmatpush1.bf16.msra.mxu0 0
        %2151 = vmatprep.subr.bf16.mxu0 0
        %2152 = vmatpush1.bf16.msra.mxu0 0
        %2153 = vmatprep.subr.bf16.mxu0 0
        %2154 = vmatpush1.bf16.msra.mxu0 0
        %2155 = vmatprep.subr.bf16.mxu0 0
        %2156 = vmatpush1.bf16.msra.mxu0 0
        %2157 = vmatprep.subr.bf16.mxu0 0
        %2158 = vmatpush1.bf16.msra.mxu0 0
        %2159 = vmatprep.mubr.bf16.mxu0 0
        %2160 = vmatmul.mubr.bf16.gmra.mrb[0].mxu0 %v2116
        %v2161 = vpop.f32.mrb[0].mxu0
        %v2162 = vadd.f32 %v2058, %v2161
        %v2163 = vpop.f32.mrb[0].mxu0
        %v2164 = vpop.f32.mrb[0].mxu0
        %v2165 = vadd.f32 %v2063, %v2164
        %v2166 = vpop.f32.mrb[0].mxu0
        %2167 = vmatprep.mubr.bf16.mxu0 0
        %2168 = vmatmul.mubr.bf16.gmra.mrb[0].mxu0 %v2119
        %v2169 = vpop.f32.mrb[0].mxu0
        %v2170 = vadd.f32 %v2068, %v2169
        %v2171 = vpop.f32.mrb[0].mxu0
        %v2172 = vpop.f32.mrb[0].mxu0
        %v2173 = vadd.f32 %v2073, %v2172
        %v2174 = vpop.f32.mrb[0].mxu0
        %2175 = vmatprep.mubr.bf16.mxu0 0
        %2176 = vmatmul.mubr.bf16.gmra.mrb[0].mxu0 %v2122
        %v2177 = vpop.f32.mrb[0].mxu0
        %v2178 = vadd.f32 %v2078, %v2177
        %v2179 = vpop.f32.mrb[0].mxu0
        %v2180 = vpop.f32.mrb[0].mxu0
        %v2181 = vadd.f32 %v2083, %v2180
        %v2182 = vpop.f32.mrb[0].mxu0
        %2183 = vmatprep.mubr.bf16.mxu0 0
        %2184 = vmatmul.mubr.bf16.gmra.mrb[0].mxu0 %v2125
        %v2185 = vpop.f32.mrb[0].mxu0
        %v2186 = vadd.f32 %v2088, %v2185
        %v2187 = vpop.f32.mrb[0].mxu0
        %v2188 = vpop.f32.mrb[0].mxu0
        %v2189 = vadd.f32 %v2093, %v2188
        %v2190 = vpop.f32.mrb[0].mxu0
        %2191 = vdwg.mxu0
        %2192 = vxpose.xlu0.b32.start [1/16] %v1991, 128
        %2193 = vxpose.xlu0.b32.cont [2/16] 0.0, 128
        %2194 = vxpose.xlu0.b32.cont [3/16] 0.0, 128
        %2195 = vxpose.xlu0.b32.cont [4/16] 0.0, 128
        %2196 = vxpose.xlu0.b32.cont [5/16] 0.0, 128
        %2197 = vxpose.xlu0.b32.cont [6/16] 0.0, 128
        %2198 = vxpose.xlu0.b32.cont [7/16] 0.0, 128
        %2199 = vxpose.xlu0.b32.cont [8/16] 0.0, 128
        %2200 = vxpose.xlu0.b32.cont [9/16] 0.0, 128
        %2201 = vxpose.xlu0.b32.cont [10/16] 0.0, 128
        %2202 = vxpose.xlu0.b32.cont [11/16] 0.0, 128
        %2203 = vxpose.xlu0.b32.cont [12/16] 0.0, 128
        %2204 = vxpose.xlu0.b32.cont [13/16] 0.0, 128
        %2205 = vxpose.xlu0.b32.cont [14/16] 0.0, 128
        %2206 = vxpose.xlu0.b32.cont [15/16] 0.0, 128
        %2207 = vxpose.xlu0.b32.end [16/16] 0.0, 128
        %v2208 = vpop.trf.xlu0
        %v2209 = vpop.trf.xlu0
        %v2210 = vpop.trf.xlu0
        %v2211 = vpop.trf.xlu0
        %v2212 = vpop.trf.xlu0
        %v2213 = vpop.trf.xlu0
        %v2214 = vpop.trf.xlu0
        %v2215 = vpop.trf.xlu0
        %v2216 = vpop.trf.xlu0
        %v2217 = vpop.trf.xlu0
        %v2218 = vpop.trf.xlu0
        %v2219 = vpop.trf.xlu0
        %v2220 = vpop.trf.xlu0
        %v2221 = vpop.trf.xlu0
        %v2222 = vpop.trf.xlu0
        %v2223 = vpop.trf.xlu0
        %2224 = vxpose.xlu0.b32.start [1/16] %v1994, 128
        %2225 = vxpose.xlu0.b32.cont [2/16] 0.0, 128
        %2226 = vxpose.xlu0.b32.cont [3/16] 0.0, 128
        %2227 = vxpose.xlu0.b32.cont [4/16] 0.0, 128
        %2228 = vxpose.xlu0.b32.cont [5/16] 0.0, 128
        %2229 = vxpose.xlu0.b32.cont [6/16] 0.0, 128
        %2230 = vxpose.xlu0.b32.cont [7/16] 0.0, 128
        %2231 = vxpose.xlu0.b32.cont [8/16] 0.0, 128
        %2232 = vxpose.xlu0.b32.cont [9/16] 0.0, 128
        %2233 = vxpose.xlu0.b32.cont [10/16] 0.0, 128
        %2234 = vxpose.xlu0.b32.cont [11/16] 0.0, 128
        %2235 = vxpose.xlu0.b32.cont [12/16] 0.0, 128
        %2236 = vxpose.xlu0.b32.cont [13/16] 0.0, 128
        %2237 = vxpose.xlu0.b32.cont [14/16] 0.0, 128
        %2238 = vxpose.xlu0.b32.cont [15/16] 0.0, 128
        %2239 = vxpose.xlu0.b32.end [16/16] 0.0, 128
        %v2240 = vpop.trf.xlu0
        %v2241 = vpop.trf.xlu0
        %v2242 = vpop.trf.xlu0
        %v2243 = vpop.trf.xlu0
        %v2244 = vpop.trf.xlu0
        %v2245 = vpop.trf.xlu0
        %v2246 = vpop.trf.xlu0
        %v2247 = vpop.trf.xlu0
        %v2248 = vpop.trf.xlu0
        %v2249 = vpop.trf.xlu0
        %v2250 = vpop.trf.xlu0
        %v2251 = vpop.trf.xlu0
        %v2252 = vpop.trf.xlu0
        %v2253 = vpop.trf.xlu0
        %v2254 = vpop.trf.xlu0
        %v2255 = vpop.trf.xlu0
        %2256 = vxpose.xlu0.b32.start [1/16] %v1999, 128
        %2257 = vxpose.xlu0.b32.cont [2/16] 0.0, 128
        %2258 = vxpose.xlu0.b32.cont [3/16] 0.0, 128
        %2259 = vxpose.xlu0.b32.cont [4/16] 0.0, 128
        %2260 = vxpose.xlu0.b32.cont [5/16] 0.0, 128
        %2261 = vxpose.xlu0.b32.cont [6/16] 0.0, 128
        %2262 = vxpose.xlu0.b32.cont [7/16] 0.0, 128
        %2263 = vxpose.xlu0.b32.cont [8/16] 0.0, 128
        %2264 = vxpose.xlu0.b32.cont [9/16] 0.0, 128
        %2265 = vxpose.xlu0.b32.cont [10/16] 0.0, 128
        %2266 = vxpose.xlu0.b32.cont [11/16] 0.0, 128
        %2267 = vxpose.xlu0.b32.cont [12/16] 0.0, 128
        %2268 = vxpose.xlu0.b32.cont [13/16] 0.0, 128
        %2269 = vxpose.xlu0.b32.cont [14/16] 0.0, 128
        %2270 = vxpose.xlu0.b32.cont [15/16] 0.0, 128
        %2271 = vxpose.xlu0.b32.end [16/16] 0.0, 128
        %v2272 = vpop.trf.xlu0
        %v2273 = vpop.trf.xlu0
        %v2274 = vpop.trf.xlu0
        %v2275 = vpop.trf.xlu0
        %v2276 = vpop.trf.xlu0
        %v2277 = vpop.trf.xlu0
        %v2278 = vpop.trf.xlu0
        %v2279 = vpop.trf.xlu0
        %v2280 = vpop.trf.xlu0
        %v2281 = vpop.trf.xlu0
        %v2282 = vpop.trf.xlu0
        %v2283 = vpop.trf.xlu0
        %v2284 = vpop.trf.xlu0
        %v2285 = vpop.trf.xlu0
        %v2286 = vpop.trf.xlu0
        %v2287 = vpop.trf.xlu0
        %2288 = vxpose.xlu0.b32.start [1/16] %v2002, 128
        %2289 = vxpose.xlu0.b32.cont [2/16] 0.0, 128
        %2290 = vxpose.xlu0.b32.cont [3/16] 0.0, 128
        %2291 = vxpose.xlu0.b32.cont [4/16] 0.0, 128
        %2292 = vxpose.xlu0.b32.cont [5/16] 0.0, 128
        %2293 = vxpose.xlu0.b32.cont [6/16] 0.0, 128
        %2294 = vxpose.xlu0.b32.cont [7/16] 0.0, 128
        %2295 = vxpose.xlu0.b32.cont [8/16] 0.0, 128
        %2296 = vxpose.xlu0.b32.cont [9/16] 0.0, 128
        %2297 = vxpose.xlu0.b32.cont [10/16] 0.0, 128
        %2298 = vxpose.xlu0.b32.cont [11/16] 0.0, 128
        %2299 = vxpose.xlu0.b32.cont [12/16] 0.0, 128
        %2300 = vxpose.xlu0.b32.cont [13/16] 0.0, 128
        %2301 = vxpose.xlu0.b32.cont [14/16] 0.0, 128
        %2302 = vxpose.xlu0.b32.cont [15/16] 0.0, 128
        %2303 = vxpose.xlu0.b32.end [16/16] 0.0, 128
        %v2304 = vpop.trf.xlu0
        %v2305 = vpop.trf.xlu0
        %v2306 = vpop.trf.xlu0
        %v2307 = vpop.trf.xlu0
        %v2308 = vpop.trf.xlu0
        %v2309 = vpop.trf.xlu0
        %v2310 = vpop.trf.xlu0
        %v2311 = vpop.trf.xlu0
        %v2312 = vpop.trf.xlu0
        %v2313 = vpop.trf.xlu0
        %v2314 = vpop.trf.xlu0
        %v2315 = vpop.trf.xlu0
        %v2316 = vpop.trf.xlu0
        %v2317 = vpop.trf.xlu0
        %v2318 = vpop.trf.xlu0
        %v2319 = vpop.trf.xlu0
        %v2321 = vsel %vm1079, %v2208, 0
        %2323 = vmatprep.subr.mxu0 0.0
        %2324 = vmatpush1.msra.mxu0 %v2162
        %2325 = vmatprep.subr.mxu0 0.0
        %2326 = vmatpush1.msra.mxu0 0.0
        %2327 = vmatprep.subr.mxu0 0.0
        %2328 = vmatpush1.msra.mxu0 0.0
        %2329 = vmatprep.subr.mxu0 0.0
        %2330 = vmatpush1.msra.mxu0 0.0
        %2331 = vmatprep.subr.mxu0 0.0
        %2332 = vmatpush1.msra.mxu0 0.0
        %2333 = vmatprep.subr.mxu0 0.0
        %2334 = vmatpush1.msra.mxu0 0.0
        %2335 = vmatprep.subr.mxu0 0.0
        %2336 = vmatpush1.msra.mxu0 0.0
        %2337 = vmatprep.subr.mxu0 0.0
        %2338 = vmatpush1.msra.mxu0 0.0
        %2339 = vmatprep.subr.mxu0 0.0
        %2340 = vmatpush1.msra.mxu0 0.0
        %2341 = vmatprep.subr.mxu0 0.0
        %2342 = vmatpush1.msra.mxu0 0.0
        %2343 = vmatprep.subr.mxu0 0.0
        %2344 = vmatpush1.msra.mxu0 0.0
        %2345 = vmatprep.subr.mxu0 0.0
        %2346 = vmatpush1.msra.mxu0 0.0
        %2347 = vmatprep.subr.mxu0 0.0
        %2348 = vmatpush1.msra.mxu0 0.0
        %2349 = vmatprep.subr.mxu0 0.0
        %2350 = vmatpush1.msra.mxu0 0.0
        %2351 = vmatprep.subr.mxu0 0.0
        %2352 = vmatpush1.msra.mxu0 0.0
        %2353 = vmatprep.subr.mxu0 0.0
        %2354 = vmatpush1.msra.mxu0 0.0
        %2355 = vmatprep.subr.mxu0 0.0
        %2356 = vmatpush1.msra.mxu0 0.0
        %2357 = vmatprep.subr.mxu0 0.0
        %2358 = vmatpush1.msra.mxu0 0.0
        %2359 = vmatprep.subr.mxu0 0.0
        %2360 = vmatpush1.msra.mxu0 0.0
        %2361 = vmatprep.subr.mxu0 0.0
        %2362 = vmatpush1.msra.mxu0 0.0
        %2363 = vmatprep.subr.mxu0 0.0
        %2364 = vmatpush1.msra.mxu0 0.0
        %2365 = vmatprep.subr.mxu0 0.0
        %2366 = vmatpush1.msra.mxu0 0.0
        %2367 = vmatprep.subr.mxu0 0.0
        %2368 = vmatpush1.msra.mxu0 0.0
        %2369 = vmatprep.subr.mxu0 0.0
        %2370 = vmatpush1.msra.mxu0 0.0
        %2371 = vmatprep.subr.mxu0 0.0
        %2372 = vmatpush1.msra.mxu0 0.0
        %2373 = vmatprep.subr.mxu0 0.0
        %2374 = vmatpush1.msra.mxu0 0.0
        %2375 = vmatprep.subr.mxu0 0.0
        %2376 = vmatpush1.msra.mxu0 0.0
        %2377 = vmatprep.subr.mxu0 0.0
        %2378 = vmatpush1.msra.mxu0 0.0
        %2379 = vmatprep.subr.mxu0 0.0
        %2380 = vmatpush1.msra.mxu0 0.0
        %2381 = vmatprep.subr.mxu0 0.0
        %2382 = vmatpush1.msra.mxu0 0.0
        %2383 = vmatprep.subr.mxu0 0.0
        %2384 = vmatpush1.msra.mxu0 0.0
        %2385 = vmatprep.subr.mxu0 0.0
        %2386 = vmatpush1.msra.mxu0 0.0
        %2387 = vmatprep.mubr.f32.mxu0 0.0
        %2388 = vmatmul.mubr.f32.gmra.mrb[0].mxu0 %v2321
        %v2389 = vpop.f32.mrb[0].mxu0
        %v2390 = vadd.f32 0.0, %v2389
        %v2391 = vpop.f32.mrb[0].mxu0
        %2392 = vdwg.mxu0
        %v2394 = vsel %vm1079, %v2240, 0
        %2396 = vmatprep.subr.mxu0 0.0
        %2397 = vmatpush1.msra.mxu0 %v2165
        %2398 = vmatprep.subr.mxu0 0.0
        %2399 = vmatpush1.msra.mxu0 0.0
        %2400 = vmatprep.subr.mxu0 0.0
        %2401 = vmatpush1.msra.mxu0 0.0
        %2402 = vmatprep.subr.mxu0 0.0
        %2403 = vmatpush1.msra.mxu0 0.0
        %2404 = vmatprep.subr.mxu0 0.0
        %2405 = vmatpush1.msra.mxu0 0.0
        %2406 = vmatprep.subr.mxu0 0.0
        %2407 = vmatpush1.msra.mxu0 0.0
        %2408 = vmatprep.subr.mxu0 0.0
        %2409 = vmatpush1.msra.mxu0 0.0
        %2410 = vmatprep.subr.mxu0 0.0
        %2411 = vmatpush1.msra.mxu0 0.0
        %2412 = vmatprep.subr.mxu0 0.0
        %2413 = vmatpush1.msra.mxu0 0.0
        %2414 = vmatprep.subr.mxu0 0.0
        %2415 = vmatpush1.msra.mxu0 0.0
        %2416 = vmatprep.subr.mxu0 0.0
        %2417 = vmatpush1.msra.mxu0 0.0
        %2418 = vmatprep.subr.mxu0 0.0
        %2419 = vmatpush1.msra.mxu0 0.0
        %2420 = vmatprep.subr.mxu0 0.0
        %2421 = vmatpush1.msra.mxu0 0.0
        %2422 = vmatprep.subr.mxu0 0.0
        %2423 = vmatpush1.msra.mxu0 0.0
        %2424 = vmatprep.subr.mxu0 0.0
        %2425 = vmatpush1.msra.mxu0 0.0
        %2426 = vmatprep.subr.mxu0 0.0
        %2427 = vmatpush1.msra.mxu0 0.0
        %2428 = vmatprep.subr.mxu0 0.0
        %2429 = vmatpush1.msra.mxu0 0.0
        %2430 = vmatprep.subr.mxu0 0.0
        %2431 = vmatpush1.msra.mxu0 0.0
        %2432 = vmatprep.subr.mxu0 0.0
        %2433 = vmatpush1.msra.mxu0 0.0
        %2434 = vmatprep.subr.mxu0 0.0
        %2435 = vmatpush1.msra.mxu0 0.0
        %2436 = vmatprep.subr.mxu0 0.0
        %2437 = vmatpush1.msra.mxu0 0.0
        %2438 = vmatprep.subr.mxu0 0.0
        %2439 = vmatpush1.msra.mxu0 0.0
        %2440 = vmatprep.subr.mxu0 0.0
        %2441 = vmatpush1.msra.mxu0 0.0
        %2442 = vmatprep.subr.mxu0 0.0
        %2443 = vmatpush1.msra.mxu0 0.0
        %2444 = vmatprep.subr.mxu0 0.0
        %2445 = vmatpush1.msra.mxu0 0.0
        %2446 = vmatprep.subr.mxu0 0.0
        %2447 = vmatpush1.msra.mxu0 0.0
        %2448 = vmatprep.subr.mxu0 0.0
        %2449 = vmatpush1.msra.mxu0 0.0
        %2450 = vmatprep.subr.mxu0 0.0
        %2451 = vmatpush1.msra.mxu0 0.0
        %2452 = vmatprep.subr.mxu0 0.0
        %2453 = vmatpush1.msra.mxu0 0.0
        %2454 = vmatprep.subr.mxu0 0.0
        %2455 = vmatpush1.msra.mxu0 0.0
        %2456 = vmatprep.subr.mxu0 0.0
        %2457 = vmatpush1.msra.mxu0 0.0
        %2458 = vmatprep.subr.mxu0 0.0
        %2459 = vmatpush1.msra.mxu0 0.0
        %2460 = vmatprep.mubr.f32.mxu0 0.0
        %2461 = vmatmul.mubr.f32.gmra.mrb[0].mxu0 %v2394
        %v2462 = vpop.f32.mrb[0].mxu0
        %v2463 = vadd.f32 0.0, %v2462
        %v2464 = vpop.f32.mrb[0].mxu0
        %2465 = vdwg.mxu0
        %v2467 = vsel %vm1079, %v2272, 0
        %2469 = vmatprep.subr.mxu0 0.0
        %2470 = vmatpush1.msra.mxu0 %v2170
        %2471 = vmatprep.subr.mxu0 0.0
        %2472 = vmatpush1.msra.mxu0 0.0
        %2473 = vmatprep.subr.mxu0 0.0
        %2474 = vmatpush1.msra.mxu0 0.0
        %2475 = vmatprep.subr.mxu0 0.0
        %2476 = vmatpush1.msra.mxu0 0.0
        %2477 = vmatprep.subr.mxu0 0.0
        %2478 = vmatpush1.msra.mxu0 0.0
        %2479 = vmatprep.subr.mxu0 0.0
        %2480 = vmatpush1.msra.mxu0 0.0
        %2481 = vmatprep.subr.mxu0 0.0
        %2482 = vmatpush1.msra.mxu0 0.0
        %2483 = vmatprep.subr.mxu0 0.0
        %2484 = vmatpush1.msra.mxu0 0.0
        %2485 = vmatprep.subr.mxu0 0.0
        %2486 = vmatpush1.msra.mxu0 0.0
        %2487 = vmatprep.subr.mxu0 0.0
        %2488 = vmatpush1.msra.mxu0 0.0
        %2489 = vmatprep.subr.mxu0 0.0
        %2490 = vmatpush1.msra.mxu0 0.0
        %2491 = vmatprep.subr.mxu0 0.0
        %2492 = vmatpush1.msra.mxu0 0.0
        %2493 = vmatprep.subr.mxu0 0.0
        %2494 = vmatpush1.msra.mxu0 0.0
        %2495 = vmatprep.subr.mxu0 0.0
        %2496 = vmatpush1.msra.mxu0 0.0
        %2497 = vmatprep.subr.mxu0 0.0
        %2498 = vmatpush1.msra.mxu0 0.0
        %2499 = vmatprep.subr.mxu0 0.0
        %2500 = vmatpush1.msra.mxu0 0.0
        %2501 = vmatprep.subr.mxu0 0.0
        %2502 = vmatpush1.msra.mxu0 0.0
        %2503 = vmatprep.subr.mxu0 0.0
        %2504 = vmatpush1.msra.mxu0 0.0
        %2505 = vmatprep.subr.mxu0 0.0
        %2506 = vmatpush1.msra.mxu0 0.0
        %2507 = vmatprep.subr.mxu0 0.0
        %2508 = vmatpush1.msra.mxu0 0.0
        %2509 = vmatprep.subr.mxu0 0.0
        %2510 = vmatpush1.msra.mxu0 0.0
        %2511 = vmatprep.subr.mxu0 0.0
        %2512 = vmatpush1.msra.mxu0 0.0
        %2513 = vmatprep.subr.mxu0 0.0
        %2514 = vmatpush1.msra.mxu0 0.0
        %2515 = vmatprep.subr.mxu0 0.0
        %2516 = vmatpush1.msra.mxu0 0.0
        %2517 = vmatprep.subr.mxu0 0.0
        %2518 = vmatpush1.msra.mxu0 0.0
        %2519 = vmatprep.subr.mxu0 0.0
        %2520 = vmatpush1.msra.mxu0 0.0
        %2521 = vmatprep.subr.mxu0 0.0
        %2522 = vmatpush1.msra.mxu0 0.0
        %2523 = vmatprep.subr.mxu0 0.0
        %2524 = vmatpush1.msra.mxu0 0.0
        %2525 = vmatprep.subr.mxu0 0.0
        %2526 = vmatpush1.msra.mxu0 0.0
        %2527 = vmatprep.subr.mxu0 0.0
        %2528 = vmatpush1.msra.mxu0 0.0
        %2529 = vmatprep.subr.mxu0 0.0
        %2530 = vmatpush1.msra.mxu0 0.0
        %2531 = vmatprep.subr.mxu0 0.0
        %2532 = vmatpush1.msra.mxu0 0.0
        %2533 = vmatprep.mubr.f32.mxu0 0.0
        %2534 = vmatmul.mubr.f32.gmra.mrb[0].mxu0 %v2467
        %v2535 = vpop.f32.mrb[0].mxu0
        %v2536 = vadd.f32 0.0, %v2535
        %v2537 = vpop.f32.mrb[0].mxu0
        %2538 = vdwg.mxu0
        %v2540 = vsel %vm1079, %v2304, 0
        %2542 = vmatprep.subr.mxu0 0.0
        %2543 = vmatpush1.msra.mxu0 %v2173
        %2544 = vmatprep.subr.mxu0 0.0
        %2545 = vmatpush1.msra.mxu0 0.0
        %2546 = vmatprep.subr.mxu0 0.0
        %2547 = vmatpush1.msra.mxu0 0.0
        %2548 = vmatprep.subr.mxu0 0.0
        %2549 = vmatpush1.msra.mxu0 0.0
        %2550 = vmatprep.subr.mxu0 0.0
        %2551 = vmatpush1.msra.mxu0 0.0
        %2552 = vmatprep.subr.mxu0 0.0
        %2553 = vmatpush1.msra.mxu0 0.0
        %2554 = vmatprep.subr.mxu0 0.0
        %2555 = vmatpush1.msra.mxu0 0.0
        %2556 = vmatprep.subr.mxu0 0.0
        %2557 = vmatpush1.msra.mxu0 0.0
        %2558 = vmatprep.subr.mxu0 0.0
        %2559 = vmatpush1.msra.mxu0 0.0
        %2560 = vmatprep.subr.mxu0 0.0
        %2561 = vmatpush1.msra.mxu0 0.0
        %2562 = vmatprep.subr.mxu0 0.0
        %2563 = vmatpush1.msra.mxu0 0.0
        %2564 = vmatprep.subr.mxu0 0.0
        %2565 = vmatpush1.msra.mxu0 0.0
        %2566 = vmatprep.subr.mxu0 0.0
        %2567 = vmatpush1.msra.mxu0 0.0
        %2568 = vmatprep.subr.mxu0 0.0
        %2569 = vmatpush1.msra.mxu0 0.0
        %2570 = vmatprep.subr.mxu0 0.0
        %2571 = vmatpush1.msra.mxu0 0.0
        %2572 = vmatprep.subr.mxu0 0.0
        %2573 = vmatpush1.msra.mxu0 0.0
        %2574 = vmatprep.subr.mxu0 0.0
        %2575 = vmatpush1.msra.mxu0 0.0
        %2576 = vmatprep.subr.mxu0 0.0
        %2577 = vmatpush1.msra.mxu0 0.0
        %2578 = vmatprep.subr.mxu0 0.0
        %2579 = vmatpush1.msra.mxu0 0.0
        %2580 = vmatprep.subr.mxu0 0.0
        %2581 = vmatpush1.msra.mxu0 0.0
        %2582 = vmatprep.subr.mxu0 0.0
        %2583 = vmatpush1.msra.mxu0 0.0
        %2584 = vmatprep.subr.mxu0 0.0
        %2585 = vmatpush1.msra.mxu0 0.0
        %2586 = vmatprep.subr.mxu0 0.0
        %2587 = vmatpush1.msra.mxu0 0.0
        %2588 = vmatprep.subr.mxu0 0.0
        %2589 = vmatpush1.msra.mxu0 0.0
        %2590 = vmatprep.subr.mxu0 0.0
        %2591 = vmatpush1.msra.mxu0 0.0
        %2592 = vmatprep.subr.mxu0 0.0
        %2593 = vmatpush1.msra.mxu0 0.0
        %2594 = vmatprep.subr.mxu0 0.0
        %2595 = vmatpush1.msra.mxu0 0.0
        %2596 = vmatprep.subr.mxu0 0.0
        %2597 = vmatpush1.msra.mxu0 0.0
        %2598 = vmatprep.subr.mxu0 0.0
        %2599 = vmatpush1.msra.mxu0 0.0
        %2600 = vmatprep.subr.mxu0 0.0
        %2601 = vmatpush1.msra.mxu0 0.0
        %2602 = vmatprep.subr.mxu0 0.0
        %2603 = vmatpush1.msra.mxu0 0.0
        %2604 = vmatprep.subr.mxu0 0.0
        %2605 = vmatpush1.msra.mxu0 0.0
        %2606 = vmatprep.mubr.f32.mxu0 0.0
        %2607 = vmatmul.mubr.f32.gmra.mrb[0].mxu0 %v2540
        %v2608 = vpop.f32.mrb[0].mxu0
        %v2609 = vadd.f32 0.0, %v2608
        %v2610 = vpop.f32.mrb[0].mxu0
        %2611 = vdwg.mxu0
        %vm2612 = vcmask 130048
        %v2613 = vsel %vm2612, %v2390, -inf
        %2614 = vmax.xlane.f32.xlu0 %v2613
        %v2615 = vpop.xlane.xlu0 %2614
        %v2616 = vsel %vm2612, %v2463, -inf
        %2617 = vmax.xlane.f32.xlu0 %v2616
        %v2618 = vpop.xlane.xlu0 %2617
        %v2619 = vsel %vm2612, %v2536, -inf
        %2620 = vmax.xlane.f32.xlu0 %v2619
        %v2621 = vpop.xlane.xlu0 %2620
        %v2622 = vsel %vm2612, %v2609, -inf
        %2623 = vmax.xlane.f32.xlu0 %v2622
        %v2624 = vpop.xlane.xlu0 %2623
        %v2625 = vsub.f32 %v2390, %v2615
        %v2626 = vsub.f32 %v2463, %v2618
        %v2627 = vsub.f32 %v2536, %v2621
        %v2628 = vsub.f32 %v2609, %v2624
        %v2629 = vmul.f32 %v2625, 1.442695
        %v2630 = vpow.pop %v2629
        %v2631 = vmul.f32 %v2626, 1.442695
        %v2632 = vpow.pop %v2631
        %v2633 = vmul.f32 %v2627, 1.442695
        %v2634 = vpow.pop %v2633
        %v2635 = vmul.f32 %v2628, 1.442695
        %v2636 = vpow.pop %v2635
        %v2637 = vsel %vm2612, %v2630, 0.0
        %2638 = vadd.xlane.f32.xlu0 %v2637
        %v2639 = vpop.xlane.xlu0 %2638
        %v2640 = vsel %vm2612, %v2632, 0.0
        %2641 = vadd.xlane.f32.xlu0 %v2640
        %v2642 = vpop.xlane.xlu0 %2641
        %v2643 = vsel %vm2612, %v2634, 0.0
        %2644 = vadd.xlane.f32.xlu0 %v2643
        %v2645 = vpop.xlane.xlu0 %2644
        %v2646 = vsel %vm2612, %v2636, 0.0
        %2647 = vadd.xlane.f32.xlu0 %v2646
        %v2648 = vpop.xlane.xlu0 %2647
        %v2649 = vrcp.pop %v2639
        %v2650 = vrcp.pop %v2642
        %v2651 = vrcp.pop %v2645
        %v2652 = vrcp.pop %v2648
        %v2653 = vmul.f32 %v2630, %v2649
        %v2654 = vmul.f32 %v2632, %v2650
        %v2655 = vmul.f32 %v2634, %v2651
        %v2656 = vmul.f32 %v2636, %v2652
        %v2658 = vsel %vm2612, %v2178, 0
        %v2661 = vsel %vm2612, %v2653, 0
        %2663 = vmatprep.subr.mxu0 0.0
        %2664 = vmatpush1.xpose.msra.mxu0 %v2661
        %2665 = vmatprep.subr.mxu0 0.0
        %2666 = vmatpush1.xpose.msra.mxu0 0.0
        %2667 = vmatprep.subr.mxu0 0.0
        %2668 = vmatpush1.xpose.msra.mxu0 0.0
        %2669 = vmatprep.subr.mxu0 0.0
        %2670 = vmatpush1.xpose.msra.mxu0 0.0
        %2671 = vmatprep.subr.mxu0 0.0
        %2672 = vmatpush1.xpose.msra.mxu0 0.0
        %2673 = vmatprep.subr.mxu0 0.0
        %2674 = vmatpush1.xpose.msra.mxu0 0.0
        %2675 = vmatprep.subr.mxu0 0.0
        %2676 = vmatpush1.xpose.msra.mxu0 0.0
        %2677 = vmatprep.subr.mxu0 0.0
        %2678 = vmatpush1.xpose.msra.mxu0 0.0
        %2679 = vmatprep.subr.mxu0 0.0
        %2680 = vmatpush1.xpose.msra.mxu0 0.0
        %2681 = vmatprep.subr.mxu0 0.0
        %2682 = vmatpush1.xpose.msra.mxu0 0.0
        %2683 = vmatprep.subr.mxu0 0.0
        %2684 = vmatpush1.xpose.msra.mxu0 0.0
        %2685 = vmatprep.subr.mxu0 0.0
        %2686 = vmatpush1.xpose.msra.mxu0 0.0
        %2687 = vmatprep.subr.mxu0 0.0
        %2688 = vmatpush1.xpose.msra.mxu0 0.0
        %2689 = vmatprep.subr.mxu0 0.0
        %2690 = vmatpush1.xpose.msra.mxu0 0.0
        %2691 = vmatprep.subr.mxu0 0.0
        %2692 = vmatpush1.xpose.msra.mxu0 0.0
        %2693 = vmatprep.subr.mxu0 0.0
        %2694 = vmatpush1.xpose.msra.mxu0 0.0
        %2695 = vmatprep.subr.mxu0 0.0
        %2696 = vmatpush1.xpose.msra.mxu0 0.0
        %2697 = vmatprep.subr.mxu0 0.0
        %2698 = vmatpush1.xpose.msra.mxu0 0.0
        %2699 = vmatprep.subr.mxu0 0.0
        %2700 = vmatpush1.xpose.msra.mxu0 0.0
        %2701 = vmatprep.subr.mxu0 0.0
        %2702 = vmatpush1.xpose.msra.mxu0 0.0
        %2703 = vmatprep.subr.mxu0 0.0
        %2704 = vmatpush1.xpose.msra.mxu0 0.0
        %2705 = vmatprep.subr.mxu0 0.0
        %2706 = vmatpush1.xpose.msra.mxu0 0.0
        %2707 = vmatprep.subr.mxu0 0.0
        %2708 = vmatpush1.xpose.msra.mxu0 0.0
        %2709 = vmatprep.subr.mxu0 0.0
        %2710 = vmatpush1.xpose.msra.mxu0 0.0
        %2711 = vmatprep.subr.mxu0 0.0
        %2712 = vmatpush1.xpose.msra.mxu0 0.0
        %2713 = vmatprep.subr.mxu0 0.0
        %2714 = vmatpush1.xpose.msra.mxu0 0.0
        %2715 = vmatprep.subr.mxu0 0.0
        %2716 = vmatpush1.xpose.msra.mxu0 0.0
        %2717 = vmatprep.subr.mxu0 0.0
        %2718 = vmatpush1.xpose.msra.mxu0 0.0
        %2719 = vmatprep.subr.mxu0 0.0
        %2720 = vmatpush1.xpose.msra.mxu0 0.0
        %2721 = vmatprep.subr.mxu0 0.0
        %2722 = vmatpush1.xpose.msra.mxu0 0.0
        %2723 = vmatprep.subr.mxu0 0.0
        %2724 = vmatpush1.xpose.msra.mxu0 0.0
        %2725 = vmatprep.subr.mxu0 0.0
        %2726 = vmatpush1.xpose.msra.mxu0 0.0
        %2727 = vmatprep.mubr.f32.mxu0 0.0
        %2728 = vmatmul.mubr.f32.gmra.mrb[0].mxu0 %v2658
        %v2729 = vpop.f32.mrb[0].mxu0
        %v2730 = vadd.f32 0.0, %v2729
        %v2731 = vpop.f32.mrb[0].mxu0
        %2732 = vdwg.mxu0
        %v2734 = vsel %vm2612, %v2181, 0
        %v2737 = vsel %vm2612, %v2654, 0
        %2739 = vmatprep.subr.mxu0 0.0
        %2740 = vmatpush1.xpose.msra.mxu0 %v2737
        %2741 = vmatprep.subr.mxu0 0.0
        %2742 = vmatpush1.xpose.msra.mxu0 0.0
        %2743 = vmatprep.subr.mxu0 0.0
        %2744 = vmatpush1.xpose.msra.mxu0 0.0
        %2745 = vmatprep.subr.mxu0 0.0
        %2746 = vmatpush1.xpose.msra.mxu0 0.0
        %2747 = vmatprep.subr.mxu0 0.0
        %2748 = vmatpush1.xpose.msra.mxu0 0.0
        %2749 = vmatprep.subr.mxu0 0.0
        %2750 = vmatpush1.xpose.msra.mxu0 0.0
        %2751 = vmatprep.subr.mxu0 0.0
        %2752 = vmatpush1.xpose.msra.mxu0 0.0
        %2753 = vmatprep.subr.mxu0 0.0
        %2754 = vmatpush1.xpose.msra.mxu0 0.0
        %2755 = vmatprep.subr.mxu0 0.0
        %2756 = vmatpush1.xpose.msra.mxu0 0.0
        %2757 = vmatprep.subr.mxu0 0.0
        %2758 = vmatpush1.xpose.msra.mxu0 0.0
        %2759 = vmatprep.subr.mxu0 0.0
        %2760 = vmatpush1.xpose.msra.mxu0 0.0
        %2761 = vmatprep.subr.mxu0 0.0
        %2762 = vmatpush1.xpose.msra.mxu0 0.0
        %2763 = vmatprep.subr.mxu0 0.0
        %2764 = vmatpush1.xpose.msra.mxu0 0.0
        %2765 = vmatprep.subr.mxu0 0.0
        %2766 = vmatpush1.xpose.msra.mxu0 0.0
        %2767 = vmatprep.subr.mxu0 0.0
        %2768 = vmatpush1.xpose.msra.mxu0 0.0
        %2769 = vmatprep.subr.mxu0 0.0
        %2770 = vmatpush1.xpose.msra.mxu0 0.0
        %2771 = vmatprep.subr.mxu0 0.0
        %2772 = vmatpush1.xpose.msra.mxu0 0.0
        %2773 = vmatprep.subr.mxu0 0.0
        %2774 = vmatpush1.xpose.msra.mxu0 0.0
        %2775 = vmatprep.subr.mxu0 0.0
        %2776 = vmatpush1.xpose.msra.mxu0 0.0
        %2777 = vmatprep.subr.mxu0 0.0
        %2778 = vmatpush1.xpose.msra.mxu0 0.0
        %2779 = vmatprep.subr.mxu0 0.0
        %2780 = vmatpush1.xpose.msra.mxu0 0.0
        %2781 = vmatprep.subr.mxu0 0.0
        %2782 = vmatpush1.xpose.msra.mxu0 0.0
        %2783 = vmatprep.subr.mxu0 0.0
        %2784 = vmatpush1.xpose.msra.mxu0 0.0
        %2785 = vmatprep.subr.mxu0 0.0
        %2786 = vmatpush1.xpose.msra.mxu0 0.0
        %2787 = vmatprep.subr.mxu0 0.0
        %2788 = vmatpush1.xpose.msra.mxu0 0.0
        %2789 = vmatprep.subr.mxu0 0.0
        %2790 = vmatpush1.xpose.msra.mxu0 0.0
        %2791 = vmatprep.subr.mxu0 0.0
        %2792 = vmatpush1.xpose.msra.mxu0 0.0
        %2793 = vmatprep.subr.mxu0 0.0
        %2794 = vmatpush1.xpose.msra.mxu0 0.0
        %2795 = vmatprep.subr.mxu0 0.0
        %2796 = vmatpush1.xpose.msra.mxu0 0.0
        %2797 = vmatprep.subr.mxu0 0.0
        %2798 = vmatpush1.xpose.msra.mxu0 0.0
        %2799 = vmatprep.subr.mxu0 0.0
        %2800 = vmatpush1.xpose.msra.mxu0 0.0
        %2801 = vmatprep.subr.mxu0 0.0
        %2802 = vmatpush1.xpose.msra.mxu0 0.0
        %2803 = vmatprep.mubr.f32.mxu0 0.0
        %2804 = vmatmul.mubr.f32.gmra.mrb[0].mxu0 %v2734
        %v2805 = vpop.f32.mrb[0].mxu0
        %v2806 = vadd.f32 0.0, %v2805
        %v2807 = vpop.f32.mrb[0].mxu0
        %2808 = vdwg.mxu0
        %v2810 = vsel %vm2612, %v2186, 0
        %v2813 = vsel %vm2612, %v2655, 0
        %2815 = vmatprep.subr.mxu0 0.0
        %2816 = vmatpush1.xpose.msra.mxu0 %v2813
        %2817 = vmatprep.subr.mxu0 0.0
        %2818 = vmatpush1.xpose.msra.mxu0 0.0
        %2819 = vmatprep.subr.mxu0 0.0
        %2820 = vmatpush1.xpose.msra.mxu0 0.0
        %2821 = vmatprep.subr.mxu0 0.0
        %2822 = vmatpush1.xpose.msra.mxu0 0.0
        %2823 = vmatprep.subr.mxu0 0.0
        %2824 = vmatpush1.xpose.msra.mxu0 0.0
        %2825 = vmatprep.subr.mxu0 0.0
        %2826 = vmatpush1.xpose.msra.mxu0 0.0
        %2827 = vmatprep.subr.mxu0 0.0
        %2828 = vmatpush1.xpose.msra.mxu0 0.0
        %2829 = vmatprep.subr.mxu0 0.0
        %2830 = vmatpush1.xpose.msra.mxu0 0.0
        %2831 = vmatprep.subr.mxu0 0.0
        %2832 = vmatpush1.xpose.msra.mxu0 0.0
        %2833 = vmatprep.subr.mxu0 0.0
        %2834 = vmatpush1.xpose.msra.mxu0 0.0
        %2835 = vmatprep.subr.mxu0 0.0
        %2836 = vmatpush1.xpose.msra.mxu0 0.0
        %2837 = vmatprep.subr.mxu0 0.0
        %2838 = vmatpush1.xpose.msra.mxu0 0.0
        %2839 = vmatprep.subr.mxu0 0.0
        %2840 = vmatpush1.xpose.msra.mxu0 0.0
        %2841 = vmatprep.subr.mxu0 0.0
        %2842 = vmatpush1.xpose.msra.mxu0 0.0
        %2843 = vmatprep.subr.mxu0 0.0
        %2844 = vmatpush1.xpose.msra.mxu0 0.0
        %2845 = vmatprep.subr.mxu0 0.0
        %2846 = vmatpush1.xpose.msra.mxu0 0.0
        %2847 = vmatprep.subr.mxu0 0.0
        %2848 = vmatpush1.xpose.msra.mxu0 0.0
        %2849 = vmatprep.subr.mxu0 0.0
        %2850 = vmatpush1.xpose.msra.mxu0 0.0
        %2851 = vmatprep.subr.mxu0 0.0
        %2852 = vmatpush1.xpose.msra.mxu0 0.0
        %2853 = vmatprep.subr.mxu0 0.0
        %2854 = vmatpush1.xpose.msra.mxu0 0.0
        %2855 = vmatprep.subr.mxu0 0.0
        %2856 = vmatpush1.xpose.msra.mxu0 0.0
        %2857 = vmatprep.subr.mxu0 0.0
        %2858 = vmatpush1.xpose.msra.mxu0 0.0
        %2859 = vmatprep.subr.mxu0 0.0
        %2860 = vmatpush1.xpose.msra.mxu0 0.0
        %2861 = vmatprep.subr.mxu0 0.0
        %2862 = vmatpush1.xpose.msra.mxu0 0.0
        %2863 = vmatprep.subr.mxu0 0.0
        %2864 = vmatpush1.xpose.msra.mxu0 0.0
        %2865 = vmatprep.subr.mxu0 0.0
        %2866 = vmatpush1.xpose.msra.mxu0 0.0
        %2867 = vmatprep.subr.mxu0 0.0
        %2868 = vmatpush1.xpose.msra.mxu0 0.0
        %2869 = vmatprep.subr.mxu0 0.0
        %2870 = vmatpush1.xpose.msra.mxu0 0.0
        %2871 = vmatprep.subr.mxu0 0.0
        %2872 = vmatpush1.xpose.msra.mxu0 0.0
        %2873 = vmatprep.subr.mxu0 0.0
        %2874 = vmatpush1.xpose.msra.mxu0 0.0
        %2875 = vmatprep.subr.mxu0 0.0
        %2876 = vmatpush1.xpose.msra.mxu0 0.0
        %2877 = vmatprep.subr.mxu0 0.0
        %2878 = vmatpush1.xpose.msra.mxu0 0.0
        %2879 = vmatprep.mubr.f32.mxu0 0.0
        %2880 = vmatmul.mubr.f32.gmra.mrb[0].mxu0 %v2810
        %v2881 = vpop.f32.mrb[0].mxu0
        %v2882 = vadd.f32 0.0, %v2881
        %v2883 = vpop.f32.mrb[0].mxu0
        %2884 = vdwg.mxu0
        %v2886 = vsel %vm2612, %v2189, 0
        %v2889 = vsel %vm2612, %v2656, 0
        %2891 = vmatprep.subr.mxu0 0.0
        %2892 = vmatpush1.xpose.msra.mxu0 %v2889
        %2893 = vmatprep.subr.mxu0 0.0
        %2894 = vmatpush1.xpose.msra.mxu0 0.0
        %2895 = vmatprep.subr.mxu0 0.0
        %2896 = vmatpush1.xpose.msra.mxu0 0.0
        %2897 = vmatprep.subr.mxu0 0.0
        %2898 = vmatpush1.xpose.msra.mxu0 0.0
        %2899 = vmatprep.subr.mxu0 0.0
        %2900 = vmatpush1.xpose.msra.mxu0 0.0
        %2901 = vmatprep.subr.mxu0 0.0
        %2902 = vmatpush1.xpose.msra.mxu0 0.0
        %2903 = vmatprep.subr.mxu0 0.0
        %2904 = vmatpush1.xpose.msra.mxu0 0.0
        %2905 = vmatprep.subr.mxu0 0.0
        %2906 = vmatpush1.xpose.msra.mxu0 0.0
        %2907 = vmatprep.subr.mxu0 0.0
        %2908 = vmatpush1.xpose.msra.mxu0 0.0
        %2909 = vmatprep.subr.mxu0 0.0
        %2910 = vmatpush1.xpose.msra.mxu0 0.0
        %2911 = vmatprep.subr.mxu0 0.0
        %2912 = vmatpush1.xpose.msra.mxu0 0.0
        %2913 = vmatprep.subr.mxu0 0.0
        %2914 = vmatpush1.xpose.msra.mxu0 0.0
        %2915 = vmatprep.subr.mxu0 0.0
        %2916 = vmatpush1.xpose.msra.mxu0 0.0
        %2917 = vmatprep.subr.mxu0 0.0
        %2918 = vmatpush1.xpose.msra.mxu0 0.0
        %2919 = vmatprep.subr.mxu0 0.0
        %2920 = vmatpush1.xpose.msra.mxu0 0.0
        %2921 = vmatprep.subr.mxu0 0.0
        %2922 = vmatpush1.xpose.msra.mxu0 0.0
        %2923 = vmatprep.subr.mxu0 0.0
        %2924 = vmatpush1.xpose.msra.mxu0 0.0
        %2925 = vmatprep.subr.mxu0 0.0
        %2926 = vmatpush1.xpose.msra.mxu0 0.0
        %2927 = vmatprep.subr.mxu0 0.0
        %2928 = vmatpush1.xpose.msra.mxu0 0.0
        %2929 = vmatprep.subr.mxu0 0.0
        %2930 = vmatpush1.xpose.msra.mxu0 0.0
        %2931 = vmatprep.subr.mxu0 0.0
        %2932 = vmatpush1.xpose.msra.mxu0 0.0
        %2933 = vmatprep.subr.mxu0 0.0
        %2934 = vmatpush1.xpose.msra.mxu0 0.0
        %2935 = vmatprep.subr.mxu0 0.0
        %2936 = vmatpush1.xpose.msra.mxu0 0.0
        %2937 = vmatprep.subr.mxu0 0.0
        %2938 = vmatpush1.xpose.msra.mxu0 0.0
        %2939 = vmatprep.subr.mxu0 0.0
        %2940 = vmatpush1.xpose.msra.mxu0 0.0
        %2941 = vmatprep.subr.mxu0 0.0
        %2942 = vmatpush1.xpose.msra.mxu0 0.0
        %2943 = vmatprep.subr.mxu0 0.0
        %2944 = vmatpush1.xpose.msra.mxu0 0.0
        %2945 = vmatprep.subr.mxu0 0.0
        %2946 = vmatpush1.xpose.msra.mxu0 0.0
        %2947 = vmatprep.subr.mxu0 0.0
        %2948 = vmatpush1.xpose.msra.mxu0 0.0
        %2949 = vmatprep.subr.mxu0 0.0
        %2950 = vmatpush1.xpose.msra.mxu0 0.0
        %2951 = vmatprep.subr.mxu0 0.0
        %2952 = vmatpush1.xpose.msra.mxu0 0.0
        %2953 = vmatprep.subr.mxu0 0.0
        %2954 = vmatpush1.xpose.msra.mxu0 0.0
        %2955 = vmatprep.mubr.f32.mxu0 0.0
        %2956 = vmatmul.mubr.f32.gmra.mrb[0].mxu0 %v2886
        %v2957 = vpop.f32.mrb[0].mxu0
        %v2958 = vadd.f32 0.0, %v2957
        %v2959 = vpop.f32.mrb[0].mxu0
        %2960 = vdwg.mxu0
        %v2961 = vld [vmem:[%s10] sm:$0xf]
        %v2962 = vld [vmem:[%s10 + $0x4] sm:$0xf]
        %v2963 = vld [vmem:[%s10 + $0x8] sm:$0xf]
        %v2964 = vld [vmem:[%s10 + $0xc] sm:$0xf]
        %v2965 = vpack.c.bf16 %v2806, %v2730
        %v2966 = vpack.c.bf16 %v2958, %v2882
        %v2967 = vld [vmem:[%s11] sm:$0xff]
        %v2968 = vld [vmem:[%s11 + $0x8] sm:$0xff]
        %v2969 = vld [vmem:[%s11 + $0x10] sm:$0xff]
        %v2970 = vld [vmem:[%s11 + $0x18] sm:$0xff]
        %2972 = vset.pattern.permute.xlu0 0
        %2973 = vperm.xlu0 %2972, %v2967
        %v2974 = vpop.permute.xlu0 %2973
        %2977 = vset.pattern.permute.xlu0 0
        %2978 = vperm.xlu0 %2977, %v2968
        %v2979 = vpop.permute.xlu0 %2978
        %2982 = vset.pattern.permute.xlu0 0
        %2983 = vperm.xlu0 %2982, %v2969
        %v2984 = vpop.permute.xlu0 %2983
        %2987 = vset.pattern.permute.xlu0 0
        %2988 = vperm.xlu0 %2987, %v2970
        %v2989 = vpop.permute.xlu0 %2988
        %v2995 = vunpack.c.l.b16 %v2961
        %v2996 = vunpack.c.l.b16 %v2962
        %v2997 = vunpack.c.l.b16 %v2963
        %v2998 = vunpack.c.l.b16 %v2964
        %v2999 = vpack.c.b16 %v2996, %v2995
        %v3000 = vpack.c.b16 %v2998, %v2997
        %v3002 = vsel %vm851, %v2999, 0
        %v3005 = vsel %vm851, %v3000, 0
        %3007 = vmatprep.subr.bf16.mxu0 0
        %3008 = vmatpush1.bf16.msra.mxu0 %v2965
        %3009 = vmatprep.subr.bf16.mxu0 0
        %3010 = vmatpush1.bf16.msra.mxu0 %v2966
        %3011 = vmatprep.subr.bf16.mxu0 0
        %3012 = vmatpush1.bf16.msra.mxu0 0
        %3013 = vmatprep.subr.bf16.mxu0 0
        %3014 = vmatpush1.bf16.msra.mxu0 0
        %3015 = vmatprep.subr.bf16.mxu0 0
        %3016 = vmatpush1.bf16.msra.mxu0 0
        %3017 = vmatprep.subr.bf16.mxu0 0
        %3018 = vmatpush1.bf16.msra.mxu0 0
        %3019 = vmatprep.subr.bf16.mxu0 0
        %3020 = vmatpush1.bf16.msra.mxu0 0
        %3021 = vmatprep.subr.bf16.mxu0 0
        %3022 = vmatpush1.bf16.msra.mxu0 0
        %3023 = vmatprep.subr.bf16.mxu0 0
        %3024 = vmatpush1.bf16.msra.mxu0 0
        %3025 = vmatprep.subr.bf16.mxu0 0
        %3026 = vmatpush1.bf16.msra.mxu0 0
        %3027 = vmatprep.subr.bf16.mxu0 0
        %3028 = vmatpush1.bf16.msra.mxu0 0
        %3029 = vmatprep.subr.bf16.mxu0 0
        %3030 = vmatpush1.bf16.msra.mxu0 0
        %3031 = vmatprep.subr.bf16.mxu0 0
        %3032 = vmatpush1.bf16.msra.mxu0 0
        %3033 = vmatprep.subr.bf16.mxu0 0
        %3034 = vmatpush1.bf16.msra.mxu0 0
        %3035 = vmatprep.subr.bf16.mxu0 0
        %3036 = vmatpush1.bf16.msra.mxu0 0
        %3037 = vmatprep.subr.bf16.mxu0 0
        %3038 = vmatpush1.bf16.msra.mxu0 0
        %3039 = vmatprep.mubr.bf16.mxu0 0
        %3040 = vmatmul.mubr.bf16.gmra.mrb[0].mxu0 %v3002
        %v3041 = vpop.f32.mrb[0].mxu0
        %v3042 = vadd.f32 %v2974, %v3041
        %v3043 = vpop.f32.mrb[0].mxu0
        %v3044 = vpop.f32.mrb[0].mxu0
        %v3045 = vadd.f32 %v2979, %v3044
        %v3046 = vpop.f32.mrb[0].mxu0
        %3047 = vmatprep.mubr.bf16.mxu0 0
        %3048 = vmatmul.mubr.bf16.gmra.mrb[0].mxu0 %v3005
        %v3049 = vpop.f32.mrb[0].mxu0
        %v3050 = vadd.f32 %v2984, %v3049
        %v3051 = vpop.f32.mrb[0].mxu0
        %v3052 = vpop.f32.mrb[0].mxu0
        %v3053 = vadd.f32 %v2989, %v3052
        %v3054 = vpop.f32.mrb[0].mxu0
        %3055 = vdwg.mxu0
        %3056 = vxpose.xlu0.b32.start [1/16] %v3042, 128
        %3057 = vxpose.xlu0.b32.cont [2/16] %v3045, 128
        %3058 = vxpose.xlu0.b32.cont [3/16] %v3050, 128
        %3059 = vxpose.xlu0.b32.cont [4/16] %v3053, 128
        %3060 = vxpose.xlu0.b32.cont [5/16] 0.0, 128
        %3061 = vxpose.xlu0.b32.cont [6/16] 0.0, 128
        %3062 = vxpose.xlu0.b32.cont [7/16] 0.0, 128
        %3063 = vxpose.xlu0.b32.cont [8/16] 0.0, 128
        %3064 = vxpose.xlu0.b32.cont [9/16] 0.0, 128
        %3065 = vxpose.xlu0.b32.cont [10/16] 0.0, 128
        %3066 = vxpose.xlu0.b32.cont [11/16] 0.0, 128
        %3067 = vxpose.xlu0.b32.cont [12/16] 0.0, 128
        %3068 = vxpose.xlu0.b32.cont [13/16] 0.0, 128
        %3069 = vxpose.xlu0.b32.cont [14/16] 0.0, 128
        %3070 = vxpose.xlu0.b32.cont [15/16] 0.0, 128
        %3071 = vxpose.xlu0.b32.end [16/16] 0.0, 128
        %v3072 = vpop.trf.xlu0
        %v3073 = vpop.trf.xlu0
        %v3074 = vpop.trf.xlu0
        %v3075 = vpop.trf.xlu0
        %v3076 = vpop.trf.xlu0
        %v3077 = vpop.trf.xlu0
        %v3078 = vpop.trf.xlu0
        %v3079 = vpop.trf.xlu0
        %v3080 = vpop.trf.xlu0
        %v3081 = vpop.trf.xlu0
        %v3082 = vpop.trf.xlu0
        %v3083 = vpop.trf.xlu0
        %v3084 = vpop.trf.xlu0
        %v3085 = vpop.trf.xlu0
        %v3086 = vpop.trf.xlu0
        %v3087 = vpop.trf.xlu0
        %v3088 = vadd.f32 %v1877, %v3072
        %v3089 = vsel %vm851, %v3088, 0.0
        %3090 = vadd.xlane.f32.xlu0 %v3089
        %v3091 = vpop.xlane.xlu0 %3090
        %v3092 = vmul.f32 %v3091, %v1851
        %v3093 = vsub.f32 %v3088, %v3092
        %v3094 = vmul.f32 %v3093, %v3093
        %v3095 = vsel %vm851, %v3094, 0.0
        %3096 = vadd.xlane.f32.xlu0 %v3095
        %v3097 = vpop.xlane.xlu0 %3096
        %v3098 = vmul.f32 %v3097, %v1851
        %v3099 = vadd.f32 %v3098, 1e-05
        %v3100 = vrsqrt.pop %v3099
        %v3101 = vmul.f32 %v3093, %v3100
        %v3102 = vld [vmem:[%s14] sm:$0x1]
        %v3104 = vlaneseq
        %v3105 = vshrl.u32 %v3104, 7
        %v3106 = vsub.s32 0, %v3105
        %v3107 = vrot.slane %v3102, %v3106
        %v3109 = vmul.f32 %v3101, %v3107
        %v3110 = vld [vmem:[%s15] sm:$0x1]
        %v3112 = vlaneseq
        %v3113 = vshrl.u32 %v3112, 7
        %v3114 = vsub.s32 0, %v3113
        %v3115 = vrot.slane %v3110, %v3114
        %v3117 = vadd.f32 %v3109, %v3115
        %v3118 = vpack.c.bf16 %v3117, %v3117
        %v3119 = vld [vmem:[%s18] sm:$0xf]
        %v3120 = vld [vmem:[%s18 + $0x4] sm:$0xf]
        %v3121 = vld [vmem:[%s18 + $0x8] sm:$0xf]
        %v3122 = vld [vmem:[%s18 + $0xc] sm:$0xf]
        %v3123 = vld [vmem:[%s19] sm:$0x1]
        %v3125 = vlaneseq
        %v3126 = vshrl.u32 %v3125, 7
        %v3127 = vsub.s32 0, %v3126
        %v3128 = vrot.slane %v3123, %v3127
        %v3134 = vunpack.c.l.b16 %v3119
        %v3135 = vunpack.c.l.b16 %v3120
        %v3136 = vunpack.c.l.b16 %v3121
        %v3137 = vunpack.c.l.b16 %v3122
        %v3138 = vpack.c.b16 %v3135, %v3134
        %v3139 = vpack.c.b16 %v3137, %v3136
        %v3143 = vsel %vm851, %v3118, 0
        %3145 = vmatprep.subr.bf16.mxu0 0
        %3146 = vmatpush1.bf16.msra.mxu0 %v3138
        %3147 = vmatprep.subr.bf16.mxu0 0
        %3148 = vmatpush1.bf16.msra.mxu0 %v3139
        %3149 = vmatprep.subr.bf16.mxu0 0
        %3150 = vmatpush1.bf16.msra.mxu0 0
        %3151 = vmatprep.subr.bf16.mxu0 0
        %3152 = vmatpush1.bf16.msra.mxu0 0
        %3153 = vmatprep.subr.bf16.mxu0 0
        %3154 = vmatpush1.bf16.msra.mxu0 0
        %3155 = vmatprep.subr.bf16.mxu0 0
        %3156 = vmatpush1.bf16.msra.mxu0 0
        %3157 = vmatprep.subr.bf16.mxu0 0
        %3158 = vmatpush1.bf16.msra.mxu0 0
        %3159 = vmatprep.subr.bf16.mxu0 0
        %3160 = vmatpush1.bf16.msra.mxu0 0
        %3161 = vmatprep.subr.bf16.mxu0 0
        %3162 = vmatpush1.bf16.msra.mxu0 0
        %3163 = vmatprep.subr.bf16.mxu0 0
        %3164 = vmatpush1.bf16.msra.mxu0 0
        %3165 = vmatprep.subr.bf16.mxu0 0
        %3166 = vmatpush1.bf16.msra.mxu0 0
        %3167 = vmatprep.subr.bf16.mxu0 0
        %3168 = vmatpush1.bf16.msra.mxu0 0
        %3169 = vmatprep.subr.bf16.mxu0 0
        %3170 = vmatpush1.bf16.msra.mxu0 0
        %3171 = vmatprep.subr.bf16.mxu0 0
        %3172 = vmatpush1.bf16.msra.mxu0 0
        %3173 = vmatprep.subr.bf16.mxu0 0
        %3174 = vmatpush1.bf16.msra.mxu0 0
        %3175 = vmatprep.subr.bf16.mxu0 0
        %3176 = vmatpush1.bf16.msra.mxu0 0
        %3177 = vmatprep.mubr.bf16.mxu0 0
        %3178 = vmatmul.mubr.bf16.gmra.mrb[0].mxu0 %v3143
        %v3179 = vpop.f32.mrb[0].mxu0
        %v3180 = vadd.f32 %v3128, %v3179
        %v3181 = vpop.f32.mrb[0].mxu0
        %v3182 = vpop.f32.mrb[0].mxu0
        %v3183 = vpop.f32.mrb[0].mxu0
        %3184 = vdwg.mxu0
        %v3185 = vmul.f32 %v3180, 0.5
        %v3186 = vmul.f32 %v3180, 0.70710677
        %v3187 = verf.f32.pop %v3186
        %v3188 = vadd.f32 %v3187, 1.0
        %v3189 = vmul.f32 %v3185, %v3188
        %v3190 = vpack.c.bf16 %v3189, %v3189
        %v3191 = vld [vmem:[%s20] sm:$0xf]
        %v3192 = vld [vmem:[%s20 + $0x4] sm:$0xf]
        %v3193 = vld [vmem:[%s20 + $0x8] sm:$0xf]
        %v3194 = vld [vmem:[%s20 + $0xc] sm:$0xf]
        %v3195 = vld [vmem:[%s20 + $0x10] sm:$0xf]
        %v3196 = vld [vmem:[%s20 + $0x14] sm:$0xf]
        %v3197 = vld [vmem:[%s20 + $0x18] sm:$0xf]
        %v3198 = vld [vmem:[%s20 + $0x1c] sm:$0xf]
        %v3199 = vld [vmem:[%s21] sm:$0x1]
        %v3201 = vlaneseq
        %v3202 = vshrl.u32 %v3201, 7
        %v3203 = vsub.s32 0, %v3202
        %v3204 = vrot.slane %v3199, %v3203
        %v3214 = vunpack.c.l.b16 %v3191
        %v3215 = vunpack.c.l.b16 %v3192
        %v3216 = vunpack.c.l.b16 %v3193
        %v3217 = vunpack.c.l.b16 %v3194
        %v3218 = vunpack.c.l.b16 %v3195
        %v3219 = vunpack.c.l.b16 %v3196
        %v3220 = vunpack.c.l.b16 %v3197
        %v3221 = vunpack.c.l.b16 %v3198
        %v3222 = vpack.c.b16 %v3215, %v3214
        %v3223 = vpack.c.b16 %v3217, %v3216
        %v3224 = vpack.c.b16 %v3219, %v3218
        %v3225 = vpack.c.b16 %v3221, %v3220
        %vm3230 = vcmask 523264
        %v3232 = vsel %vm3230, %v3190, 0
        %3234 = vmatprep.subr.bf16.mxu0 0
        %3235 = vmatpush1.bf16.msra.mxu0 %v3222
        %3236 = vmatprep.subr.bf16.mxu0 0
        %3237 = vmatpush1.bf16.msra.mxu0 %v3223
        %3238 = vmatprep.subr.bf16.mxu0 0
        %3239 = vmatpush1.bf16.msra.mxu0 %v3224
        %3240 = vmatprep.subr.bf16.mxu0 0
        %3241 = vmatpush1.bf16.msra.mxu0 %v3225
        %3242 = vmatprep.subr.bf16.mxu0 0
        %3243 = vmatpush1.bf16.msra.mxu0 0
        %3244 = vmatprep.subr.bf16.mxu0 0
        %3245 = vmatpush1.bf16.msra.mxu0 0
        %3246 = vmatprep.subr.bf16.mxu0 0
        %3247 = vmatpush1.bf16.msra.mxu0 0
        %3248 = vmatprep.subr.bf16.mxu0 0
        %3249 = vmatpush1.bf16.msra.mxu0 0
        %3250 = vmatprep.subr.bf16.mxu0 0
        %3251 = vmatpush1.bf16.msra.mxu0 0
        %3252 = vmatprep.subr.bf16.mxu0 0
        %3253 = vmatpush1.bf16.msra.mxu0 0
        %3254 = vmatprep.subr.bf16.mxu0 0
        %3255 = vmatpush1.bf16.msra.mxu0 0
        %3256 = vmatprep.subr.bf16.mxu0 0
        %3257 = vmatpush1.bf16.msra.mxu0 0
        %3258 = vmatprep.subr.bf16.mxu0 0
        %3259 = vmatpush1.bf16.msra.mxu0 0
        %3260 = vmatprep.subr.bf16.mxu0 0
        %3261 = vmatpush1.bf16.msra.mxu0 0
        %3262 = vmatprep.subr.bf16.mxu0 0
        %3263 = vmatpush1.bf16.msra.mxu0 0
        %3264 = vmatprep.subr.bf16.mxu0 0
        %3265 = vmatpush1.bf16.msra.mxu0 0
        %3266 = vmatprep.mubr.bf16.mxu0 0
        %3267 = vmatmul.mubr.bf16.gmra.mrb[0].mxu0 %v3232
        %v3268 = vpop.f32.mrb[0].mxu0
        %v3269 = vadd.f32 %v3204, %v3268
        %v3270 = vpop.f32.mrb[0].mxu0
        %v3271 = vpop.f32.mrb[0].mxu0
        %v3272 = vpop.f32.mrb[0].mxu0
        %3273 = vdwg.mxu0
        %v3274 = vadd.f32 %v3117, %v3269
        %v3275 = vsel %vm851, %v3274, 0.0
        %3276 = vadd.xlane.f32.xlu0 %v3275
        %v3277 = vpop.xlane.xlu0 %3276
        %v3278 = vmul.f32 %v3277, %v1851
        %v3279 = vsub.f32 %v3274, %v3278
        %v3280 = vmul.f32 %v3279, %v3279
        %v3281 = vsel %vm851, %v3280, 0.0
        %3282 = vadd.xlane.f32.xlu0 %v3281
        %v3283 = vpop.xlane.xlu0 %3282
        %v3284 = vmul.f32 %v3283, %v1851
        %v3285 = vadd.f32 %v3284, 1e-05
        %v3286 = vrsqrt.pop %v3285
        %v3287 = vmul.f32 %v3279, %v3286
        %v3288 = vld [vmem:[%s16] sm:$0x1]
        %v3290 = vlaneseq
        %v3291 = vshrl.u32 %v3290, 7
        %v3292 = vsub.s32 0, %v3291
        %v3293 = vrot.slane %v3288, %v3292
        %v3295 = vmul.f32 %v3287, %v3293
        %v3296 = vld [vmem:[%s17] sm:$0x1]
        %v3298 = vlaneseq
        %v3299 = vshrl.u32 %v3298, 7
        %v3300 = vsub.s32 0, %v3299
        %v3301 = vrot.slane %v3296, %v3300
        %v3303 = vadd.f32 %v3295, %v3301
        %3304 = vst.msk [vmem:[%s689] sm:$0xff] %vm851, %v3303
        %s3305 = sand.u32 %s516, 1
        %s3306 = scalar_lea.sflag [#allocation3], %s3305
        %s3307 = sand.u32 %s516, 1
        %s3308 = smul.addr %s3307, 8
        %s3309 = scalar_lea.vmem [#allocation2], %s3308
        // Predicated region
        $region109: #{tpu_custom_call.1} parent=107 // pred_check
          %p3310 = pneg %p526
        $region110: #{tpu_custom_call.1} parent=107 // pred_check_branch
          %3312 = sbr.rel (%p3310) target = $region112
        $region111: #{tpu_custom_call.1} parent=107 // pred_region
          %s3314 = ssub.s32 128, 128
          %3315 = vsyncadd %s3306, %s3314
          %s3316 = smul.addr %s36, 128
          %s3317 = scalar_lea.hbm %s22, %s3316
          %s3319 = sshll.u32 %s3309, 4
          %s3320 = int_to_ptr.vmem [resolvable:$true] %s3319
          %3322 = dma.vmem_to_hbm [thread:$0]  %s3320, 128, %s3317, %s3306
        $region112: #{tpu_custom_call.1} parent=107 // pred_fallthru
          _
      $region108: #{tpu_custom_call.1} parent=5 // pred_fallthru
        _
      %p3323 = scmp.le.s32.totalorder 2, %s31
      // Predicated region
      $region113: #{tpu_custom_call.1} parent=5 // pred_check
        %p3324 = pneg %p3323
      $region114: #{tpu_custom_call.1} parent=5 // pred_check_branch
        %3326 = sbr.rel (%p3324) target = $region116
      $region115: #{tpu_custom_call.1} parent=5 // pred_region
        %s3327 = ssub.s32 %s31, 2
        // Predicated region
        $region117: #{tpu_custom_call.1} parent=115 // pred_check
          %p3328 = pneg %p532
        $region118: #{tpu_custom_call.1} parent=115 // pred_check_branch
          %3330 = sbr.rel (%p3328) target = $region120
        $region119: #{tpu_custom_call.1} parent=115 // pred_region
          %s3331 = sand.u32 %s517, 1
          %s3332 = scalar_lea.sflag [#allocation3], %s3331
          %s3333 = sand.u32 %s517, 1
          %s3334 = smul.addr %s3333, 8
          %s3335 = scalar_lea.vmem [#allocation2], %s3334
          %3336 = dma.done %s3332, 128
        $region120: #{tpu_custom_call.1} parent=115 // pred_fallthru
          _
      $region116: #{tpu_custom_call.1} parent=5 // pred_fallthru
        _
    $region6: #{tpu_custom_call.1} parent=1 // loop_footer
      %s35 = sadd.s32 1, %s31
    $region7: #{tpu_custom_call.1} parent=1 // loop_footer_branch
      %30 = sbr.rel target = $region3
    $region8: #{tpu_custom_call.1} parent=1 // loop_exit
      _
    %3337 = vsyncpa [#allocation3], 1
    %s3338 = scalar_lea.sflag [#allocation3], 1
    %3339 = vsyncpa %s3338, 1

</llo_original>
